<compile_context>
chip_gen: v7x
topology: tpu7x:2x2x1
jax: 0.10.0
libtpu: 0.0.40
codegen_flags: <defaults>
</compile_context>

<pallas_src>
import functools
import math

import jax
import jax.numpy as jnp
from jax import lax
from jax.experimental import pallas as pl
from jax.experimental.pallas import tpu as pltpu


# Explicit scoped-VMEM budget: fits every generation (v7x physical = 64 MiB);
# tiles below are sized to use well under this, leaving double-buffer headroom.
_VMEM_LIMIT = 64 * 1024 * 1024


# ---------------------------------------------------------------------------
# Tile selection: largest `align`-multiple divisor of `dim` that is <= preferred
# ---------------------------------------------------------------------------

def _pick_tile(dim, preferred, align):
    if dim <= preferred:
        return dim
    t = (preferred // align) * align
    while t >= align:
        if dim % t == 0:
            return t
        t -= align
    # TODO(synk): masked tail tiles (pl.cdiv grid) or upstream padding for dims
    # with no aligned divisor; falling back to the full dim for now.
    return dim


# ---------------------------------------------------------------------------
# Kernel A: fused QKV projection (no head axis, x read once, wide MXU N)
# ---------------------------------------------------------------------------

def _qkv_proj_kernel(x_ref, wq_ref, wk_ref, wv_ref, bq_ref, bk_ref, bv_ref,
                     q_ref, k_ref, v_ref, acc_q, acc_k, acc_v):
    kk = pl.program_id(2)

    @pl.when(kk == 0)
    def _():
        acc_q[...] = jnp.zeros_like(acc_q)
        acc_k[...] = jnp.zeros_like(acc_k)
        acc_v[...] = jnp.zeros_like(acc_v)

    x = x_ref[...]                                        # (tq, tk)
    acc_q[...] += jnp.dot(x, wq_ref[...], preferred_element_type=jnp.float32)
    acc_k[...] += jnp.dot(x, wk_ref[...], preferred_element_type=jnp.float32)
    acc_v[...] += jnp.dot(x, wv_ref[...], preferred_element_type=jnp.float32)

    @pl.when(kk == pl.num_programs(2) - 1)
    def _():
        # Three lane-dense full-block stores in concat-head (B, T, emb) layout.
        q_ref[...] = (acc_q[...] + bq_ref[...]).astype(q_ref.dtype)
        k_ref[...] = (acc_k[...] + bk_ref[...]).astype(k_ref.dtype)
        v_ref[...] = (acc_v[...] + bv_ref[...]).astype(v_ref.dtype)


def _qkv_project(x, Wq_t, Wk_t, Wv_t, bq, bk, bv, tq, tk):
    B, T, d_in = x.shape
    emb = Wq_t.shape[1]
    grid = (B, T // tq, d_in // tk)
    out_sds = jax.ShapeDtypeStruct((B, T, emb), x.dtype)
    out_spec = pl.BlockSpec((None, tq, emb), lambda b, ti, kk: (b, ti, 0))
    w_spec = pl.BlockSpec((tk, emb), lambda b, ti, kk: (kk, 0))
    b_spec = pl.BlockSpec((1, emb), lambda b, ti, kk: (0, 0))
    return pl.pallas_call(
        _qkv_proj_kernel,
        out_shape=(out_sds, out_sds, out_sds),
        grid=grid,
        in_specs=[
            pl.BlockSpec((None, tq, tk), lambda b, ti, kk: (b, ti, kk)),
            w_spec, w_spec, w_spec,
            b_spec, b_spec, b_spec,
        ],
        out_specs=(out_spec, out_spec, out_spec),
        scratch_shapes=[pltpu.VMEM((tq, emb), jnp.float32)] * 3,
        compiler_params=pltpu.CompilerParams(
            dimension_semantics=("parallel", "parallel", "arbitrary"),
            vmem_limit_bytes=_VMEM_LIMIT),
    )(x, Wq_t, Wk_t, Wv_t, bq, bk, bv)


# ---------------------------------------------------------------------------
# Kernel B: flash attention over concat-head (B, T, emb) q/k/v
#   grid = (B, q_tiles, kv_tiles); heads unrolled in-kernel; output written
#   directly in concat-head layout; also emits per-head LSE (for kernel C).
# ---------------------------------------------------------------------------

def _flash_attn_kernel(q_ref, k_ref, v_ref, o_ref, lse_ref,
                       m_ref, l_ref, acc_ref, *, num_heads, head_dim):
    ki = pl.program_id(2)

    @pl.when(ki == 0)
    def _():
        m_ref[...] = jnp.full_like(m_ref, -jnp.inf)
        l_ref[...] = jnp.zeros_like(l_ref)
        acc_ref[...] = jnp.zeros_like(acc_ref)

    q_all = q_ref[...]        # (tq, emb), q pre-scaled (scale folded into Wq/bq)
    k_all = k_ref[...]        # (tkv, emb)
    v_all = v_ref[...]        # (tkv, emb)

    for h in range(num_heads):                 # static unroll over heads
        lo = h * head_dim
        hi = lo + head_dim
        q = q_all[:, lo:hi]
        k = k_all[:, lo:hi]
        v = v_all[:, lo:hi]
        s = lax.dot_general(q, k, (((1,), (1,)), ((), ())),
                            preferred_element_type=jnp.float32)   # (tq, tkv)
        # TODO(synk): additive / boolean attention mask (module's mask=None path).
        m_prev = m_ref[h]                                         # (tq, 1)
        m_new = jnp.maximum(m_prev, jnp.max(s, axis=-1, keepdims=True))
        alpha = jnp.exp(m_prev - m_new)
        # TODO(synk): with bf16 activations on v6e/v7x, compute exp on the bf16
        # EUP path (keep m/l/acc in f32); not applicable to this f32 demo / v5e.
        p = jnp.exp(s - m_new)
        l_ref[h] = alpha * l_ref[h] + jnp.sum(p, axis=-1, keepdims=True)
        acc_ref[h] = alpha * acc_ref[h] + jnp.dot(
            p.astype(v.dtype), v, preferred_element_type=jnp.float32)
        m_ref[h] = m_new

    @pl.when(ki == pl.num_programs(2) - 1)
    def _():
        pieces = []
        for h in range(num_heads):
            inv = pl.reciprocal(l_ref[h], approx=False)   # exact; once per tile
            pieces.append((acc_ref[h] * inv).astype(o_ref.dtype))
            lse_ref[h] = m_ref[h] + jnp.log(l_ref[h])
        # Single lane-dense (tq, emb) store in concat-head layout.
        o_ref[...] = jnp.concatenate(pieces, axis=-1)


def _flash_attention(q, k, v, num_heads, head_dim, tq, tkv):
    B, T, emb = q.shape
    grid = (B, T // tq, T // tkv)
    kernel = functools.partial(_flash_attn_kernel,
                               num_heads=num_heads, head_dim=head_dim)
    return pl.pallas_call(
        kernel,
        out_shape=(jax.ShapeDtypeStruct((B, T, emb), q.dtype),
                   jax.ShapeDtypeStruct((B, num_heads, T, 1), jnp.float32)),
        grid=grid,
        in_specs=[
            pl.BlockSpec((None, tq, emb), lambda b, qi, ki: (b, qi, 0)),
            pl.BlockSpec((None, tkv, emb), lambda b, qi, ki: (b, ki, 0)),
            pl.BlockSpec((None, tkv, emb), lambda b, qi, ki: (b, ki, 0)),
        ],
        out_specs=(
            pl.BlockSpec((None, tq, emb), lambda b, qi, ki: (b, qi, 0)),
            pl.BlockSpec((None, num_heads, tq, 1), lambda b, qi, ki: (b, 0, qi, 0)),
        ),
        scratch_shapes=[
            pltpu.VMEM((num_heads, tq, 1), jnp.float32),          # running max m
            pltpu.VMEM((num_heads, tq, 1), jnp.float32),          # running sum l
            pltpu.VMEM((num_heads, tq, head_dim), jnp.float32),   # output acc
        ],
        compiler_params=pltpu.CompilerParams(
            dimension_semantics=("parallel", "parallel", "arbitrary"),
            vmem_limit_bytes=_VMEM_LIMIT),
    )(q, k, v)


# ---------------------------------------------------------------------------
# Kernel C: attention probabilities (return_attention=True), kv-tiled.
#   Recomputes scores tile-by-tile and normalizes with the LSE from kernel B,
#   so the VMEM footprint stays O(tq*tkv) regardless of T.
# ---------------------------------------------------------------------------

def _attn_probs_kernel(q_ref, k_ref, lse_ref, a_ref, *, num_heads, head_dim):
    q_all = q_ref[...]        # (tq, emb), pre-scaled
    k_all = k_ref[...]        # (tkv, emb)
    for h in range(num_heads):
        lo = h * head_dim
        hi = lo + head_dim
        s = lax.dot_general(q_all[:, lo:hi], k_all[:, lo:hi],
                            (((1,), (1,)), ((), ())),
                            preferred_element_type=jnp.float32)   # (tq, tkv)
        a_ref[h] = jnp.exp(s - lse_ref[h]).astype(a_ref.dtype)


def _attention_probs(q, k, lse, num_heads, head_dim, tq, tkv):
    B, T, emb = q.shape
    grid = (B, T // tq, T // tkv)
    kernel = functools.partial(_attn_probs_kernel,
                               num_heads=num_heads, head_dim=head_dim)
    return pl.pallas_call(
        kernel,
        out_shape=jax.ShapeDtypeStruct((B, num_heads, T, T), jnp.float32),
        grid=grid,
        in_specs=[
            pl.BlockSpec((None, tq, emb), lambda b, qi, ki: (b, qi, 0)),
            pl.BlockSpec((None, tkv, emb), lambda b, qi, ki: (b, ki, 0)),
            pl.BlockSpec((None, num_heads, tq, 1), lambda b, qi, ki: (b, 0, qi, 0)),
        ],
        out_specs=pl.BlockSpec((None, num_heads, tq, tkv),
                               lambda b, qi, ki: (b, 0, qi, ki)),
        compiler_params=pltpu.CompilerParams(
            dimension_semantics=("parallel", "parallel", "parallel"),
            vmem_limit_bytes=_VMEM_LIMIT),
    )(q, k, lse)


# ---------------------------------------------------------------------------
# Kernel D: output projection -- plain (tq, emb) @ (emb, tn) matmul, full-emb
# contraction tiled on the innermost grid axis (no per-head K axis).
# ---------------------------------------------------------------------------

def _out_proj_kernel(x_ref, w_ref, b_ref, o_ref, acc_ref):
    kk = pl.program_id(3)

    @pl.when(kk == 0)
    def _():
        acc_ref[...] = jnp.zeros_like(acc_ref)

    acc_ref[...] += jnp.dot(x_ref[...], w_ref[...],
                            preferred_element_type=jnp.float32)

    @pl.when(kk == pl.num_programs(3) - 1)
    def _():
        o_ref[...] = (acc_ref[...] + b_ref[...]).astype(o_ref.dtype)


def _out_project(vals, Wo_t, bo_r, tq, tn, tko):
    B, T, emb_in = vals.shape
    emb_out = Wo_t.shape[1]
    grid = (B, T // tq, emb_out // tn, emb_in // tko)
    return pl.pallas_call(
        _out_proj_kernel,
        out_shape=jax.ShapeDtypeStruct((B, T, emb_out), vals.dtype),
        grid=grid,
        in_specs=[
            pl.BlockSpec((None, tq, tko), lambda b, ti, nj, kk: (b, ti, kk)),
            pl.BlockSpec((tko, tn), lambda b, ti, nj, kk: (kk, nj)),
            pl.BlockSpec((1, tn), lambda b, ti, nj, kk: (0, nj)),
        ],
        out_specs=pl.BlockSpec((None, tq, tn), lambda b, ti, nj, kk: (b, ti, nj)),
        scratch_shapes=[pltpu.VMEM((tq, tn), jnp.float32)],
        compiler_params=pltpu.CompilerParams(
            dimension_semantics=("parallel", "parallel", "parallel", "arbitrary"),
            vmem_limit_bytes=_VMEM_LIMIT),
    )(vals, Wo_t, bo_r)


# ---------------------------------------------------------------------------
# Module forward
# ---------------------------------------------------------------------------

def multi_head_attention(x, Wqkv, bqkv, Wo, bo, num_heads, return_attention=False):
    B, T, d_in = x.shape
    emb_dim = Wo.shape[0]
    assert emb_dim % num_heads == 0
    head_dim = emb_dim // num_heads
    scale = 1.0 / math.sqrt(head_dim)

    # Host-side weight repack (done once per model in practice; hoist to
    # weight-load time).  PyTorch QKV weight rows are ordered
    # [head0:(q|k|v) | head1:(q|k|v) | ...]; regroup into Wq/Wk/Wv with
    # head-major output columns (= the concat-head layout O_proj expects),
    # pre-transpose to K-major (in, out), and fold the q scale into Wq/bq.
    W4 = Wqkv.reshape(num_heads, 3, head_dim, d_in)
    b4 = bqkv.reshape(num_heads, 3, head_dim)
    Wq_t = (W4[:, 0].reshape(emb_dim, d_in) * scale).T     # (d_in, emb)
    Wk_t = W4[:, 1].reshape(emb_dim, d_in).T
    Wv_t = W4[:, 2].reshape(emb_dim, d_in).T
    bq = (b4[:, 0].reshape(1, emb_dim) * scale)
    bk = b4[:, 1].reshape(1, emb_dim)
    bv = b4[:, 2].reshape(1, emb_dim)
    Wo_t = Wo.T                                            # (emb, emb) input-major
    bo_r = bo.reshape(1, emb_dim)

    # Tiles: aligned divisors <= preferred (row/sublane tiles align to 8,
    # lane/contraction tiles to 128).  On v6e sweep tkv up to 1024; on v7x keep
    # within the explicit 64 MiB VMEM budget before raising further.
    tq = _pick_tile(T, 512, 8)
    tkv = _pick_tile(T, 512, 128)
    tk = _pick_tile(d_in, 512, 128)
    tn = _pick_tile(emb_dim, 512, 128)
    tko = _pick_tile(emb_dim, 512, 128)
    # TODO(synk): if profiling shows exposed K/V DMA on v5e, add
    # pipeline_mode=pl.Buffered(3) to the k/v in_specs of the flash kernel.

    q, k, v = _qkv_project(x, Wq_t, Wk_t, Wv_t, bq, bk, bv, tq, tk)
    vals, lse = _flash_attention(q, k, v, num_heads, head_dim, tq, tkv)
    out = _out_project(vals, Wo_t, bo_r, tq, tn, tko)

    if return_attention:
        attn = _attention_probs(q, k, lse, num_heads, head_dim, tq, tkv)
        return out, attn
    return out


# ---------------------------------------------------------------------------
# Deterministic parameter init (xavier_uniform / xavier_normal as in _reset;
# biases randomized here so the bias-add paths are actually exercised).
# ---------------------------------------------------------------------------

def init_params(key, in_dim, emb_dim):
    k1, k2, k3, k4 = jax.random.split(key, 4)
    fan_in, fan_out = in_dim, 3 * emb_dim
    bound = math.sqrt(6.0 / (fan_in + fan_out))
    Wqkv = jax.random.uniform(k1, (3 * emb_dim, in_dim), jnp.float32, -bound, bound)
    bqkv = 0.1 * jax.random.normal(k3, (3 * emb_dim,), jnp.float32)
    std = math.sqrt(2.0 / (emb_dim + emb_dim))
    Wo = std * jax.random.normal(k2, (emb_dim, emb_dim), jnp.float32)
    bo = 0.1 * jax.random.normal(k4, (emb_dim,), jnp.float32)
    return Wqkv, bqkv, Wo, bo


# ---------------------------------------------------------------------------
# Pure-JAX reference (mirrors the PyTorch module exactly)
# ---------------------------------------------------------------------------

def reference_mha(x, Wqkv, bqkv, Wo, bo, num_heads):
    B, T, d_in = x.shape
    emb_dim = Wo.shape[0]
    head_dim = emb_dim // num_heads
    qkv = x @ Wqkv.T + bqkv
    qkv = qkv.reshape(B, T, num_heads, 3 * head_dim).transpose(0, 2, 1, 3)
    q, k, v = jnp.split(qkv, 3, axis=-1)
    scores = jnp.einsum("bhqd,bhkd->bhqk", q, k) / math.sqrt(head_dim)
    attn = jax.nn.softmax(scores, axis=-1)
    vals = jnp.einsum("bhqk,bhkd->bhqd", attn, v)
    vals = vals.transpose(0, 2, 1, 3).reshape(B, T, emb_dim)
    out = vals @ Wo.T + bo
    return out, attn


if __name__ == "__main__":
    B, T, in_dim, emb_dim, num_heads = 2, 8, 32, 32, 4

    key = jax.random.PRNGKey(0)
    kx, kp = jax.random.split(key)
    x = jax.random.normal(kx, (B, T, in_dim), jnp.float32)
    Wqkv, bqkv, Wo, bo = init_params(kp, in_dim, emb_dim)

    mha = jax.jit(multi_head_attention,
                  static_argnames=("num_heads", "return_attention"))

    ref_out, ref_attn = reference_mha(x, Wqkv, bqkv, Wo, bo, num_heads)

    # Default path: flash attention, no attention matrix materialized.
    out = mha(x, Wqkv, bqkv, Wo, bo, num_heads=num_heads)
    out = jax.block_until_ready(out)
    assert out.shape == (B, T, emb_dim)
    assert jnp.allclose(out, ref_out, atol=1e-3, rtol=1e-3), "flash path mismatch"

    # return_attention=True path (kv-tiled probability kernel).
    out2, attn = mha(x, Wqkv, bqkv, Wo, bo, num_heads=num_heads,
                     return_attention=True)
    out2, attn = jax.block_until_ready((out2, attn))
    assert attn.shape == (B, num_heads, T, T)
    assert jnp.allclose(out2, ref_out, atol=1e-3, rtol=1e-3), "probs path out mismatch"
    assert jnp.allclose(attn, ref_attn, atol=1e-3, rtol=1e-3), "attention mismatch"

    print("KERNEL_OK")
</pallas_src>

<mosaic_0001>
module attributes {stable_mosaic.version = 11 : i64} {
  func.func @_qkv_proj_kernel(%arg0: i32, %arg1: i32, %arg2: i32, %arg3: memref<1x8x32xf32, #tpu.memory_space<vmem>>, %arg4: memref<32x32xf32, #tpu.memory_space<vmem>>, %arg5: memref<32x32xf32, #tpu.memory_space<vmem>>, %arg6: memref<32x32xf32, #tpu.memory_space<vmem>>, %arg7: memref<1x32xf32, #tpu.memory_space<vmem>>, %arg8: memref<1x32xf32, #tpu.memory_space<vmem>>, %arg9: memref<1x32xf32, #tpu.memory_space<vmem>>, %arg10: memref<1x8x32xf32, #tpu.memory_space<vmem>>, %arg11: memref<1x8x32xf32, #tpu.memory_space<vmem>>, %arg12: memref<1x8x32xf32, #tpu.memory_space<vmem>>, %arg13: memref<8x32xf32, #tpu.memory_space<vmem>>, %arg14: memref<8x32xf32, #tpu.memory_space<vmem>>, %arg15: memref<8x32xf32, #tpu.memory_space<vmem>>) attributes {dimension_semantics = [#tpu.dimension_semantics<parallel>, #tpu.dimension_semantics<parallel>, #tpu.dimension_semantics<arbitrary>], iteration_bounds = array<i64: 2, 1, 1>, scalar_prefetch = 0 : i64, scratch_operands = 3 : i64, tpu.core_type = #tpu.core_type<tc>, window_params = [{transform_indices = @transform_0, window_bounds = array<i64: 1, 8, 32>}, {transform_indices = @transform_1, window_bounds = array<i64: 32, 32>}, {transform_indices = @transform_2, window_bounds = array<i64: 32, 32>}, {transform_indices = @transform_3, window_bounds = array<i64: 32, 32>}, {pipeline_mode = #tpu.pipeline_mode<synchronous>, transform_indices = @transform_4, window_bounds = array<i64: 1, 32>}, {pipeline_mode = #tpu.pipeline_mode<synchronous>, transform_indices = @transform_5, window_bounds = array<i64: 1, 32>}, {pipeline_mode = #tpu.pipeline_mode<synchronous>, transform_indices = @transform_6, window_bounds = array<i64: 1, 32>}, {transform_indices = @transform_7, window_bounds = array<i64: 1, 8, 32>}, {transform_indices = @transform_8, window_bounds = array<i64: 1, 8, 32>}, {transform_indices = @transform_9, window_bounds = array<i64: 1, 8, 32>}]} {
    %c0_i32 = arith.constant 0 : i32
    %0 = arith.cmpi eq, %arg2, %c0_i32 : i32
    %1 = arith.extui %0 : i1 to i32
    %c0_i32_0 = arith.constant 0 : i32
    %2 = arith.cmpi ne, %1, %c0_i32_0 : i32
    scf.if %2 {
      %cst_25 = arith.constant 0.000000e+00 : f32
      %23 = vector.broadcast %cst_25 : f32 to vector<8x32xf32>
      %c0_26 = arith.constant 0 : index
      %c0_27 = arith.constant 0 : index
      %24 = vector.load %arg13[%c0_26, %c0_27] : memref<8x32xf32, #tpu.memory_space<vmem>>, vector<8x32xf32>
      tpu.vector_store %arg13[%c0_26, %c0_27], %23 {strides = array<i32>} : memref<8x32xf32, #tpu.memory_space<vmem>>, vector<8x32xf32>,
      %cst_28 = arith.constant 0.000000e+00 : f32
      %25 = vector.broadcast %cst_28 : f32 to vector<8x32xf32>
      %c0_29 = arith.constant 0 : index
      %c0_30 = arith.constant 0 : index
      %26 = vector.load %arg14[%c0_29, %c0_30] : memref<8x32xf32, #tpu.memory_space<vmem>>, vector<8x32xf32>
      tpu.vector_store %arg14[%c0_29, %c0_30], %25 {strides = array<i32>} : memref<8x32xf32, #tpu.memory_space<vmem>>, vector<8x32xf32>,
      %cst_31 = arith.constant 0.000000e+00 : f32
      %27 = vector.broadcast %cst_31 : f32 to vector<8x32xf32>
      %c0_32 = arith.constant 0 : index
      %c0_33 = arith.constant 0 : index
      %28 = vector.load %arg15[%c0_32, %c0_33] : memref<8x32xf32, #tpu.memory_space<vmem>>, vector<8x32xf32>
      tpu.vector_store %arg15[%c0_32, %c0_33], %27 {strides = array<i32>} : memref<8x32xf32, #tpu.memory_space<vmem>>, vector<8x32xf32>,
    } else {
    }
    %c0 = arith.constant 0 : index
    %c0_1 = arith.constant 0 : index
    %c0_2 = arith.constant 0 : index
    %3 = vector.load %arg3[%c0, %c0_1, %c0_2] : memref<1x8x32xf32, #tpu.memory_space<vmem>>, vector<1x8x32xf32>
    %4 = vector.shape_cast %3 : vector<1x8x32xf32> to vector<8x32xf32>
    %c0_3 = arith.constant 0 : index
    %c0_4 = arith.constant 0 : index
    %5 = vector.load %arg13[%c0_3, %c0_4] : memref<8x32xf32, #tpu.memory_space<vmem>>, vector<8x32xf32>
    %c0_5 = arith.constant 0 : index
    %c0_6 = arith.constant 0 : index
    %6 = vector.load %arg4[%c0_5, %c0_6] : memref<32x32xf32, #tpu.memory_space<vmem>>, vector<32x32xf32>
    %cst = arith.constant dense<0.000000e+00> : vector<8x32xf32>
    %7 = tpu.matmul %4, %6, %cst {dimension_numbers = #tpu.dot_dimension_numbers<[1], [0], [0], [1], [0, 0, 1, 1], [], []>} : vector<8x32xf32>, vector<32x32xf32>, vector<8x32xf32> -> vector<8x32xf32>
    %8 = arith.addf %5, %7 : vector<8x32xf32>
    %c0_7 = arith.constant 0 : index
    %c0_8 = arith.constant 0 : index
    %9 = vector.load %arg13[%c0_7, %c0_8] : memref<8x32xf32, #tpu.memory_space<vmem>>, vector<8x32xf32>
    tpu.vector_store %arg13[%c0_7, %c0_8], %8 {strides = array<i32>} : memref<8x32xf32, #tpu.memory_space<vmem>>, vector<8x32xf32>,
    %c0_9 = arith.constant 0 : index
    %c0_10 = arith.constant 0 : index
    %10 = vector.load %arg14[%c0_9, %c0_10] : memref<8x32xf32, #tpu.memory_space<vmem>>, vector<8x32xf32>
    %c0_11 = arith.constant 0 : index
    %c0_12 = arith.constant 0 : index
    %11 = vector.load %arg5[%c0_11, %c0_12] : memref<32x32xf32, #tpu.memory_space<vmem>>, vector<32x32xf32>
    %cst_13 = arith.constant dense<0.000000e+00> : vector<8x32xf32>
    %12 = tpu.matmul %4, %11, %cst_13 {dimension_numbers = #tpu.dot_dimension_numbers<[1], [0], [0], [1], [0, 0, 1, 1], [], []>} : vector<8x32xf32>, vector<32x32xf32>, vector<8x32xf32> -> vector<8x32xf32>
    %13 = arith.addf %10, %12 : vector<8x32xf32>
    %c0_14 = arith.constant 0 : index
    %c0_15 = arith.constant 0 : index
    %14 = vector.load %arg14[%c0_14, %c0_15] : memref<8x32xf32, #tpu.memory_space<vmem>>, vector<8x32xf32>
    tpu.vector_store %arg14[%c0_14, %c0_15], %13 {strides = array<i32>} : memref<8x32xf32, #tpu.memory_space<vmem>>, vector<8x32xf32>,
    %c0_16 = arith.constant 0 : index
    %c0_17 = arith.constant 0 : index
    %15 = vector.load %arg15[%c0_16, %c0_17] : memref<8x32xf32, #tpu.memory_space<vmem>>, vector<8x32xf32>
    %c0_18 = arith.constant 0 : index
    %c0_19 = arith.constant 0 : index
    %16 = vector.load %arg6[%c0_18, %c0_19] : memref<32x32xf32, #tpu.memory_space<vmem>>, vector<32x32xf32>
    %cst_20 = arith.constant dense<0.000000e+00> : vector<8x32xf32>
    %17 = tpu.matmul %4, %16, %cst_20 {dimension_numbers = #tpu.dot_dimension_numbers<[1], [0], [0], [1], [0, 0, 1, 1], [], []>} : vector<8x32xf32>, vector<32x32xf32>, vector<8x32xf32> -> vector<8x32xf32>
    %18 = arith.addf %15, %17 : vector<8x32xf32>
    %c0_21 = arith.constant 0 : index
    %c0_22 = arith.constant 0 : index
    %19 = vector.load %arg15[%c0_21, %c0_22] : memref<8x32xf32, #tpu.memory_space<vmem>>, vector<8x32xf32>
    tpu.vector_store %arg15[%c0_21, %c0_22], %18 {strides = array<i32>} : memref<8x32xf32, #tpu.memory_space<vmem>>, vector<8x32xf32>,
    %c0_i32_23 = arith.constant 0 : i32
    %20 = arith.cmpi eq, %arg2, %c0_i32_23 : i32
    %21 = arith.extui %20 : i1 to i32
    %c0_i32_24 = arith.constant 0 : i32
    %22 = arith.cmpi ne, %21, %c0_i32_24 : i32
    scf.if %22 {
      %c0_25 = arith.constant 0 : index
      %c0_26 = arith.constant 0 : index
      %23 = vector.load %arg13[%c0_25, %c0_26] : memref<8x32xf32, #tpu.memory_space<vmem>>, vector<8x32xf32>
      %c0_27 = arith.constant 0 : index
      %c0_28 = arith.constant 0 : index
      %24 = vector.load %arg7[%c0_27, %c0_28] : memref<1x32xf32, #tpu.memory_space<vmem>>, vector<1x32xf32>
      %25 = vector.broadcast %24 : vector<1x32xf32> to vector<8x32xf32>
      %26 = arith.addf %23, %25 : vector<8x32xf32>
      %c0_29 = arith.constant 0 : index
      %c0_30 = arith.constant 0 : index
      %c0_31 = arith.constant 0 : index
      %27 = vector.load %arg10[%c0_29, %c0_30, %c0_31] : memref<1x8x32xf32, #tpu.memory_space<vmem>>, vector<1x8x32xf32>
      %28 = vector.shape_cast %27 : vector<1x8x32xf32> to vector<8x32xf32>
      %29 = vector.shape_cast %26 : vector<8x32xf32> to vector<1x8x32xf32>
      tpu.vector_store %arg10[%c0_29, %c0_30, %c0_31], %29 {strides = array<i32>} : memref<1x8x32xf32, #tpu.memory_space<vmem>>, vector<1x8x32xf32>,
      %c0_32 = arith.constant 0 : index
      %c0_33 = arith.constant 0 : index
      %30 = vector.load %arg14[%c0_32, %c0_33] : memref<8x32xf32, #tpu.memory_space<vmem>>, vector<8x32xf32>
      %c0_34 = arith.constant 0 : index
      %c0_35 = arith.constant 0 : index
      %31 = vector.load %arg8[%c0_34, %c0_35] : memref<1x32xf32, #tpu.memory_space<vmem>>, vector<1x32xf32>
      %32 = vector.broadcast %31 : vector<1x32xf32> to vector<8x32xf32>
      %33 = arith.addf %30, %32 : vector<8x32xf32>
      %c0_36 = arith.constant 0 : index
      %c0_37 = arith.constant 0 : index
      %c0_38 = arith.constant 0 : index
      %34 = vector.load %arg11[%c0_36, %c0_37, %c0_38] : memref<1x8x32xf32, #tpu.memory_space<vmem>>, vector<1x8x32xf32>
      %35 = vector.shape_cast %34 : vector<1x8x32xf32> to vector<8x32xf32>
      %36 = vector.shape_cast %33 : vector<8x32xf32> to vector<1x8x32xf32>
      tpu.vector_store %arg11[%c0_36, %c0_37, %c0_38], %36 {strides = array<i32>} : memref<1x8x32xf32, #tpu.memory_space<vmem>>, vector<1x8x32xf32>,
      %c0_39 = arith.constant 0 : index
      %c0_40 = arith.constant 0 : index
      %37 = vector.load %arg15[%c0_39, %c0_40] : memref<8x32xf32, #tpu.memory_space<vmem>>, vector<8x32xf32>
      %c0_41 = arith.constant 0 : index
      %c0_42 = arith.constant 0 : index
      %38 = vector.load %arg9[%c0_41, %c0_42] : memref<1x32xf32, #tpu.memory_space<vmem>>, vector<1x32xf32>
      %39 = vector.broadcast %38 : vector<1x32xf32> to vector<8x32xf32>
      %40 = arith.addf %37, %39 : vector<8x32xf32>
      %c0_43 = arith.constant 0 : index
      %c0_44 = arith.constant 0 : index
      %c0_45 = arith.constant 0 : index
      %41 = vector.load %arg12[%c0_43, %c0_44, %c0_45] : memref<1x8x32xf32, #tpu.memory_space<vmem>>, vector<1x8x32xf32>
      %42 = vector.shape_cast %41 : vector<1x8x32xf32> to vector<8x32xf32>
      %43 = vector.shape_cast %40 : vector<8x32xf32> to vector<1x8x32xf32>
      tpu.vector_store %arg12[%c0_43, %c0_44, %c0_45], %43 {strides = array<i32>} : memref<1x8x32xf32, #tpu.memory_space<vmem>>, vector<1x8x32xf32>,
    } else {
    }
    return
  }
  func.func @transform_0(%arg0: i32, %arg1: i32, %arg2: i32) -> (i32, i32, i32) {
    %c0_i32 = arith.constant 0 : i32
    return %arg0, %arg1, %arg2 : i32, i32, i32
  }
  func.func @transform_1(%arg0: i32, %arg1: i32, %arg2: i32) -> (i32, i32) {
    %c0_i32 = arith.constant 0 : i32
    %c0_i32_0 = arith.constant 0 : i32
    return %arg2, %c0_i32 : i32, i32
  }
  func.func @transform_2(%arg0: i32, %arg1: i32, %arg2: i32) -> (i32, i32) {
    %c0_i32 = arith.constant 0 : i32
    %c0_i32_0 = arith.constant 0 : i32
    return %arg2, %c0_i32 : i32, i32
  }
  func.func @transform_3(%arg0: i32, %arg1: i32, %arg2: i32) -> (i32, i32) {
    %c0_i32 = arith.constant 0 : i32
    %c0_i32_0 = arith.constant 0 : i32
    return %arg2, %c0_i32 : i32, i32
  }
  func.func @transform_4(%arg0: i32, %arg1: i32, %arg2: i32) -> (i32, i32) {
    %c0_i32 = arith.constant 0 : i32
    %c0_i32_0 = arith.constant 0 : i32
    %c0_i32_1 = arith.constant 0 : i32
    return %c0_i32, %c0_i32_0 : i32, i32
  }
  func.func @transform_5(%arg0: i32, %arg1: i32, %arg2: i32) -> (i32, i32) {
    %c0_i32 = arith.constant 0 : i32
    %c0_i32_0 = arith.constant 0 : i32
    %c0_i32_1 = arith.constant 0 : i32
    return %c0_i32, %c0_i32_0 : i32, i32
  }
  func.func @transform_6(%arg0: i32, %arg1: i32, %arg2: i32) -> (i32, i32) {
    %c0_i32 = arith.constant 0 : i32
    %c0_i32_0 = arith.constant 0 : i32
    %c0_i32_1 = arith.constant 0 : i32
    return %c0_i32, %c0_i32_0 : i32, i32
  }
  func.func @transform_7(%arg0: i32, %arg1: i32, %arg2: i32) -> (i32, i32, i32) {
    %c0_i32 = arith.constant 0 : i32
    %c0_i32_0 = arith.constant 0 : i32
    return %arg0, %arg1, %c0_i32 : i32, i32, i32
  }
  func.func @transform_8(%arg0: i32, %arg1: i32, %arg2: i32) -> (i32, i32, i32) {
    %c0_i32 = arith.constant 0 : i32
    %c0_i32_0 = arith.constant 0 : i32
    return %arg0, %arg1, %c0_i32 : i32, i32, i32
  }
  func.func @transform_9(%arg0: i32, %arg1: i32, %arg2: i32) -> (i32, i32, i32) {
    %c0_i32 = arith.constant 0 : i32
    %c0_i32_0 = arith.constant 0 : i32
    return %arg0, %arg1, %c0_i32 : i32, i32, i32
  }
}

module attributes {stable_mosaic.version = 11 : i64} {
  func.func @_flash_attn_kernel(%arg0: i32, %arg1: i32, %arg2: i32, %arg3: memref<1x8x32xf32, #tpu.memory_space<vmem>>, %arg4: memref<1x8x32xf32, #tpu.memory_space<vmem>>, %arg5: memref<1x8x32xf32, #tpu.memory_space<vmem>>, %arg6: memref<1x8x32xf32, #tpu.memory_space<vmem>>, %arg7: memref<1x4x8x1xf32, #tpu.memory_space<vmem>>, %arg8: memref<4x8x1xf32, #tpu.memory_space<vmem>>, %arg9: memref<4x8x1xf32, #tpu.memory_space<vmem>>, %arg10: memref<4x8x8xf32, #tpu.memory_space<vmem>>) attributes {dimension_semantics = [#tpu.dimension_semantics<parallel>, #tpu.dimension_semantics<parallel>, #tpu.dimension_semantics<arbitrary>], iteration_bounds = array<i64: 2, 1, 1>, scalar_prefetch = 0 : i64, scratch_operands = 3 : i64, tpu.core_type = #tpu.core_type<tc>, window_params = [{transform_indices = @transform_0, window_bounds = array<i64: 1, 8, 32>}, {transform_indices = @transform_1, window_bounds = array<i64: 1, 8, 32>}, {transform_indices = @transform_2, window_bounds = array<i64: 1, 8, 32>}, {transform_indices = @transform_3, window_bounds = array<i64: 1, 8, 32>}, {transform_indices = @transform_4, window_bounds = array<i64: 1, 4, 8, 1>}]} {
    %c0_i32 = arith.constant 0 : i32
    %0 = arith.cmpi eq, %arg2, %c0_i32 : i32
    %1 = arith.extui %0 : i1 to i32
    %c0_i32_0 = arith.constant 0 : i32
    %2 = arith.cmpi ne, %1, %c0_i32_0 : i32
    scf.if %2 {
      %cst_95 = arith.constant 0xFF800000 : f32
      %152 = vector.broadcast %cst_95 : f32 to vector<4x8x1xf32>
      %c0_96 = arith.constant 0 : index
      %c0_97 = arith.constant 0 : index
      %c0_98 = arith.constant 0 : index
      %153 = vector.load %arg8[%c0_96, %c0_97, %c0_98] : memref<4x8x1xf32, #tpu.memory_space<vmem>>, vector<4x8x1xf32>
      tpu.vector_store %arg8[%c0_96, %c0_97, %c0_98], %152 {strides = array<i32>} : memref<4x8x1xf32, #tpu.memory_space<vmem>>, vector<4x8x1xf32>,
      %cst_99 = arith.constant 0.000000e+00 : f32
      %154 = vector.broadcast %cst_99 : f32 to vector<4x8x1xf32>
      %c0_100 = arith.constant 0 : index
      %c0_101 = arith.constant 0 : index
      %c0_102 = arith.constant 0 : index
      %155 = vector.load %arg9[%c0_100, %c0_101, %c0_102] : memref<4x8x1xf32, #tpu.memory_space<vmem>>, vector<4x8x1xf32>
      tpu.vector_store %arg9[%c0_100, %c0_101, %c0_102], %154 {strides = array<i32>} : memref<4x8x1xf32, #tpu.memory_space<vmem>>, vector<4x8x1xf32>,
      %cst_103 = arith.constant 0.000000e+00 : f32
      %156 = vector.broadcast %cst_103 : f32 to vector<4x8x8xf32>
      %c0_104 = arith.constant 0 : index
      %c0_105 = arith.constant 0 : index
      %c0_106 = arith.constant 0 : index
      %157 = vector.load %arg10[%c0_104, %c0_105, %c0_106] : memref<4x8x8xf32, #tpu.memory_space<vmem>>, vector<4x8x8xf32>
      tpu.vector_store %arg10[%c0_104, %c0_105, %c0_106], %156 {strides = array<i32>} : memref<4x8x8xf32, #tpu.memory_space<vmem>>, vector<4x8x8xf32>,
    } else {
    }
    %c0 = arith.constant 0 : index
    %c0_1 = arith.constant 0 : index
    %c0_2 = arith.constant 0 : index
    %3 = vector.load %arg3[%c0, %c0_1, %c0_2] : memref<1x8x32xf32, #tpu.memory_space<vmem>>, vector<1x8x32xf32>
    %4 = vector.shape_cast %3 : vector<1x8x32xf32> to vector<8x32xf32>
    %c0_3 = arith.constant 0 : index
    %c0_4 = arith.constant 0 : index
    %c0_5 = arith.constant 0 : index
    %5 = vector.load %arg4[%c0_3, %c0_4, %c0_5] : memref<1x8x32xf32, #tpu.memory_space<vmem>>, vector<1x8x32xf32>
    %6 = vector.shape_cast %5 : vector<1x8x32xf32> to vector<8x32xf32>
    %c0_6 = arith.constant 0 : index
    %c0_7 = arith.constant 0 : index
    %c0_8 = arith.constant 0 : index
    %7 = vector.load %arg5[%c0_6, %c0_7, %c0_8] : memref<1x8x32xf32, #tpu.memory_space<vmem>>, vector<1x8x32xf32>
    %8 = vector.shape_cast %7 : vector<1x8x32xf32> to vector<8x32xf32>
    %9 = vector.extract_strided_slice %4 {offsets = [0, 0], sizes = [8, 8], strides = [1, 1]} : vector<8x32xf32> to vector<8x8xf32>
    %10 = vector.extract_strided_slice %6 {offsets = [0, 0], sizes = [8, 8], strides = [1, 1]} : vector<8x32xf32> to vector<8x8xf32>
    %11 = vector.extract_strided_slice %8 {offsets = [0, 0], sizes = [8, 8], strides = [1, 1]} : vector<8x32xf32> to vector<8x8xf32>
    %cst = arith.constant dense<0.000000e+00> : vector<8x8xf32>
    %12 = tpu.matmul %9, %10, %cst {dimension_numbers = #tpu.dot_dimension_numbers<[1], [1], [0], [0], [0, 0, 1, 0], [], []>} : vector<8x8xf32>, vector<8x8xf32>, vector<8x8xf32> -> vector<8x8xf32>
    %c0_9 = arith.constant 0 : index
    %c0_10 = arith.constant 0 : index
    %c0_11 = arith.constant 0 : index
    %13 = vector.load %arg8[%c0_9, %c0_10, %c0_11] : memref<4x8x1xf32, #tpu.memory_space<vmem>>, vector<1x8x1xf32>
    %14 = vector.shape_cast %13 : vector<1x8x1xf32> to vector<8x1xf32>
    %cst_12 = arith.constant dense<0xFF800000> : vector<8xf32>
    %15 = vector.multi_reduction <maximumf>, %12, %cst_12 [1] : vector<8x8xf32> to vector<8xf32>
    %16 = vector.shape_cast %15 : vector<8xf32> to vector<8x1xf32>
    %17 = arith.maximumf %14, %16 : vector<8x1xf32>
    %18 = arith.subf %14, %17 : vector<8x1xf32>
    %19 = math.exp %18 : vector<8x1xf32>
    %20 = vector.broadcast %17 : vector<8x1xf32> to vector<8x8xf32>
    %21 = arith.subf %12, %20 : vector<8x8xf32>
    %22 = math.exp %21 : vector<8x8xf32>
    %c0_13 = arith.constant 0 : index
    %c0_14 = arith.constant 0 : index
    %c0_15 = arith.constant 0 : index
    %23 = vector.load %arg9[%c0_13, %c0_14, %c0_15] : memref<4x8x1xf32, #tpu.memory_space<vmem>>, vector<1x8x1xf32>
    %24 = vector.shape_cast %23 : vector<1x8x1xf32> to vector<8x1xf32>
    %25 = arith.mulf %19, %24 : vector<8x1xf32>
    %cst_16 = arith.constant dense<0.000000e+00> : vector<8xf32>
    %26 = vector.multi_reduction <add>, %22, %cst_16 [1] : vector<8x8xf32> to vector<8xf32>
    %27 = vector.shape_cast %26 : vector<8xf32> to vector<8x1xf32>
    %28 = arith.addf %25, %27 : vector<8x1xf32>
    %c0_17 = arith.constant 0 : index
    %c0_18 = arith.constant 0 : index
    %c0_19 = arith.constant 0 : index
    %29 = vector.load %arg9[%c0_17, %c0_18, %c0_19] : memref<4x8x1xf32, #tpu.memory_space<vmem>>, vector<1x8x1xf32>
    %30 = vector.shape_cast %29 : vector<1x8x1xf32> to vector<8x1xf32>
    %31 = vector.shape_cast %28 : vector<8x1xf32> to vector<1x8x1xf32>
    tpu.vector_store %arg9[%c0_17, %c0_18, %c0_19], %31 {strides = array<i32>} : memref<4x8x1xf32, #tpu.memory_space<vmem>>, vector<1x8x1xf32>,
    %c0_20 = arith.constant 0 : index
    %c0_21 = arith.constant 0 : index
    %c0_22 = arith.constant 0 : index
    %32 = vector.load %arg10[%c0_20, %c0_21, %c0_22] : memref<4x8x8xf32, #tpu.memory_space<vmem>>, vector<1x8x8xf32>
    %33 = vector.shape_cast %32 : vector<1x8x8xf32> to vector<8x8xf32>
    %34 = vector.broadcast %19 : vector<8x1xf32> to vector<8x8xf32>
    %35 = arith.mulf %34, %33 : vector<8x8xf32>
    %cst_23 = arith.constant dense<0.000000e+00> : vector<8x8xf32>
    %36 = tpu.matmul %22, %11, %cst_23 {dimension_numbers = #tpu.dot_dimension_numbers<[1], [0], [0], [1], [0, 0, 1, 1], [], []>} : vector<8x8xf32>, vector<8x8xf32>, vector<8x8xf32> -> vector<8x8xf32>
    %37 = arith.addf %35, %36 : vector<8x8xf32>
    %c0_24 = arith.constant 0 : index
    %c0_25 = arith.constant 0 : index
    %c0_26 = arith.constant 0 : index
    %38 = vector.load %arg10[%c0_24, %c0_25, %c0_26] : memref<4x8x8xf32, #tpu.memory_space<vmem>>, vector<1x8x8xf32>
    %39 = vector.shape_cast %38 : vector<1x8x8xf32> to vector<8x8xf32>
    %40 = vector.shape_cast %37 : vector<8x8xf32> to vector<1x8x8xf32>
    tpu.vector_store %arg10[%c0_24, %c0_25, %c0_26], %40 {strides = array<i32>} : memref<4x8x8xf32, #tpu.memory_space<vmem>>, vector<1x8x8xf32>,
    %c0_27 = arith.constant 0 : index
    %c0_28 = arith.constant 0 : index
    %c0_29 = arith.constant 0 : index
    %41 = vector.load %arg8[%c0_27, %c0_28, %c0_29] : memref<4x8x1xf32, #tpu.memory_space<vmem>>, vector<1x8x1xf32>
    %42 = vector.shape_cast %41 : vector<1x8x1xf32> to vector<8x1xf32>
    %43 = vector.shape_cast %17 : vector<8x1xf32> to vector<1x8x1xf32>
    tpu.vector_store %arg8[%c0_27, %c0_28, %c0_29], %43 {strides = array<i32>} : memref<4x8x1xf32, #tpu.memory_space<vmem>>, vector<1x8x1xf32>,
    %44 = vector.extract_strided_slice %4 {offsets = [0, 8], sizes = [8, 8], strides = [1, 1]} : vector<8x32xf32> to vector<8x8xf32>
    %45 = vector.extract_strided_slice %6 {offsets = [0, 8], sizes = [8, 8], strides = [1, 1]} : vector<8x32xf32> to vector<8x8xf32>
    %46 = vector.extract_strided_slice %8 {offsets = [0, 8], sizes = [8, 8], strides = [1, 1]} : vector<8x32xf32> to vector<8x8xf32>
    %cst_30 = arith.constant dense<0.000000e+00> : vector<8x8xf32>
    %47 = tpu.matmul %44, %45, %cst_30 {dimension_numbers = #tpu.dot_dimension_numbers<[1], [1], [0], [0], [0, 0, 1, 0], [], []>} : vector<8x8xf32>, vector<8x8xf32>, vector<8x8xf32> -> vector<8x8xf32>
    %c1 = arith.constant 1 : index
    %c0_31 = arith.constant 0 : index
    %c0_32 = arith.constant 0 : index
    %48 = vector.load %arg8[%c1, %c0_31, %c0_32] : memref<4x8x1xf32, #tpu.memory_space<vmem>>, vector<1x8x1xf32>
    %49 = vector.shape_cast %48 : vector<1x8x1xf32> to vector<8x1xf32>
    %cst_33 = arith.constant dense<0xFF800000> : vector<8xf32>
    %50 = vector.multi_reduction <maximumf>, %47, %cst_33 [1] : vector<8x8xf32> to vector<8xf32>
    %51 = vector.shape_cast %50 : vector<8xf32> to vector<8x1xf32>
    %52 = arith.maximumf %49, %51 : vector<8x1xf32>
    %53 = arith.subf %49, %52 : vector<8x1xf32>
    %54 = math.exp %53 : vector<8x1xf32>
    %55 = vector.broadcast %52 : vector<8x1xf32> to vector<8x8xf32>
    %56 = arith.subf %47, %55 : vector<8x8xf32>
    %57 = math.exp %56 : vector<8x8xf32>
    %c1_34 = arith.constant 1 : index
    %c0_35 = arith.constant 0 : index
    %c0_36 = arith.constant 0 : index
    %58 = vector.load %arg9[%c1_34, %c0_35, %c0_36] : memref<4x8x1xf32, #tpu.memory_space<vmem>>, vector<1x8x1xf32>
    %59 = vector.shape_cast %58 : vector<1x8x1xf32> to vector<8x1xf32>
    %60 = arith.mulf %54, %59 : vector<8x1xf32>
    %cst_37 = arith.constant dense<0.000000e+00> : vector<8xf32>
    %61 = vector.multi_reduction <add>, %57, %cst_37 [1] : vector<8x8xf32> to vector<8xf32>
    %62 = vector.shape_cast %61 : vector<8xf32> to vector<8x1xf32>
    %63 = arith.addf %60, %62 : vector<8x1xf32>
    %c1_38 = arith.constant 1 : index
    %c0_39 = arith.constant 0 : index
    %c0_40 = arith.constant 0 : index
    %64 = vector.load %arg9[%c1_38, %c0_39, %c0_40] : memref<4x8x1xf32, #tpu.memory_space<vmem>>, vector<1x8x1xf32>
    %65 = vector.shape_cast %64 : vector<1x8x1xf32> to vector<8x1xf32>
    %66 = vector.shape_cast %63 : vector<8x1xf32> to vector<1x8x1xf32>
    tpu.vector_store %arg9[%c1_38, %c0_39, %c0_40], %66 {strides = array<i32>} : memref<4x8x1xf32, #tpu.memory_space<vmem>>, vector<1x8x1xf32>,
    %c1_41 = arith.constant 1 : index
    %c0_42 = arith.constant 0 : index
    %c0_43 = arith.constant 0 : index
    %67 = vector.load %arg10[%c1_41, %c0_42, %c0_43] : memref<4x8x8xf32, #tpu.memory_space<vmem>>, vector<1x8x8xf32>
    %68 = vector.shape_cast %67 : vector<1x8x8xf32> to vector<8x8xf32>
    %69 = vector.broadcast %54 : vector<8x1xf32> to vector<8x8xf32>
    %70 = arith.mulf %69, %68 : vector<8x8xf32>
    %cst_44 = arith.constant dense<0.000000e+00> : vector<8x8xf32>
    %71 = tpu.matmul %57, %46, %cst_44 {dimension_numbers = #tpu.dot_dimension_numbers<[1], [0], [0], [1], [0, 0, 1, 1], [], []>} : vector<8x8xf32>, vector<8x8xf32>, vector<8x8xf32> -> vector<8x8xf32>
    %72 = arith.addf %70, %71 : vector<8x8xf32>
    %c1_45 = arith.constant 1 : index
    %c0_46 = arith.constant 0 : index
    %c0_47 = arith.constant 0 : index
    %73 = vector.load %arg10[%c1_45, %c0_46, %c0_47] : memref<4x8x8xf32, #tpu.memory_space<vmem>>, vector<1x8x8xf32>
    %74 = vector.shape_cast %73 : vector<1x8x8xf32> to vector<8x8xf32>
    %75 = vector.shape_cast %72 : vector<8x8xf32> to vector<1x8x8xf32>
    tpu.vector_store %arg10[%c1_45, %c0_46, %c0_47], %75 {strides = array<i32>} : memref<4x8x8xf32, #tpu.memory_space<vmem>>, vector<1x8x8xf32>,
    %c1_48 = arith.constant 1 : index
    %c0_49 = arith.constant 0 : index
    %c0_50 = arith.constant 0 : index
    %76 = vector.load %arg8[%c1_48, %c0_49, %c0_50] : memref<4x8x1xf32, #tpu.memory_space<vmem>>, vector<1x8x1xf32>
    %77 = vector.shape_cast %76 : vector<1x8x1xf32> to vector<8x1xf32>
    %78 = vector.shape_cast %52 : vector<8x1xf32> to vector<1x8x1xf32>
    tpu.vector_store %arg8[%c1_48, %c0_49, %c0_50], %78 {strides = array<i32>} : memref<4x8x1xf32, #tpu.memory_space<vmem>>, vector<1x8x1xf32>,
    %79 = vector.extract_strided_slice %4 {offsets = [0, 16], sizes = [8, 8], strides = [1, 1]} : vector<8x32xf32> to vector<8x8xf32>
    %80 = vector.extract_strided_slice %6 {offsets = [0, 16], sizes = [8, 8], strides = [1, 1]} : vector<8x32xf32> to vector<8x8xf32>
    %81 = vector.extract_strided_slice %8 {offsets = [0, 16], sizes = [8, 8], strides = [1, 1]} : vector<8x32xf32> to vector<8x8xf32>
    %cst_51 = arith.constant dense<0.000000e+00> : vector<8x8xf32>
    %82 = tpu.matmul %79, %80, %cst_51 {dimension_numbers = #tpu.dot_dimension_numbers<[1], [1], [0], [0], [0, 0, 1, 0], [], []>} : vector<8x8xf32>, vector<8x8xf32>, vector<8x8xf32> -> vector<8x8xf32>
    %c2 = arith.constant 2 : index
    %c0_52 = arith.constant 0 : index
    %c0_53 = arith.constant 0 : index
    %83 = vector.load %arg8[%c2, %c0_52, %c0_53] : memref<4x8x1xf32, #tpu.memory_space<vmem>>, vector<1x8x1xf32>
    %84 = vector.shape_cast %83 : vector<1x8x1xf32> to vector<8x1xf32>
    %cst_54 = arith.constant dense<0xFF800000> : vector<8xf32>
    %85 = vector.multi_reduction <maximumf>, %82, %cst_54 [1] : vector<8x8xf32> to vector<8xf32>
    %86 = vector.shape_cast %85 : vector<8xf32> to vector<8x1xf32>
    %87 = arith.maximumf %84, %86 : vector<8x1xf32>
    %88 = arith.subf %84, %87 : vector<8x1xf32>
    %89 = math.exp %88 : vector<8x1xf32>
    %90 = vector.broadcast %87 : vector<8x1xf32> to vector<8x8xf32>
    %91 = arith.subf %82, %90 : vector<8x8xf32>
    %92 = math.exp %91 : vector<8x8xf32>
    %c2_55 = arith.constant 2 : index
    %c0_56 = arith.constant 0 : index
    %c0_57 = arith.constant 0 : index
    %93 = vector.load %arg9[%c2_55, %c0_56, %c0_57] : memref<4x8x1xf32, #tpu.memory_space<vmem>>, vector<1x8x1xf32>
    %94 = vector.shape_cast %93 : vector<1x8x1xf32> to vector<8x1xf32>
    %95 = arith.mulf %89, %94 : vector<8x1xf32>
    %cst_58 = arith.constant dense<0.000000e+00> : vector<8xf32>
    %96 = vector.multi_reduction <add>, %92, %cst_58 [1] : vector<8x8xf32> to vector<8xf32>
    %97 = vector.shape_cast %96 : vector<8xf32> to vector<8x1xf32>
    %98 = arith.addf %95, %97 : vector<8x1xf32>
    %c2_59 = arith.constant 2 : index
    %c0_60 = arith.constant 0 : index
    %c0_61 = arith.constant 0 : index
    %99 = vector.load %arg9[%c2_59, %c0_60, %c0_61] : memref<4x8x1xf32, #tpu.memory_space<vmem>>, vector<1x8x1xf32>
    %100 = vector.shape_cast %99 : vector<1x8x1xf32> to vector<8x1xf32>
    %101 = vector.shape_cast %98 : vector<8x1xf32> to vector<1x8x1xf32>
    tpu.vector_store %arg9[%c2_59, %c0_60, %c0_61], %101 {strides = array<i32>} : memref<4x8x1xf32, #tpu.memory_space<vmem>>, vector<1x8x1xf32>,
    %c2_62 = arith.constant 2 : index
    %c0_63 = arith.constant 0 : index
    %c0_64 = arith.constant 0 : index
    %102 = vector.load %arg10[%c2_62, %c0_63, %c0_64] : memref<4x8x8xf32, #tpu.memory_space<vmem>>, vector<1x8x8xf32>
    %103 = vector.shape_cast %102 : vector<1x8x8xf32> to vector<8x8xf32>
    %104 = vector.broadcast %89 : vector<8x1xf32> to vector<8x8xf32>
    %105 = arith.mulf %104, %103 : vector<8x8xf32>
    %cst_65 = arith.constant dense<0.000000e+00> : vector<8x8xf32>
    %106 = tpu.matmul %92, %81, %cst_65 {dimension_numbers = #tpu.dot_dimension_numbers<[1], [0], [0], [1], [0, 0, 1, 1], [], []>} : vector<8x8xf32>, vector<8x8xf32>, vector<8x8xf32> -> vector<8x8xf32>
    %107 = arith.addf %105, %106 : vector<8x8xf32>
    %c2_66 = arith.constant 2 : index
    %c0_67 = arith.constant 0 : index
    %c0_68 = arith.constant 0 : index
    %108 = vector.load %arg10[%c2_66, %c0_67, %c0_68] : memref<4x8x8xf32, #tpu.memory_space<vmem>>, vector<1x8x8xf32>
    %109 = vector.shape_cast %108 : vector<1x8x8xf32> to vector<8x8xf32>
    %110 = vector.shape_cast %107 : vector<8x8xf32> to vector<1x8x8xf32>
    tpu.vector_store %arg10[%c2_66, %c0_67, %c0_68], %110 {strides = array<i32>} : memref<4x8x8xf32, #tpu.memory_space<vmem>>, vector<1x8x8xf32>,
    %c2_69 = arith.constant 2 : index
    %c0_70 = arith.constant 0 : index
    %c0_71 = arith.constant 0 : index
    %111 = vector.load %arg8[%c2_69, %c0_70, %c0_71] : memref<4x8x1xf32, #tpu.memory_space<vmem>>, vector<1x8x1xf32>
    %112 = vector.shape_cast %111 : vector<1x8x1xf32> to vector<8x1xf32>
    %113 = vector.shape_cast %87 : vector<8x1xf32> to vector<1x8x1xf32>
    tpu.vector_store %arg8[%c2_69, %c0_70, %c0_71], %113 {strides = array<i32>} : memref<4x8x1xf32, #tpu.memory_space<vmem>>, vector<1x8x1xf32>,
    %114 = vector.extract_strided_slice %4 {offsets = [0, 24], sizes = [8, 8], strides = [1, 1]} : vector<8x32xf32> to vector<8x8xf32>
    %115 = vector.extract_strided_slice %6 {offsets = [0, 24], sizes = [8, 8], strides = [1, 1]} : vector<8x32xf32> to vector<8x8xf32>
    %116 = vector.extract_strided_slice %8 {offsets = [0, 24], sizes = [8, 8], strides = [1, 1]} : vector<8x32xf32> to vector<8x8xf32>
    %cst_72 = arith.constant dense<0.000000e+00> : vector<8x8xf32>
    %117 = tpu.matmul %114, %115, %cst_72 {dimension_numbers = #tpu.dot_dimension_numbers<[1], [1], [0], [0], [0, 0, 1, 0], [], []>} : vector<8x8xf32>, vector<8x8xf32>, vector<8x8xf32> -> vector<8x8xf32>
    %c3 = arith.constant 3 : index
    %c0_73 = arith.constant 0 : index
    %c0_74 = arith.constant 0 : index
    %118 = vector.load %arg8[%c3, %c0_73, %c0_74] : memref<4x8x1xf32, #tpu.memory_space<vmem>>, vector<1x8x1xf32>
    %119 = vector.shape_cast %118 : vector<1x8x1xf32> to vector<8x1xf32>
    %cst_75 = arith.constant dense<0xFF800000> : vector<8xf32>
    %120 = vector.multi_reduction <maximumf>, %117, %cst_75 [1] : vector<8x8xf32> to vector<8xf32>
    %121 = vector.shape_cast %120 : vector<8xf32> to vector<8x1xf32>
    %122 = arith.maximumf %119, %121 : vector<8x1xf32>
    %123 = arith.subf %119, %122 : vector<8x1xf32>
    %124 = math.exp %123 : vector<8x1xf32>
    %125 = vector.broadcast %122 : vector<8x1xf32> to vector<8x8xf32>
    %126 = arith.subf %117, %125 : vector<8x8xf32>
    %127 = math.exp %126 : vector<8x8xf32>
    %c3_76 = arith.constant 3 : index
    %c0_77 = arith.constant 0 : index
    %c0_78 = arith.constant 0 : index
    %128 = vector.load %arg9[%c3_76, %c0_77, %c0_78] : memref<4x8x1xf32, #tpu.memory_space<vmem>>, vector<1x8x1xf32>
    %129 = vector.shape_cast %128 : vector<1x8x1xf32> to vector<8x1xf32>
    %130 = arith.mulf %124, %129 : vector<8x1xf32>
    %cst_79 = arith.constant dense<0.000000e+00> : vector<8xf32>
    %131 = vector.multi_reduction <add>, %127, %cst_79 [1] : vector<8x8xf32> to vector<8xf32>
    %132 = vector.shape_cast %131 : vector<8xf32> to vector<8x1xf32>
    %133 = arith.addf %130, %132 : vector<8x1xf32>
    %c3_80 = arith.constant 3 : index
    %c0_81 = arith.constant 0 : index
    %c0_82 = arith.constant 0 : index
    %134 = vector.load %arg9[%c3_80, %c0_81, %c0_82] : memref<4x8x1xf32, #tpu.memory_space<vmem>>, vector<1x8x1xf32>
    %135 = vector.shape_cast %134 : vector<1x8x1xf32> to vector<8x1xf32>
    %136 = vector.shape_cast %133 : vector<8x1xf32> to vector<1x8x1xf32>
    tpu.vector_store %arg9[%c3_80, %c0_81, %c0_82], %136 {strides = array<i32>} : memref<4x8x1xf32, #tpu.memory_space<vmem>>, vector<1x8x1xf32>,
    %c3_83 = arith.constant 3 : index
    %c0_84 = arith.constant 0 : index
    %c0_85 = arith.constant 0 : index
    %137 = vector.load %arg10[%c3_83, %c0_84, %c0_85] : memref<4x8x8xf32, #tpu.memory_space<vmem>>, vector<1x8x8xf32>
    %138 = vector.shape_cast %137 : vector<1x8x8xf32> to vector<8x8xf32>
    %139 = vector.broadcast %124 : vector<8x1xf32> to vector<8x8xf32>
    %140 = arith.mulf %139, %138 : vector<8x8xf32>
    %cst_86 = arith.constant dense<0.000000e+00> : vector<8x8xf32>
    %141 = tpu.matmul %127, %116, %cst_86 {dimension_numbers = #tpu.dot_dimension_numbers<[1], [0], [0], [1], [0, 0, 1, 1], [], []>} : vector<8x8xf32>, vector<8x8xf32>, vector<8x8xf32> -> vector<8x8xf32>
    %142 = arith.addf %140, %141 : vector<8x8xf32>
    %c3_87 = arith.constant 3 : index
    %c0_88 = arith.constant 0 : index
    %c0_89 = arith.constant 0 : index
    %143 = vector.load %arg10[%c3_87, %c0_88, %c0_89] : memref<4x8x8xf32, #tpu.memory_space<vmem>>, vector<1x8x8xf32>
    %144 = vector.shape_cast %143 : vector<1x8x8xf32> to vector<8x8xf32>
    %145 = vector.shape_cast %142 : vector<8x8xf32> to vector<1x8x8xf32>
    tpu.vector_store %arg10[%c3_87, %c0_88, %c0_89], %145 {strides = array<i32>} : memref<4x8x8xf32, #tpu.memory_space<vmem>>, vector<1x8x8xf32>,
    %c3_90 = arith.constant 3 : index
    %c0_91 = arith.constant 0 : index
    %c0_92 = arith.constant 0 : index
    %146 = vector.load %arg8[%c3_90, %c0_91, %c0_92] : memref<4x8x1xf32, #tpu.memory_space<vmem>>, vector<1x8x1xf32>
    %147 = vector.shape_cast %146 : vector<1x8x1xf32> to vector<8x1xf32>
    %148 = vector.shape_cast %122 : vector<8x1xf32> to vector<1x8x1xf32>
    tpu.vector_store %arg8[%c3_90, %c0_91, %c0_92], %148 {strides = array<i32>} : memref<4x8x1xf32, #tpu.memory_space<vmem>>, vector<1x8x1xf32>,
    %c0_i32_93 = arith.constant 0 : i32
    %149 = arith.cmpi eq, %arg2, %c0_i32_93 : i32
    %150 = arith.extui %149 : i1 to i32
    %c0_i32_94 = arith.constant 0 : i32
    %151 = arith.cmpi ne, %150, %c0_i32_94 : i32
    scf.if %151 {
      %c0_95 = arith.constant 0 : index
      %c0_96 = arith.constant 0 : index
      %c0_97 = arith.constant 0 : index
      %152 = vector.load %arg9[%c0_95, %c0_96, %c0_97] : memref<4x8x1xf32, #tpu.memory_space<vmem>>, vector<1x8x1xf32>
      %153 = vector.shape_cast %152 : vector<1x8x1xf32> to vector<8x1xf32>
      %154 = tpu.reciprocal %153 : vector<8x1xf32> -> vector<8x1xf32>
      %c0_98 = arith.constant 0 : index
      %c0_99 = arith.constant 0 : index
      %c0_100 = arith.constant 0 : index
      %155 = vector.load %arg10[%c0_98, %c0_99, %c0_100] : memref<4x8x8xf32, #tpu.memory_space<vmem>>, vector<1x8x8xf32>
      %156 = vector.shape_cast %155 : vector<1x8x8xf32> to vector<8x8xf32>
      %157 = vector.broadcast %154 : vector<8x1xf32> to vector<8x8xf32>
      %158 = arith.mulf %156, %157 : vector<8x8xf32>
      %c0_101 = arith.constant 0 : index
      %c0_102 = arith.constant 0 : index
      %c0_103 = arith.constant 0 : index
      %159 = vector.load %arg8[%c0_101, %c0_102, %c0_103] : memref<4x8x1xf32, #tpu.memory_space<vmem>>, vector<1x8x1xf32>
      %160 = vector.shape_cast %159 : vector<1x8x1xf32> to vector<8x1xf32>
      %c0_104 = arith.constant 0 : index
      %c0_105 = arith.constant 0 : index
      %c0_106 = arith.constant 0 : index
      %161 = vector.load %arg9[%c0_104, %c0_105, %c0_106] : memref<4x8x1xf32, #tpu.memory_space<vmem>>, vector<1x8x1xf32>
      %162 = vector.shape_cast %161 : vector<1x8x1xf32> to vector<8x1xf32>
      %163 = math.log %162 : vector<8x1xf32>
      %164 = arith.addf %160, %163 : vector<8x1xf32>
      %c0_107 = arith.constant 0 : index
      %c0_108 = arith.constant 0 : index
      %c0_109 = arith.constant 0 : index
      %c0_110 = arith.constant 0 : index
      %165 = vector.load %arg7[%c0_107, %c0_108, %c0_109, %c0_110] : memref<1x4x8x1xf32, #tpu.memory_space<vmem>>, vector<1x1x8x1xf32>
      %166 = vector.shape_cast %165 : vector<1x1x8x1xf32> to vector<8x1xf32>
      %167 = vector.shape_cast %164 : vector<8x1xf32> to vector<1x1x8x1xf32>
      tpu.vector_store %arg7[%c0_107, %c0_108, %c0_109, %c0_110], %167 {strides = array<i32>} : memref<1x4x8x1xf32, #tpu.memory_space<vmem>>, vector<1x1x8x1xf32>,
      %c1_111 = arith.constant 1 : index
      %c0_112 = arith.constant 0 : index
      %c0_113 = arith.constant 0 : index
      %168 = vector.load %arg9[%c1_111, %c0_112, %c0_113] : memref<4x8x1xf32, #tpu.memory_space<vmem>>, vector<1x8x1xf32>
      %169 = vector.shape_cast %168 : vector<1x8x1xf32> to vector<8x1xf32>
      %170 = tpu.reciprocal %169 : vector<8x1xf32> -> vector<8x1xf32>
      %c1_114 = arith.constant 1 : index
      %c0_115 = arith.constant 0 : index
      %c0_116 = arith.constant 0 : index
      %171 = vector.load %arg10[%c1_114, %c0_115, %c0_116] : memref<4x8x8xf32, #tpu.memory_space<vmem>>, vector<1x8x8xf32>
      %172 = vector.shape_cast %171 : vector<1x8x8xf32> to vector<8x8xf32>
      %173 = vector.broadcast %170 : vector<8x1xf32> to vector<8x8xf32>
      %174 = arith.mulf %172, %173 : vector<8x8xf32>
      %c1_117 = arith.constant 1 : index
      %c0_118 = arith.constant 0 : index
      %c0_119 = arith.constant 0 : index
      %175 = vector.load %arg8[%c1_117, %c0_118, %c0_119] : memref<4x8x1xf32, #tpu.memory_space<vmem>>, vector<1x8x1xf32>
      %176 = vector.shape_cast %175 : vector<1x8x1xf32> to vector<8x1xf32>
      %c1_120 = arith.constant 1 : index
      %c0_121 = arith.constant 0 : index
      %c0_122 = arith.constant 0 : index
      %177 = vector.load %arg9[%c1_120, %c0_121, %c0_122] : memref<4x8x1xf32, #tpu.memory_space<vmem>>, vector<1x8x1xf32>
      %178 = vector.shape_cast %177 : vector<1x8x1xf32> to vector<8x1xf32>
      %179 = math.log %178 : vector<8x1xf32>
      %180 = arith.addf %176, %179 : vector<8x1xf32>
      %c0_123 = arith.constant 0 : index
      %c1_124 = arith.constant 1 : index
      %c0_125 = arith.constant 0 : index
      %c0_126 = arith.constant 0 : index
      %181 = vector.load %arg7[%c0_123, %c1_124, %c0_125, %c0_126] : memref<1x4x8x1xf32, #tpu.memory_space<vmem>>, vector<1x1x8x1xf32>
      %182 = vector.shape_cast %181 : vector<1x1x8x1xf32> to vector<8x1xf32>
      %183 = vector.shape_cast %180 : vector<8x1xf32> to vector<1x1x8x1xf32>
      tpu.vector_store %arg7[%c0_123, %c1_124, %c0_125, %c0_126], %183 {strides = array<i32>} : memref<1x4x8x1xf32, #tpu.memory_space<vmem>>, vector<1x1x8x1xf32>,
      %c2_127 = arith.constant 2 : index
      %c0_128 = arith.constant 0 : index
      %c0_129 = arith.constant 0 : index
      %184 = vector.load %arg9[%c2_127, %c0_128, %c0_129] : memref<4x8x1xf32, #tpu.memory_space<vmem>>, vector<1x8x1xf32>
      %185 = vector.shape_cast %184 : vector<1x8x1xf32> to vector<8x1xf32>
      %186 = tpu.reciprocal %185 : vector<8x1xf32> -> vector<8x1xf32>
      %c2_130 = arith.constant 2 : index
      %c0_131 = arith.constant 0 : index
      %c0_132 = arith.constant 0 : index
      %187 = vector.load %arg10[%c2_130, %c0_131, %c0_132] : memref<4x8x8xf32, #tpu.memory_space<vmem>>, vector<1x8x8xf32>
      %188 = vector.shape_cast %187 : vector<1x8x8xf32> to vector<8x8xf32>
      %189 = vector.broadcast %186 : vector<8x1xf32> to vector<8x8xf32>
      %190 = arith.mulf %188, %189 : vector<8x8xf32>
      %c2_133 = arith.constant 2 : index
      %c0_134 = arith.constant 0 : index
      %c0_135 = arith.constant 0 : index
      %191 = vector.load %arg8[%c2_133, %c0_134, %c0_135] : memref<4x8x1xf32, #tpu.memory_space<vmem>>, vector<1x8x1xf32>
      %192 = vector.shape_cast %191 : vector<1x8x1xf32> to vector<8x1xf32>
      %c2_136 = arith.constant 2 : index
      %c0_137 = arith.constant 0 : index
      %c0_138 = arith.constant 0 : index
      %193 = vector.load %arg9[%c2_136, %c0_137, %c0_138] : memref<4x8x1xf32, #tpu.memory_space<vmem>>, vector<1x8x1xf32>
      %194 = vector.shape_cast %193 : vector<1x8x1xf32> to vector<8x1xf32>
      %195 = math.log %194 : vector<8x1xf32>
      %196 = arith.addf %192, %195 : vector<8x1xf32>
      %c0_139 = arith.constant 0 : index
      %c2_140 = arith.constant 2 : index
      %c0_141 = arith.constant 0 : index
      %c0_142 = arith.constant 0 : index
      %197 = vector.load %arg7[%c0_139, %c2_140, %c0_141, %c0_142] : memref<1x4x8x1xf32, #tpu.memory_space<vmem>>, vector<1x1x8x1xf32>
      %198 = vector.shape_cast %197 : vector<1x1x8x1xf32> to vector<8x1xf32>
      %199 = vector.shape_cast %196 : vector<8x1xf32> to vector<1x1x8x1xf32>
      tpu.vector_store %arg7[%c0_139, %c2_140, %c0_141, %c0_142], %199 {strides = array<i32>} : memref<1x4x8x1xf32, #tpu.memory_space<vmem>>, vector<1x1x8x1xf32>,
      %c3_143 = arith.constant 3 : index
      %c0_144 = arith.constant 0 : index
      %c0_145 = arith.constant 0 : index
      %200 = vector.load %arg9[%c3_143, %c0_144, %c0_145] : memref<4x8x1xf32, #tpu.memory_space<vmem>>, vector<1x8x1xf32>
      %201 = vector.shape_cast %200 : vector<1x8x1xf32> to vector<8x1xf32>
      %202 = tpu.reciprocal %201 : vector<8x1xf32> -> vector<8x1xf32>
      %c3_146 = arith.constant 3 : index
      %c0_147 = arith.constant 0 : index
      %c0_148 = arith.constant 0 : index
      %203 = vector.load %arg10[%c3_146, %c0_147, %c0_148] : memref<4x8x8xf32, #tpu.memory_space<vmem>>, vector<1x8x8xf32>
      %204 = vector.shape_cast %203 : vector<1x8x8xf32> to vector<8x8xf32>
      %205 = vector.broadcast %202 : vector<8x1xf32> to vector<8x8xf32>
      %206 = arith.mulf %204, %205 : vector<8x8xf32>
      %c3_149 = arith.constant 3 : index
      %c0_150 = arith.constant 0 : index
      %c0_151 = arith.constant 0 : index
      %207 = vector.load %arg8[%c3_149, %c0_150, %c0_151] : memref<4x8x1xf32, #tpu.memory_space<vmem>>, vector<1x8x1xf32>
      %208 = vector.shape_cast %207 : vector<1x8x1xf32> to vector<8x1xf32>
      %c3_152 = arith.constant 3 : index
      %c0_153 = arith.constant 0 : index
      %c0_154 = arith.constant 0 : index
      %209 = vector.load %arg9[%c3_152, %c0_153, %c0_154] : memref<4x8x1xf32, #tpu.memory_space<vmem>>, vector<1x8x1xf32>
      %210 = vector.shape_cast %209 : vector<1x8x1xf32> to vector<8x1xf32>
      %211 = math.log %210 : vector<8x1xf32>
      %212 = arith.addf %208, %211 : vector<8x1xf32>
      %c0_155 = arith.constant 0 : index
      %c3_156 = arith.constant 3 : index
      %c0_157 = arith.constant 0 : index
      %c0_158 = arith.constant 0 : index
      %213 = vector.load %arg7[%c0_155, %c3_156, %c0_157, %c0_158] : memref<1x4x8x1xf32, #tpu.memory_space<vmem>>, vector<1x1x8x1xf32>
      %214 = vector.shape_cast %213 : vector<1x1x8x1xf32> to vector<8x1xf32>
      %215 = vector.shape_cast %212 : vector<8x1xf32> to vector<1x1x8x1xf32>
      tpu.vector_store %arg7[%c0_155, %c3_156, %c0_157, %c0_158], %215 {strides = array<i32>} : memref<1x4x8x1xf32, #tpu.memory_space<vmem>>, vector<1x1x8x1xf32>,
      %216 = tpu.concatenate %158, %174, %190, %206 in 1 : vector<8x8xf32>, vector<8x8xf32>, vector<8x8xf32>, vector<8x8xf32> -> vector<8x32xf32>
      %c0_159 = arith.constant 0 : index
      %c0_160 = arith.constant 0 : index
      %c0_161 = arith.constant 0 : index
      %217 = vector.load %arg6[%c0_159, %c0_160, %c0_161] : memref<1x8x32xf32, #tpu.memory_space<vmem>>, vector<1x8x32xf32>
      %218 = vector.shape_cast %217 : vector<1x8x32xf32> to vector<8x32xf32>
      %219 = vector.shape_cast %216 : vector<8x32xf32> to vector<1x8x32xf32>
      tpu.vector_store %arg6[%c0_159, %c0_160, %c0_161], %219 {strides = array<i32>} : memref<1x8x32xf32, #tpu.memory_space<vmem>>, vector<1x8x32xf32>,
    } else {
    }
    return
  }
  func.func @transform_0(%arg0: i32, %arg1: i32, %arg2: i32) -> (i32, i32, i32) {
    %c0_i32 = arith.constant 0 : i32
    %c0_i32_0 = arith.constant 0 : i32
    return %arg0, %arg1, %c0_i32 : i32, i32, i32
  }
  func.func @transform_1(%arg0: i32, %arg1: i32, %arg2: i32) -> (i32, i32, i32) {
    %c0_i32 = arith.constant 0 : i32
    %c0_i32_0 = arith.constant 0 : i32
    return %arg0, %arg2, %c0_i32 : i32, i32, i32
  }
  func.func @transform_2(%arg0: i32, %arg1: i32, %arg2: i32) -> (i32, i32, i32) {
    %c0_i32 = arith.constant 0 : i32
    %c0_i32_0 = arith.constant 0 : i32
    return %arg0, %arg2, %c0_i32 : i32, i32, i32
  }
  func.func @transform_3(%arg0: i32, %arg1: i32, %arg2: i32) -> (i32, i32, i32) {
    %c0_i32 = arith.constant 0 : i32
    %c0_i32_0 = arith.constant 0 : i32
    return %arg0, %arg1, %c0_i32 : i32, i32, i32
  }
  func.func @transform_4(%arg0: i32, %arg1: i32, %arg2: i32) -> (i32, i32, i32, i32) {
    %c0_i32 = arith.constant 0 : i32
    %c0_i32_0 = arith.constant 0 : i32
    %c0_i32_1 = arith.constant 0 : i32
    return %arg0, %c0_i32, %arg1, %c0_i32_0 : i32, i32, i32, i32
  }
}

module attributes {stable_mosaic.version = 11 : i64} {
  func.func @_out_proj_kernel(%arg0: i32, %arg1: i32, %arg2: i32, %arg3: i32, %arg4: memref<1x8x32xf32, #tpu.memory_space<vmem>>, %arg5: memref<32x32xf32, #tpu.memory_space<vmem>>, %arg6: memref<1x32xf32, #tpu.memory_space<vmem>>, %arg7: memref<1x8x32xf32, #tpu.memory_space<vmem>>, %arg8: memref<8x32xf32, #tpu.memory_space<vmem>>) attributes {dimension_semantics = [#tpu.dimension_semantics<parallel>, #tpu.dimension_semantics<parallel>, #tpu.dimension_semantics<parallel>, #tpu.dimension_semantics<arbitrary>], iteration_bounds = array<i64: 2, 1, 1, 1>, scalar_prefetch = 0 : i64, scratch_operands = 1 : i64, tpu.core_type = #tpu.core_type<tc>, window_params = [{transform_indices = @transform_0, window_bounds = array<i64: 1, 8, 32>}, {transform_indices = @transform_1, window_bounds = array<i64: 32, 32>}, {transform_indices = @transform_2, window_bounds = array<i64: 1, 32>}, {transform_indices = @transform_3, window_bounds = array<i64: 1, 8, 32>}]} {
    %c0_i32 = arith.constant 0 : i32
    %0 = arith.cmpi eq, %arg3, %c0_i32 : i32
    %1 = arith.extui %0 : i1 to i32
    %c0_i32_0 = arith.constant 0 : i32
    %2 = arith.cmpi ne, %1, %c0_i32_0 : i32
    scf.if %2 {
      %cst_11 = arith.constant 0.000000e+00 : f32
      %13 = vector.broadcast %cst_11 : f32 to vector<8x32xf32>
      %c0_12 = arith.constant 0 : index
      %c0_13 = arith.constant 0 : index
      %14 = vector.load %arg8[%c0_12, %c0_13] : memref<8x32xf32, #tpu.memory_space<vmem>>, vector<8x32xf32>
      tpu.vector_store %arg8[%c0_12, %c0_13], %13 {strides = array<i32>} : memref<8x32xf32, #tpu.memory_space<vmem>>, vector<8x32xf32>,
    } else {
    }
    %c0 = arith.constant 0 : index
    %c0_1 = arith.constant 0 : index
    %3 = vector.load %arg8[%c0, %c0_1] : memref<8x32xf32, #tpu.memory_space<vmem>>, vector<8x32xf32>
    %c0_2 = arith.constant 0 : index
    %c0_3 = arith.constant 0 : index
    %c0_4 = arith.constant 0 : index
    %4 = vector.load %arg4[%c0_2, %c0_3, %c0_4] : memref<1x8x32xf32, #tpu.memory_space<vmem>>, vector<1x8x32xf32>
    %5 = vector.shape_cast %4 : vector<1x8x32xf32> to vector<8x32xf32>
    %c0_5 = arith.constant 0 : index
    %c0_6 = arith.constant 0 : index
    %6 = vector.load %arg5[%c0_5, %c0_6] : memref<32x32xf32, #tpu.memory_space<vmem>>, vector<32x32xf32>
    %cst = arith.constant dense<0.000000e+00> : vector<8x32xf32>
    %7 = tpu.matmul %5, %6, %cst {dimension_numbers = #tpu.dot_dimension_numbers<[1], [0], [0], [1], [0, 0, 1, 1], [], []>} : vector<8x32xf32>, vector<32x32xf32>, vector<8x32xf32> -> vector<8x32xf32>
    %8 = arith.addf %3, %7 : vector<8x32xf32>
    %c0_7 = arith.constant 0 : index
    %c0_8 = arith.constant 0 : index
    %9 = vector.load %arg8[%c0_7, %c0_8] : memref<8x32xf32, #tpu.memory_space<vmem>>, vector<8x32xf32>
    tpu.vector_store %arg8[%c0_7, %c0_8], %8 {strides = array<i32>} : memref<8x32xf32, #tpu.memory_space<vmem>>, vector<8x32xf32>,
    %c0_i32_9 = arith.constant 0 : i32
    %10 = arith.cmpi eq, %arg3, %c0_i32_9 : i32
    %11 = arith.extui %10 : i1 to i32
    %c0_i32_10 = arith.constant 0 : i32
    %12 = arith.cmpi ne, %11, %c0_i32_10 : i32
    scf.if %12 {
      %c0_11 = arith.constant 0 : index
      %c0_12 = arith.constant 0 : index
      %13 = vector.load %arg8[%c0_11, %c0_12] : memref<8x32xf32, #tpu.memory_space<vmem>>, vector<8x32xf32>
      %c0_13 = arith.constant 0 : index
      %c0_14 = arith.constant 0 : index
      %14 = vector.load %arg6[%c0_13, %c0_14] : memref<1x32xf32, #tpu.memory_space<vmem>>, vector<1x32xf32>
      %15 = vector.broadcast %14 : vector<1x32xf32> to vector<8x32xf32>
      %16 = arith.addf %13, %15 : vector<8x32xf32>
      %c0_15 = arith.constant 0 : index
      %c0_16 = arith.constant 0 : index
      %c0_17 = arith.constant 0 : index
      %17 = vector.load %arg7[%c0_15, %c0_16, %c0_17] : memref<1x8x32xf32, #tpu.memory_space<vmem>>, vector<1x8x32xf32>
      %18 = vector.shape_cast %17 : vector<1x8x32xf32> to vector<8x32xf32>
      %19 = vector.shape_cast %16 : vector<8x32xf32> to vector<1x8x32xf32>
      tpu.vector_store %arg7[%c0_15, %c0_16, %c0_17], %19 {strides = array<i32>} : memref<1x8x32xf32, #tpu.memory_space<vmem>>, vector<1x8x32xf32>,
    } else {
    }
    return
  }
  func.func @transform_0(%arg0: i32, %arg1: i32, %arg2: i32, %arg3: i32) -> (i32, i32, i32) {
    %c0_i32 = arith.constant 0 : i32
    return %arg0, %arg1, %arg3 : i32, i32, i32
  }
  func.func @transform_1(%arg0: i32, %arg1: i32, %arg2: i32, %arg3: i32) -> (i32, i32) {
    %c0_i32 = arith.constant 0 : i32
    return %arg3, %arg2 : i32, i32
  }
  func.func @transform_2(%arg0: i32, %arg1: i32, %arg2: i32, %arg3: i32) -> (i32, i32) {
    %c0_i32 = arith.constant 0 : i32
    %c0_i32_0 = arith.constant 0 : i32
    return %c0_i32, %arg2 : i32, i32
  }
  func.func @transform_3(%arg0: i32, %arg1: i32, %arg2: i32, %arg3: i32) -> (i32, i32, i32) {
    %c0_i32 = arith.constant 0 : i32
    return %arg0, %arg1, %arg2 : i32, i32, i32
  }
}

</mosaic_0001>

<llo_original>
// kernel: multi_head_attention.3
$region0: #{multi_head_attention.3}
  #allocation0 [shape = 'u32[]', space=smem, size = 0x4, offset = 0x4, fixed_abs, tag = 'smem constant byte address 0x4 - core index']
  #allocation1 [shape = 'u32[144,128]{1,0:T(1,128)}', space=vmem, size = 0x12000, scoped, tag = 'internal scratch']
  #allocation2 [shape = 'f32[8,32]{1,0:T(8,128)}', space=vmem, size = 0x1000, scoped, tag = 'scratch operand']
  #allocation3 [shape = 'f32[8,32]{1,0:T(8,128)}', space=vmem, size = 0x1000, scoped, tag = 'scratch operand']
  #allocation4 [shape = 'f32[8,32]{1,0:T(8,128)}', space=vmem, size = 0x1000, scoped, tag = 'scratch operand']
  %s0 = inlined_call_operand.hbm [shape: f32[2,8,32], index: 0, kind: input, shape index: {}]
  %s1 = inlined_call_operand.hbm [shape: f32[32,32], index: 1, kind: input, shape index: {}]
  %s2 = inlined_call_operand.hbm [shape: f32[32,32], index: 2, kind: input, shape index: {}]
  %s3 = inlined_call_operand.hbm [shape: f32[32,32], index: 3, kind: input, shape index: {}]
  %s4 = inlined_call_operand.hbm [shape: f32[1,32], index: 4, kind: input, shape index: {}]
  %s5 = inlined_call_operand.hbm [shape: f32[1,32], index: 5, kind: input, shape index: {}]
  %s6 = inlined_call_operand.hbm [shape: f32[1,32], index: 6, kind: input, shape index: {}]
  %s7 = inlined_call_operand.hbm [shape: f32[2,8,32], index: 7, kind: output, shape index: {0}]
  %s8 = inlined_call_operand.hbm [shape: f32[2,8,32], index: 8, kind: output, shape index: {1}]
  %s9 = inlined_call_operand.hbm [shape: f32[2,8,32], index: 9, kind: output, shape index: {2}]
  %10 = xla_tuple %s7, %s8, %s9
  %s11 = sld [smem:[#allocation0]]
  $region113: #{multi_head_attention.3} parent=0
    _
  %s13 = ssub.s32 1, %s11
  %s14 = scalar_select 0, %s13, %s11
  $region1: #{multi_head_attention.3} parent=0
    #allocation5 [shape = 'u8[8192]{0}', space=vmem, size = 0x2000, scoped, tag = 'input window, operand 0']
    #allocation6 [shape = 's32[2]{0}', space=sflag, size = 0x8, scoped, tag = 'scoped memory for multi_head_attention.3']
    #allocation7 [shape = 's32[2]{0}', space=sflag, size = 0x8, scoped, tag = 'scoped memory for multi_head_attention.3']
    #allocation8 [shape = 'u8[16384]{0}', space=vmem, size = 0x4000, scoped, tag = 'input window, operand 1, single buffered']
    #allocation9 [shape = 's32[1]{0}', space=sflag, size = 0x4, scoped, tag = 'scoped memory for multi_head_attention.3']
    #allocation10 [shape = 'u8[16384]{0}', space=vmem, size = 0x4000, scoped, tag = 'input window, operand 2, single buffered']
    #allocation11 [shape = 'u8[16384]{0}', space=vmem, size = 0x4000, scoped, tag = 'input window, operand 3, single buffered']
    #allocation12 [shape = 's32[1]{0}', space=sflag, size = 0x4, scoped, tag = 'scoped memory for multi_head_attention.3']
    #allocation13 [shape = 'u8[512]{0}', space=vmem, size = 0x400, scoped, tag = 'input window, operand 4, single buffered']
    #allocation14 [shape = 'u8[512]{0}', space=vmem, size = 0x400, scoped, tag = 'input window, operand 5, single buffered']
    #allocation15 [shape = 's32[1]{0}', space=sflag, size = 0x4, scoped, tag = 'scoped memory for multi_head_attention.3']
    #allocation16 [shape = 'u8[512]{0}', space=vmem, size = 0x400, scoped, tag = 'input window, operand 6, single buffered']
    #allocation17 [shape = 'u8[8192]{0}', space=vmem, size = 0x2000, scoped, tag = 'output window, operand 0']
    #allocation18 [shape = 'u8[8192]{0}', space=vmem, size = 0x2000, scoped, tag = 'output window, operand 1']
    #allocation19 [shape = 's32[2]{0}', space=sflag, size = 0x8, scoped, tag = 'scoped memory for multi_head_attention.3']
    #allocation20 [shape = 'u8[8192]{0}', space=vmem, size = 0x2000, scoped, tag = 'output window, operand 2']
    %15 = vsyncpa [#allocation6], 0
    %s16 = scalar_lea.sflag [#allocation6], 1
    %17 = vsyncpa %s16, 0
    %18 = vsyncpa [#allocation9], 0
    %19 = vsyncpa [#allocation12], 0
    %20 = vsyncpa [#allocation15], 0
    %21 = vsyncpa [#allocation7], 0
    %s22 = scalar_lea.sflag [#allocation7], 1
    %23 = vsyncpa %s22, 0
    %24 = vsyncpa [#allocation19], 0
    %s25 = scalar_lea.sflag [#allocation19], 1
    %26 = vsyncpa %s25, 0
    loop: start=0, step=1, limit=4
    $region2: #{multi_head_attention.3} parent=1 // loop_pre_header
      _
    $region3: #{multi_head_attention.3} parent=1 // loop_header
      %s28 = sphi 0, %s32
      %p29 = scmp.ge.s32.totalorder %s28, 4
      %s35 = sphi 0, %s54
      %s36 = sphi 0, %s50
      %s37 = sphi 0, %s46
      %s38 = sphi 0, %s35
      %s39 = sphi 0, %s36
      %s40 = sphi 0, %s37
      %s41 = sphi 0, %s38
      %s42 = sphi 0, %s39
      %s43 = sphi 0, %s40
      %s61 = sphi 0, %s63
      %s64 = sphi 0, %s61
      %s65 = sphi 0, %s64
      %s81 = sphi 0, %s65
      %s87 = sphi 0, %s89
      %s90 = sphi 0, %s87
      %s91 = sphi 0, %s90
      %s107 = sphi 0, %s91
      %s113 = sphi 0, %s115
      %s116 = sphi 0, %s113
      %s117 = sphi 0, %s116
      %s133 = sphi 0, %s117
      %s139 = sphi 0, %s141
      %s142 = sphi 0, %s139
      %s143 = sphi 0, %s142
      %s159 = sphi 0, %s143
      %s163 = sphi 0, %s163
      %s165 = sphi 0, %s163
      %s166 = sphi 0, %s165
      %s180 = sphi 0, %s166
      %s184 = sphi 0, %s184
      %s186 = sphi 0, %s184
      %s187 = sphi 0, %s186
      %s201 = sphi 0, %s187
      %s205 = sphi 0, %s205
      %s207 = sphi 0, %s205
      %s208 = sphi 0, %s207
      %s222 = sphi 0, %s208
      %s230 = sphi 0, %s232
      %s233 = sphi 0, %s230
      %s234 = sphi 0, %s233
      %s250 = sphi 0, %s234
      %s258 = sphi 0, %s260
      %s261 = sphi 0, %s258
      %s262 = sphi 0, %s261
      %s278 = sphi 0, %s262
      %s286 = sphi 0, %s288
      %s289 = sphi 0, %s286
      %s290 = sphi 0, %s289
      %s306 = sphi 0, %s290
    $region4: #{multi_head_attention.3} parent=1 // loop_header_branch
      %31 = sbr.rel (%p29) target = $region8
    $region5: #{multi_head_attention.3} parent=1 // loop_body
      %s33 = ssub.s32 %s28, 1
      %s34 = ssub.s32 %s28, 2
      %s44 = sadd.s32 1, %s37
      %p45 = scmp.ge.s32.totalorder %s44, 1
      %s46 = scalar_select %p45, 0, %s44
      %s47 = sadd.s32 1, %s36
      %s48 = scalar_select %p45, %s47, %s36
      %p49 = scmp.ge.s32.totalorder %s48, 1
      %s50 = scalar_select %p49, 0, %s48
      %s51 = sadd.s32 1, %s35
      %s52 = scalar_select %p49, %s51, %s35
      %p53 = scmp.ge.s32.totalorder %s52, 2
      %s54 = scalar_select %p53, 0, %s52
      %s55 = ssub.s32 %s35, %s54
      %s56 = ssub.s32 %s36, %s50
      %s57 = sor.u32 %s55, %s56
      %s58 = ssub.s32 %s37, %s46
      %s59 = sor.u32 %s57, %s58
      %p60 = scmp.eq.s32.totalorder %s59, 0
      %s62 = sadd.s32 %s61, 1
      %s63 = scalar_select %p60, %s61, %s62
      %p66 = pneg %p60
      %p67 = scmp.eq.s32.totalorder %s28, 1
      %p68 = por %p66, %p67
      %p69 = scmp.ne.s32.totalorder %s61, %s64
      %p70 = scmp.eq.s32.totalorder %s28, 0
      %p71 = por %p69, %p70
      %p72 = scmp.ne.s32.totalorder %s61, %s64
      %p73 = scmp.eq.s32.totalorder %s33, 1
      %p74 = por %p72, %p73
      %p75 = scmp.ne.s32.totalorder %s64, %s65
      %p76 = scmp.eq.s32.totalorder %s33, 0
      %p77 = por %p75, %p76
      %p78 = scmp.ne.s32.totalorder %s64, %s65
      %p79 = scmp.eq.s32.totalorder %s34, 1
      %p80 = por %p78, %p79
      %p82 = scmp.ne.s32.totalorder %s65, %s81
      %p83 = scmp.eq.s32.totalorder %s34, 0
      %p84 = por %p82, %p83
      %s85 = ssub.s32 %s37, %s46
      %p86 = scmp.eq.s32.totalorder %s85, 0
      %s88 = sadd.s32 %s87, 1
      %s89 = scalar_select %p86, %s87, %s88
      %p92 = pneg %p86
      %p93 = scmp.eq.s32.totalorder %s28, 1
      %p94 = por %p92, %p93
      %p95 = scmp.ne.s32.totalorder %s87, %s90
      %p96 = scmp.eq.s32.totalorder %s28, 0
      %p97 = por %p95, %p96
      %p98 = scmp.ne.s32.totalorder %s87, %s90
      %p99 = scmp.eq.s32.totalorder %s33, 1
      %p100 = por %p98, %p99
      %p101 = scmp.ne.s32.totalorder %s90, %s91
      %p102 = scmp.eq.s32.totalorder %s33, 0
      %p103 = por %p101, %p102
      %p104 = scmp.ne.s32.totalorder %s90, %s91
      %p105 = scmp.eq.s32.totalorder %s34, 1
      %p106 = por %p104, %p105
      %p108 = scmp.ne.s32.totalorder %s91, %s107
      %p109 = scmp.eq.s32.totalorder %s34, 0
      %p110 = por %p108, %p109
      %s111 = ssub.s32 %s37, %s46
      %p112 = scmp.eq.s32.totalorder %s111, 0
      %s114 = sadd.s32 %s113, 1
      %s115 = scalar_select %p112, %s113, %s114
      %p118 = pneg %p112
      %p119 = scmp.eq.s32.totalorder %s28, 1
      %p120 = por %p118, %p119
      %p121 = scmp.ne.s32.totalorder %s113, %s116
      %p122 = scmp.eq.s32.totalorder %s28, 0
      %p123 = por %p121, %p122
      %p124 = scmp.ne.s32.totalorder %s113, %s116
      %p125 = scmp.eq.s32.totalorder %s33, 1
      %p126 = por %p124, %p125
      %p127 = scmp.ne.s32.totalorder %s116, %s117
      %p128 = scmp.eq.s32.totalorder %s33, 0
      %p129 = por %p127, %p128
      %p130 = scmp.ne.s32.totalorder %s116, %s117
      %p131 = scmp.eq.s32.totalorder %s34, 1
      %p132 = por %p130, %p131
      %p134 = scmp.ne.s32.totalorder %s117, %s133
      %p135 = scmp.eq.s32.totalorder %s34, 0
      %p136 = por %p134, %p135
      %s137 = ssub.s32 %s37, %s46
      %p138 = scmp.eq.s32.totalorder %s137, 0
      %s140 = sadd.s32 %s139, 1
      %s141 = scalar_select %p138, %s139, %s140
      %p144 = pneg %p138
      %p145 = scmp.eq.s32.totalorder %s28, 1
      %p146 = por %p144, %p145
      %p147 = scmp.ne.s32.totalorder %s139, %s142
      %p148 = scmp.eq.s32.totalorder %s28, 0
      %p149 = por %p147, %p148
      %p150 = scmp.ne.s32.totalorder %s139, %s142
      %p151 = scmp.eq.s32.totalorder %s33, 1
      %p152 = por %p150, %p151
      %p153 = scmp.ne.s32.totalorder %s142, %s143
      %p154 = scmp.eq.s32.totalorder %s33, 0
      %p155 = por %p153, %p154
      %p156 = scmp.ne.s32.totalorder %s142, %s143
      %p157 = scmp.eq.s32.totalorder %s34, 1
      %p158 = por %p156, %p157
      %p160 = scmp.ne.s32.totalorder %s143, %s159
      %p161 = scmp.eq.s32.totalorder %s34, 0
      %p162 = por %p160, %p161
      %s164 = sadd.s32 %s163, 1
      %p167 = scmp.eq.s32.totalorder %s28, 1
      %p168 = scmp.ne.s32.totalorder %s163, %s165
      %p169 = scmp.eq.s32.totalorder %s28, 0
      %p170 = por %p168, %p169
      %p171 = scmp.ne.s32.totalorder %s163, %s165
      %p172 = scmp.eq.s32.totalorder %s33, 1
      %p173 = por %p171, %p172
      %p174 = scmp.ne.s32.totalorder %s165, %s166
      %p175 = scmp.eq.s32.totalorder %s33, 0
      %p176 = por %p174, %p175
      %p177 = scmp.ne.s32.totalorder %s165, %s166
      %p178 = scmp.eq.s32.totalorder %s34, 1
      %p179 = por %p177, %p178
      %p181 = scmp.ne.s32.totalorder %s166, %s180
      %p182 = scmp.eq.s32.totalorder %s34, 0
      %p183 = por %p181, %p182
      %s185 = sadd.s32 %s184, 1
      %p188 = scmp.eq.s32.totalorder %s28, 1
      %p189 = scmp.ne.s32.totalorder %s184, %s186
      %p190 = scmp.eq.s32.totalorder %s28, 0
      %p191 = por %p189, %p190
      %p192 = scmp.ne.s32.totalorder %s184, %s186
      %p193 = scmp.eq.s32.totalorder %s33, 1
      %p194 = por %p192, %p193
      %p195 = scmp.ne.s32.totalorder %s186, %s187
      %p196 = scmp.eq.s32.totalorder %s33, 0
      %p197 = por %p195, %p196
      %p198 = scmp.ne.s32.totalorder %s186, %s187
      %p199 = scmp.eq.s32.totalorder %s34, 1
      %p200 = por %p198, %p199
      %p202 = scmp.ne.s32.totalorder %s187, %s201
      %p203 = scmp.eq.s32.totalorder %s34, 0
      %p204 = por %p202, %p203
      %s206 = sadd.s32 %s205, 1
      %p209 = scmp.eq.s32.totalorder %s28, 1
      %p210 = scmp.ne.s32.totalorder %s205, %s207
      %p211 = scmp.eq.s32.totalorder %s28, 0
      %p212 = por %p210, %p211
      %p213 = scmp.ne.s32.totalorder %s205, %s207
      %p214 = scmp.eq.s32.totalorder %s33, 1
      %p215 = por %p213, %p214
      %p216 = scmp.ne.s32.totalorder %s207, %s208
      %p217 = scmp.eq.s32.totalorder %s33, 0
      %p218 = por %p216, %p217
      %p219 = scmp.ne.s32.totalorder %s207, %s208
      %p220 = scmp.eq.s32.totalorder %s34, 1
      %p221 = por %p219, %p220
      %p223 = scmp.ne.s32.totalorder %s208, %s222
      %p224 = scmp.eq.s32.totalorder %s34, 0
      %p225 = por %p223, %p224
      %s226 = ssub.s32 %s35, %s54
      %s227 = ssub.s32 %s36, %s50
      %s228 = sor.u32 %s226, %s227
      %p229 = scmp.eq.s32.totalorder %s228, 0
      %s231 = sadd.s32 %s230, 1
      %s232 = scalar_select %p229, %s230, %s231
      %p235 = pneg %p229
      %p236 = scmp.eq.s32.totalorder %s28, 1
      %p237 = por %p235, %p236
      %p238 = scmp.ne.s32.totalorder %s230, %s233
      %p239 = scmp.eq.s32.totalorder %s28, 0
      %p240 = por %p238, %p239
      %p241 = scmp.ne.s32.totalorder %s230, %s233
      %p242 = scmp.eq.s32.totalorder %s33, 1
      %p243 = por %p241, %p242
      %p244 = scmp.ne.s32.totalorder %s233, %s234
      %p245 = scmp.eq.s32.totalorder %s33, 0
      %p246 = por %p244, %p245
      %p247 = scmp.ne.s32.totalorder %s233, %s234
      %p248 = scmp.eq.s32.totalorder %s34, 1
      %p249 = por %p247, %p248
      %p251 = scmp.ne.s32.totalorder %s234, %s250
      %p252 = scmp.eq.s32.totalorder %s34, 0
      %p253 = por %p251, %p252
      %s254 = ssub.s32 %s35, %s54
      %s255 = ssub.s32 %s36, %s50
      %s256 = sor.u32 %s254, %s255
      %p257 = scmp.eq.s32.totalorder %s256, 0
      %s259 = sadd.s32 %s258, 1
      %s260 = scalar_select %p257, %s258, %s259
      %p263 = pneg %p257
      %p264 = scmp.eq.s32.totalorder %s28, 1
      %p265 = por %p263, %p264
      %p266 = scmp.ne.s32.totalorder %s258, %s261
      %p267 = scmp.eq.s32.totalorder %s28, 0
      %p268 = por %p266, %p267
      %p269 = scmp.ne.s32.totalorder %s258, %s261
      %p270 = scmp.eq.s32.totalorder %s33, 1
      %p271 = por %p269, %p270
      %p272 = scmp.ne.s32.totalorder %s261, %s262
      %p273 = scmp.eq.s32.totalorder %s33, 0
      %p274 = por %p272, %p273
      %p275 = scmp.ne.s32.totalorder %s261, %s262
      %p276 = scmp.eq.s32.totalorder %s34, 1
      %p277 = por %p275, %p276
      %p279 = scmp.ne.s32.totalorder %s262, %s278
      %p280 = scmp.eq.s32.totalorder %s34, 0
      %p281 = por %p279, %p280
      %s282 = ssub.s32 %s35, %s54
      %s283 = ssub.s32 %s36, %s50
      %s284 = sor.u32 %s282, %s283
      %p285 = scmp.eq.s32.totalorder %s284, 0
      %s287 = sadd.s32 %s286, 1
      %s288 = scalar_select %p285, %s286, %s287
      %p291 = pneg %p285
      %p292 = scmp.eq.s32.totalorder %s28, 1
      %p293 = por %p291, %p292
      %p294 = scmp.ne.s32.totalorder %s286, %s289
      %p295 = scmp.eq.s32.totalorder %s28, 0
      %p296 = por %p294, %p295
      %p297 = scmp.ne.s32.totalorder %s286, %s289
      %p298 = scmp.eq.s32.totalorder %s33, 1
      %p299 = por %p297, %p298
      %p300 = scmp.ne.s32.totalorder %s289, %s290
      %p301 = scmp.eq.s32.totalorder %s33, 0
      %p302 = por %p300, %p301
      %p303 = scmp.ne.s32.totalorder %s289, %s290
      %p304 = scmp.eq.s32.totalorder %s34, 1
      %p305 = por %p303, %p304
      %p307 = scmp.ne.s32.totalorder %s290, %s306
      %p308 = scmp.eq.s32.totalorder %s34, 0
      %p309 = por %p307, %p308
      %p310 = scmp.le.s32.totalorder 1, %s28
      %p311 = scmp.lt.s32.totalorder %s28, 3
      %p312 = pnand %p310, %p311
      %p313 = pneg %p312
      // Predicated region
      $region9: #{multi_head_attention.3} parent=5 // pred_check
        _
      $region10: #{multi_head_attention.3} parent=5 // pred_check_branch
        %315 = sbr.rel (%p312) target = $region12
      $region11: #{multi_head_attention.3} parent=5 // pred_region
        %s316 = ssub.s32 %s28, 1
        // Predicated region
        $region13: #{multi_head_attention.3} parent=11 // pred_check
          %p317 = pneg %p103
        $region14: #{multi_head_attention.3} parent=11 // pred_check_branch
          %319 = sbr.rel (%p317) target = $region16
        $region15: #{multi_head_attention.3} parent=11 // pred_region
          %s320 = smul.u32 4, %s40
          %s322 = ssub.s32 512, 512
          %323 = vsyncadd [#allocation9], %s322
          %s324 = smul.addr %s320, 128
          %s325 = scalar_lea.hbm %s1, %s324
          %s326 = sshll.u32 [#allocation8], 4
          %s327 = int_to_ptr.vmem [resolvable:$true] %s326
          %332 = dma.hbm_to_vmem [thread:$0]  %s325, 512, %s327, [#allocation9], 128, 128, 8
        $region16: #{multi_head_attention.3} parent=11 // pred_fallthru
          _
        // Predicated region
        $region17: #{multi_head_attention.3} parent=11 // pred_check
          %p333 = pneg %p129
        $region18: #{multi_head_attention.3} parent=11 // pred_check_branch
          %335 = sbr.rel (%p333) target = $region20
        $region19: #{multi_head_attention.3} parent=11 // pred_region
          %s336 = smul.u32 4, %s40
          %s338 = ssub.s32 512, 512
          %339 = vsyncadd [#allocation9], %s338
          %s340 = smul.addr %s336, 128
          %s341 = scalar_lea.hbm %s2, %s340
          %s342 = sshll.u32 [#allocation10], 4
          %s343 = int_to_ptr.vmem [resolvable:$true] %s342
          %348 = dma.hbm_to_vmem [thread:$0]  %s341, 512, %s343, [#allocation9], 128, 128, 8
        $region20: #{multi_head_attention.3} parent=11 // pred_fallthru
          _
        // Predicated region
        $region21: #{multi_head_attention.3} parent=11 // pred_check
          %p349 = pneg %p155
        $region22: #{multi_head_attention.3} parent=11 // pred_check_branch
          %351 = sbr.rel (%p349) target = $region24
        $region23: #{multi_head_attention.3} parent=11 // pred_region
          %s352 = smul.u32 4, %s40
          %s354 = ssub.s32 512, 512
          %355 = vsyncadd [#allocation12], %s354
          %s356 = smul.addr %s352, 128
          %s357 = scalar_lea.hbm %s3, %s356
          %s358 = sshll.u32 [#allocation11], 4
          %s359 = int_to_ptr.vmem [resolvable:$true] %s358
          %364 = dma.hbm_to_vmem [thread:$0]  %s357, 512, %s359, [#allocation12], 128, 128, 8
        $region24: #{multi_head_attention.3} parent=11 // pred_fallthru
          _
        // Predicated region
        $region25: #{multi_head_attention.3} parent=11 // pred_check
          %p365 = pneg %p176
        $region26: #{multi_head_attention.3} parent=11 // pred_check_branch
          %367 = sbr.rel (%p365) target = $region28
        $region27: #{multi_head_attention.3} parent=11 // pred_region
          %s369 = ssub.s32 16, 16
          %370 = vsyncadd [#allocation12], %s369
          %s372 = sshll.u32 [#allocation13], 4
          %s373 = int_to_ptr.vmem [resolvable:$true] %s372
          %375 = dma.hbm_to_vmem [thread:$0]  %s4, 16, %s373, [#allocation12]
        $region28: #{multi_head_attention.3} parent=11 // pred_fallthru
          _
        // Predicated region
        $region29: #{multi_head_attention.3} parent=11 // pred_check
          %p376 = pneg %p197
        $region30: #{multi_head_attention.3} parent=11 // pred_check_branch
          %378 = sbr.rel (%p376) target = $region32
        $region31: #{multi_head_attention.3} parent=11 // pred_region
          %s380 = ssub.s32 16, 16
          %381 = vsyncadd [#allocation15], %s380
          %s383 = sshll.u32 [#allocation14], 4
          %s384 = int_to_ptr.vmem [resolvable:$true] %s383
          %386 = dma.hbm_to_vmem [thread:$0]  %s5, 16, %s384, [#allocation15]
        $region32: #{multi_head_attention.3} parent=11 // pred_fallthru
          _
        // Predicated region
        $region33: #{multi_head_attention.3} parent=11 // pred_check
          %p387 = pneg %p218
        $region34: #{multi_head_attention.3} parent=11 // pred_check_branch
          %389 = sbr.rel (%p387) target = $region36
        $region35: #{multi_head_attention.3} parent=11 // pred_region
          %s391 = ssub.s32 16, 16
          %392 = vsyncadd [#allocation15], %s391
          %s394 = sshll.u32 [#allocation16], 4
          %s395 = int_to_ptr.vmem [resolvable:$true] %s394
          %397 = dma.hbm_to_vmem [thread:$0]  %s6, 16, %s395, [#allocation15]
        $region36: #{multi_head_attention.3} parent=11 // pred_fallthru
          _
      $region12: #{multi_head_attention.3} parent=5 // pred_fallthru
        _
      %p398 = scmp.lt.s32.totalorder %s28, 2
      // Predicated region
      $region37: #{multi_head_attention.3} parent=5 // pred_check
        %p399 = pneg %p398
      $region38: #{multi_head_attention.3} parent=5 // pred_check_branch
        %401 = sbr.rel (%p399) target = $region40
      $region39: #{multi_head_attention.3} parent=5 // pred_region
        // Predicated region
        $region41: #{multi_head_attention.3} parent=39 // pred_check
          %p402 = pneg %p71
        $region42: #{multi_head_attention.3} parent=39 // pred_check_branch
          %404 = sbr.rel (%p402) target = $region44
        $region43: #{multi_head_attention.3} parent=39 // pred_region
          %s405 = sand.u32 %s61, 1
          %s406 = scalar_lea.sflag [#allocation6], %s405
          %s407 = sand.u32 %s61, 1
          %s408 = smul.addr %s407, 8
          %s409 = scalar_lea.vmem [#allocation5], %s408
          %s411 = ssub.s32 128, 128
          %412 = vsyncadd %s406, %s411
          %s413 = sadd.s32 %s37, %s36
          %s414 = sadd.s32 %s413, %s35
          %s415 = smul.addr %s414, 128
          %s416 = scalar_lea.hbm %s0, %s415
          %s418 = sshll.u32 %s409, 4
          %s419 = int_to_ptr.vmem [resolvable:$true] %s418
          %421 = dma.hbm_to_vmem [thread:$0]  %s416, 128, %s419, %s406
        $region44: #{multi_head_attention.3} parent=39 // pred_fallthru
          _
      $region40: #{multi_head_attention.3} parent=5 // pred_fallthru
        _
      %p422 = scmp.le.s32.totalorder 1, %s28
      %p423 = scmp.lt.s32.totalorder %s28, 3
      %p424 = pnand %p422, %p423
      %p425 = pneg %p424
      // Predicated region
      $region45: #{multi_head_attention.3} parent=5 // pred_check
        _
      $region46: #{multi_head_attention.3} parent=5 // pred_check_branch
        %427 = sbr.rel (%p424) target = $region48
      $region47: #{multi_head_attention.3} parent=5 // pred_region
        %s428 = ssub.s32 %s28, 1
        %s429 = sand.u32 %s64, 1
        %s430 = scalar_lea.sflag [#allocation6], %s429
        %s431 = sand.u32 %s64, 1
        %s432 = smul.addr %s431, 8
        %s433 = scalar_lea.vmem [#allocation5], %s432
        // Predicated region
        $region49: #{multi_head_attention.3} parent=47 // pred_check
          %p434 = pneg %p77
        $region50: #{multi_head_attention.3} parent=47 // pred_check_branch
          %436 = sbr.rel (%p434) target = $region52
        $region51: #{multi_head_attention.3} parent=47 // pred_region
          %437 = dma.done %s430, 128
        $region52: #{multi_head_attention.3} parent=47 // pred_fallthru
          _
        // Predicated region
        $region53: #{multi_head_attention.3} parent=47 // pred_check
          %p438 = pneg %p103
        $region54: #{multi_head_attention.3} parent=47 // pred_check_branch
          %440 = sbr.rel (%p438) target = $region56
        $region55: #{multi_head_attention.3} parent=47 // pred_region
          %441 = dma.done [#allocation9], 512
        $region56: #{multi_head_attention.3} parent=47 // pred_fallthru
          _
        // Predicated region
        $region57: #{multi_head_attention.3} parent=47 // pred_check
          %p442 = pneg %p129
        $region58: #{multi_head_attention.3} parent=47 // pred_check_branch
          %444 = sbr.rel (%p442) target = $region60
        $region59: #{multi_head_attention.3} parent=47 // pred_region
          %445 = dma.done [#allocation9], 512
        $region60: #{multi_head_attention.3} parent=47 // pred_fallthru
          _
        // Predicated region
        $region61: #{multi_head_attention.3} parent=47 // pred_check
          %p446 = pneg %p155
        $region62: #{multi_head_attention.3} parent=47 // pred_check_branch
          %448 = sbr.rel (%p446) target = $region64
        $region63: #{multi_head_attention.3} parent=47 // pred_region
          %449 = dma.done [#allocation12], 512
        $region64: #{multi_head_attention.3} parent=47 // pred_fallthru
          _
        // Predicated region
        $region65: #{multi_head_attention.3} parent=47 // pred_check
          %p450 = pneg %p176
        $region66: #{multi_head_attention.3} parent=47 // pred_check_branch
          %452 = sbr.rel (%p450) target = $region68
        $region67: #{multi_head_attention.3} parent=47 // pred_region
          %453 = dma.done [#allocation12], 16
        $region68: #{multi_head_attention.3} parent=47 // pred_fallthru
          _
        // Predicated region
        $region69: #{multi_head_attention.3} parent=47 // pred_check
          %p454 = pneg %p197
        $region70: #{multi_head_attention.3} parent=47 // pred_check_branch
          %456 = sbr.rel (%p454) target = $region72
        $region71: #{multi_head_attention.3} parent=47 // pred_region
          %457 = dma.done [#allocation15], 16
        $region72: #{multi_head_attention.3} parent=47 // pred_fallthru
          _
        // Predicated region
        $region73: #{multi_head_attention.3} parent=47 // pred_check
          %p458 = pneg %p218
        $region74: #{multi_head_attention.3} parent=47 // pred_check_branch
          %460 = sbr.rel (%p458) target = $region76
        $region75: #{multi_head_attention.3} parent=47 // pred_region
          %461 = dma.done [#allocation15], 16
        $region76: #{multi_head_attention.3} parent=47 // pred_fallthru
          _
        %s462 = sand.u32 %s64, 1
        %s463 = scalar_lea.sflag [#allocation6], %s462
        %s464 = sand.u32 %s64, 1
        %s465 = smul.addr %s464, 8
        %s466 = scalar_lea.vmem [#allocation5], %s465
        %p467 = pneg %p77
        %p468 = pneg %p74
        %p469 = pneg %p103
        %p470 = pneg %p100
        %p471 = pneg %p129
        %p472 = pneg %p126
        %p473 = pneg %p155
        %p474 = pneg %p152
        %p475 = pneg %p176
        %p476 = pneg %p173
        %p477 = pneg %p197
        %p478 = pneg %p194
        %p479 = pneg %p218
        %p480 = pneg %p215
        %p481 = pneg %p246
        %p482 = pneg %p243
        %s483 = sand.u32 %s233, 1
        %s484 = scalar_lea.sflag [#allocation7], %s483
        %s485 = sand.u32 %s233, 1
        %s486 = smul.addr %s485, 8
        %s487 = scalar_lea.vmem [#allocation17], %s486
        %p488 = pneg %p274
        %p489 = pneg %p271
        %s490 = sand.u32 %s33, 1
        %s491 = scalar_lea.sflag [#allocation19], %s490
        %s492 = sand.u32 %s261, 1
        %s493 = smul.addr %s492, 8
        %s494 = scalar_lea.vmem [#allocation18], %s493
        %p495 = pneg %p302
        %p496 = pneg %p299
        %s497 = sand.u32 %s33, 1
        %s498 = scalar_lea.sflag [#allocation19], %s497
        %s499 = sand.u32 %s289, 1
        %s500 = smul.addr %s499, 8
        %s501 = scalar_lea.vmem [#allocation20], %s500
        %s502 = smul.u32 4, %s40
        %s503 = smul.u32 4, %s40
        %s504 = smul.u32 4, %s40
        %p505 = scmp.eq.s32.totalorder %s40, 0
        // Predicated region
        $region77: #{multi_head_attention.3} parent=47 // pred_check
          %p506 = pneg %p505
        $region78: #{multi_head_attention.3} parent=47 // pred_check_branch
          %508 = sbr.rel (%p506) target = $region80
        $region79: #{multi_head_attention.3} parent=47 // pred_region
          %vm509 = vcmask 261120
          %510 = vst.msk [vmem:[#allocation2] sm:$0xff] %vm509, 0.0
          %511 = vst.msk [vmem:[#allocation3] sm:$0xff] %vm509, 0.0
          %512 = vst.msk [vmem:[#allocation4] sm:$0xff] %vm509, 0.0
        $region80: #{multi_head_attention.3} parent=47 // pred_fallthru
          _
        %v513 = vld [vmem:[%s433] sm:$0xff]
        %v514 = vld [vmem:[#allocation2] sm:$0xff]
        %v515 = vld [vmem:[#allocation8] sm:$0xff]
        %v516 = vld [vmem:[#allocation8 + $0x8] sm:$0xff]
        %v517 = vld [vmem:[#allocation8 + $0x10] sm:$0xff]
        %v518 = vld [vmem:[#allocation8 + $0x18] sm:$0xff]
        %vm519 = vcmask 261120
        %v521 = vsel %vm519, %v513, 0
        %523 = vmatprep.subr.mxu0 0.0
        %524 = vmatpush1.msra.mxu0 %v515
        %525 = vmatprep.subr.mxu0 0.0
        %526 = vmatpush1.msra.mxu0 %v516
        %527 = vmatprep.subr.mxu0 0.0
        %528 = vmatpush1.msra.mxu0 %v517
        %529 = vmatprep.subr.mxu0 0.0
        %530 = vmatpush1.msra.mxu0 %v518
        %531 = vmatprep.subr.mxu0 0.0
        %532 = vmatpush1.msra.mxu0 0.0
        %533 = vmatprep.subr.mxu0 0.0
        %534 = vmatpush1.msra.mxu0 0.0
        %535 = vmatprep.subr.mxu0 0.0
        %536 = vmatpush1.msra.mxu0 0.0
        %537 = vmatprep.subr.mxu0 0.0
        %538 = vmatpush1.msra.mxu0 0.0
        %539 = vmatprep.subr.mxu0 0.0
        %540 = vmatpush1.msra.mxu0 0.0
        %541 = vmatprep.subr.mxu0 0.0
        %542 = vmatpush1.msra.mxu0 0.0
        %543 = vmatprep.subr.mxu0 0.0
        %544 = vmatpush1.msra.mxu0 0.0
        %545 = vmatprep.subr.mxu0 0.0
        %546 = vmatpush1.msra.mxu0 0.0
        %547 = vmatprep.subr.mxu0 0.0
        %548 = vmatpush1.msra.mxu0 0.0
        %549 = vmatprep.subr.mxu0 0.0
        %550 = vmatpush1.msra.mxu0 0.0
        %551 = vmatprep.subr.mxu0 0.0
        %552 = vmatpush1.msra.mxu0 0.0
        %553 = vmatprep.subr.mxu0 0.0
        %554 = vmatpush1.msra.mxu0 0.0
        %555 = vmatprep.subr.mxu0 0.0
        %556 = vmatpush1.msra.mxu0 0.0
        %557 = vmatprep.subr.mxu0 0.0
        %558 = vmatpush1.msra.mxu0 0.0
        %559 = vmatprep.subr.mxu0 0.0
        %560 = vmatpush1.msra.mxu0 0.0
        %561 = vmatprep.subr.mxu0 0.0
        %562 = vmatpush1.msra.mxu0 0.0
        %563 = vmatprep.subr.mxu0 0.0
        %564 = vmatpush1.msra.mxu0 0.0
        %565 = vmatprep.subr.mxu0 0.0
        %566 = vmatpush1.msra.mxu0 0.0
        %567 = vmatprep.subr.mxu0 0.0
        %568 = vmatpush1.msra.mxu0 0.0
        %569 = vmatprep.subr.mxu0 0.0
        %570 = vmatpush1.msra.mxu0 0.0
        %571 = vmatprep.subr.mxu0 0.0
        %572 = vmatpush1.msra.mxu0 0.0
        %573 = vmatprep.subr.mxu0 0.0
        %574 = vmatpush1.msra.mxu0 0.0
        %575 = vmatprep.subr.mxu0 0.0
        %576 = vmatpush1.msra.mxu0 0.0
        %577 = vmatprep.subr.mxu0 0.0
        %578 = vmatpush1.msra.mxu0 0.0
        %579 = vmatprep.subr.mxu0 0.0
        %580 = vmatpush1.msra.mxu0 0.0
        %581 = vmatprep.subr.mxu0 0.0
        %582 = vmatpush1.msra.mxu0 0.0
        %583 = vmatprep.subr.mxu0 0.0
        %584 = vmatpush1.msra.mxu0 0.0
        %585 = vmatprep.subr.mxu0 0.0
        %586 = vmatpush1.msra.mxu0 0.0
        %587 = vmatprep.mubr.f32.mxu0 0.0
        %588 = vmatmul.mubr.f32.gmra.mrb[0].mxu0 %v521
        %v589 = vpop.f32.mrb[0].mxu0
        %v590 = vadd.f32 0.0, %v589
        %v591 = vpop.f32.mrb[0].mxu0
        %592 = vdwg.mxu0
        %v593 = vadd.f32 %v514, %v590
        %594 = vst.msk [vmem:[#allocation2] sm:$0xff] %vm519, %v593
        %v595 = vld [vmem:[#allocation3] sm:$0xff]
        %v596 = vld [vmem:[#allocation10] sm:$0xff]
        %v597 = vld [vmem:[#allocation10 + $0x8] sm:$0xff]
        %v598 = vld [vmem:[#allocation10 + $0x10] sm:$0xff]
        %v599 = vld [vmem:[#allocation10 + $0x18] sm:$0xff]
        %600 = vmatprep.subr.mxu0 0.0
        %601 = vmatpush1.msra.mxu0 %v596
        %602 = vmatprep.subr.mxu0 0.0
        %603 = vmatpush1.msra.mxu0 %v597
        %604 = vmatprep.subr.mxu0 0.0
        %605 = vmatpush1.msra.mxu0 %v598
        %606 = vmatprep.subr.mxu0 0.0
        %607 = vmatpush1.msra.mxu0 %v599
        %608 = vmatprep.subr.mxu0 0.0
        %609 = vmatpush1.msra.mxu0 0.0
        %610 = vmatprep.subr.mxu0 0.0
        %611 = vmatpush1.msra.mxu0 0.0
        %612 = vmatprep.subr.mxu0 0.0
        %613 = vmatpush1.msra.mxu0 0.0
        %614 = vmatprep.subr.mxu0 0.0
        %615 = vmatpush1.msra.mxu0 0.0
        %616 = vmatprep.subr.mxu0 0.0
        %617 = vmatpush1.msra.mxu0 0.0
        %618 = vmatprep.subr.mxu0 0.0
        %619 = vmatpush1.msra.mxu0 0.0
        %620 = vmatprep.subr.mxu0 0.0
        %621 = vmatpush1.msra.mxu0 0.0
        %622 = vmatprep.subr.mxu0 0.0
        %623 = vmatpush1.msra.mxu0 0.0
        %624 = vmatprep.subr.mxu0 0.0
        %625 = vmatpush1.msra.mxu0 0.0
        %626 = vmatprep.subr.mxu0 0.0
        %627 = vmatpush1.msra.mxu0 0.0
        %628 = vmatprep.subr.mxu0 0.0
        %629 = vmatpush1.msra.mxu0 0.0
        %630 = vmatprep.subr.mxu0 0.0
        %631 = vmatpush1.msra.mxu0 0.0
        %632 = vmatprep.subr.mxu0 0.0
        %633 = vmatpush1.msra.mxu0 0.0
        %634 = vmatprep.subr.mxu0 0.0
        %635 = vmatpush1.msra.mxu0 0.0
        %636 = vmatprep.subr.mxu0 0.0
        %637 = vmatpush1.msra.mxu0 0.0
        %638 = vmatprep.subr.mxu0 0.0
        %639 = vmatpush1.msra.mxu0 0.0
        %640 = vmatprep.subr.mxu0 0.0
        %641 = vmatpush1.msra.mxu0 0.0
        %642 = vmatprep.subr.mxu0 0.0
        %643 = vmatpush1.msra.mxu0 0.0
        %644 = vmatprep.subr.mxu0 0.0
        %645 = vmatpush1.msra.mxu0 0.0
        %646 = vmatprep.subr.mxu0 0.0
        %647 = vmatpush1.msra.mxu0 0.0
        %648 = vmatprep.subr.mxu0 0.0
        %649 = vmatpush1.msra.mxu0 0.0
        %650 = vmatprep.subr.mxu0 0.0
        %651 = vmatpush1.msra.mxu0 0.0
        %652 = vmatprep.subr.mxu0 0.0
        %653 = vmatpush1.msra.mxu0 0.0
        %654 = vmatprep.subr.mxu0 0.0
        %655 = vmatpush1.msra.mxu0 0.0
        %656 = vmatprep.subr.mxu0 0.0
        %657 = vmatpush1.msra.mxu0 0.0
        %658 = vmatprep.subr.mxu0 0.0
        %659 = vmatpush1.msra.mxu0 0.0
        %660 = vmatprep.subr.mxu0 0.0
        %661 = vmatpush1.msra.mxu0 0.0
        %662 = vmatprep.subr.mxu0 0.0
        %663 = vmatpush1.msra.mxu0 0.0
        %664 = vmatprep.mubr.f32.mxu0 0.0
        %665 = vmatmul.mubr.f32.gmra.mrb[0].mxu0 %v521
        %v666 = vpop.f32.mrb[0].mxu0
        %v667 = vadd.f32 0.0, %v666
        %v668 = vpop.f32.mrb[0].mxu0
        %669 = vdwg.mxu0
        %v670 = vadd.f32 %v595, %v667
        %671 = vst.msk [vmem:[#allocation3] sm:$0xff] %vm519, %v670
        %v672 = vld [vmem:[#allocation4] sm:$0xff]
        %v673 = vld [vmem:[#allocation11] sm:$0xff]
        %v674 = vld [vmem:[#allocation11 + $0x8] sm:$0xff]
        %v675 = vld [vmem:[#allocation11 + $0x10] sm:$0xff]
        %v676 = vld [vmem:[#allocation11 + $0x18] sm:$0xff]
        %677 = vmatprep.subr.mxu0 0.0
        %678 = vmatpush1.msra.mxu0 %v673
        %679 = vmatprep.subr.mxu0 0.0
        %680 = vmatpush1.msra.mxu0 %v674
        %681 = vmatprep.subr.mxu0 0.0
        %682 = vmatpush1.msra.mxu0 %v675
        %683 = vmatprep.subr.mxu0 0.0
        %684 = vmatpush1.msra.mxu0 %v676
        %685 = vmatprep.subr.mxu0 0.0
        %686 = vmatpush1.msra.mxu0 0.0
        %687 = vmatprep.subr.mxu0 0.0
        %688 = vmatpush1.msra.mxu0 0.0
        %689 = vmatprep.subr.mxu0 0.0
        %690 = vmatpush1.msra.mxu0 0.0
        %691 = vmatprep.subr.mxu0 0.0
        %692 = vmatpush1.msra.mxu0 0.0
        %693 = vmatprep.subr.mxu0 0.0
        %694 = vmatpush1.msra.mxu0 0.0
        %695 = vmatprep.subr.mxu0 0.0
        %696 = vmatpush1.msra.mxu0 0.0
        %697 = vmatprep.subr.mxu0 0.0
        %698 = vmatpush1.msra.mxu0 0.0
        %699 = vmatprep.subr.mxu0 0.0
        %700 = vmatpush1.msra.mxu0 0.0
        %701 = vmatprep.subr.mxu0 0.0
        %702 = vmatpush1.msra.mxu0 0.0
        %703 = vmatprep.subr.mxu0 0.0
        %704 = vmatpush1.msra.mxu0 0.0
        %705 = vmatprep.subr.mxu0 0.0
        %706 = vmatpush1.msra.mxu0 0.0
        %707 = vmatprep.subr.mxu0 0.0
        %708 = vmatpush1.msra.mxu0 0.0
        %709 = vmatprep.subr.mxu0 0.0
        %710 = vmatpush1.msra.mxu0 0.0
        %711 = vmatprep.subr.mxu0 0.0
        %712 = vmatpush1.msra.mxu0 0.0
        %713 = vmatprep.subr.mxu0 0.0
        %714 = vmatpush1.msra.mxu0 0.0
        %715 = vmatprep.subr.mxu0 0.0
        %716 = vmatpush1.msra.mxu0 0.0
        %717 = vmatprep.subr.mxu0 0.0
        %718 = vmatpush1.msra.mxu0 0.0
        %719 = vmatprep.subr.mxu0 0.0
        %720 = vmatpush1.msra.mxu0 0.0
        %721 = vmatprep.subr.mxu0 0.0
        %722 = vmatpush1.msra.mxu0 0.0
        %723 = vmatprep.subr.mxu0 0.0
        %724 = vmatpush1.msra.mxu0 0.0
        %725 = vmatprep.subr.mxu0 0.0
        %726 = vmatpush1.msra.mxu0 0.0
        %727 = vmatprep.subr.mxu0 0.0
        %728 = vmatpush1.msra.mxu0 0.0
        %729 = vmatprep.subr.mxu0 0.0
        %730 = vmatpush1.msra.mxu0 0.0
        %731 = vmatprep.subr.mxu0 0.0
        %732 = vmatpush1.msra.mxu0 0.0
        %733 = vmatprep.subr.mxu0 0.0
        %734 = vmatpush1.msra.mxu0 0.0
        %735 = vmatprep.subr.mxu0 0.0
        %736 = vmatpush1.msra.mxu0 0.0
        %737 = vmatprep.subr.mxu0 0.0
        %738 = vmatpush1.msra.mxu0 0.0
        %739 = vmatprep.subr.mxu0 0.0
        %740 = vmatpush1.msra.mxu0 0.0
        %741 = vmatprep.mubr.f32.mxu0 0.0
        %742 = vmatmul.mubr.f32.gmra.mrb[0].mxu0 %v521
        %v743 = vpop.f32.mrb[0].mxu0
        %v744 = vadd.f32 0.0, %v743
        %v745 = vpop.f32.mrb[0].mxu0
        %746 = vdwg.mxu0
        %v747 = vadd.f32 %v672, %v744
        %748 = vst.msk [vmem:[#allocation4] sm:$0xff] %vm519, %v747
        // Predicated region
        $region81: #{multi_head_attention.3} parent=47 // pred_check
          %p749 = pneg %p505
        $region82: #{multi_head_attention.3} parent=47 // pred_check_branch
          %751 = sbr.rel (%p749) target = $region84
        $region83: #{multi_head_attention.3} parent=47 // pred_region
          %v752 = vld [vmem:[#allocation2] sm:$0xff]
          %v753 = vld [vmem:[#allocation13] sm:$0x1]
          %v755 = vlaneseq
          %v756 = vshrl.u32 %v755, 7
          %v757 = vsub.s32 0, %v756
          %v758 = vrot.slane %v753, %v757
          %v760 = vadd.f32 %v752, %v758
          %761 = vst.msk [vmem:[%s487] sm:$0xff] %vm519, %v760
          %v762 = vld [vmem:[#allocation3] sm:$0xff]
          %v763 = vld [vmem:[#allocation14] sm:$0x1]
          %v765 = vlaneseq
          %v766 = vshrl.u32 %v765, 7
          %v767 = vsub.s32 0, %v766
          %v768 = vrot.slane %v763, %v767
          %v770 = vadd.f32 %v762, %v768
          %771 = vst.msk [vmem:[%s494] sm:$0xff] %vm519, %v770
          %v772 = vld [vmem:[#allocation4] sm:$0xff]
          %v773 = vld [vmem:[#allocation16] sm:$0x1]
          %v775 = vlaneseq
          %v776 = vshrl.u32 %v775, 7
          %v777 = vsub.s32 0, %v776
          %v778 = vrot.slane %v773, %v777
          %v780 = vadd.f32 %v772, %v778
          %781 = vst.msk [vmem:[%s501] sm:$0xff] %vm519, %v780
        $region84: #{multi_head_attention.3} parent=47 // pred_fallthru
          _
        %s782 = sand.u32 %s233, 1
        %s783 = scalar_lea.sflag [#allocation7], %s782
        %s784 = sand.u32 %s233, 1
        %s785 = smul.addr %s784, 8
        %s786 = scalar_lea.vmem [#allocation17], %s785
        %s787 = sand.u32 %s33, 1
        %s788 = scalar_lea.sflag [#allocation19], %s787
        %s789 = sand.u32 %s261, 1
        %s790 = smul.addr %s789, 8
        %s791 = scalar_lea.vmem [#allocation18], %s790
        %s792 = sand.u32 %s33, 1
        %s793 = scalar_lea.sflag [#allocation19], %s792
        %s794 = sand.u32 %s289, 1
        %s795 = smul.addr %s794, 8
        %s796 = scalar_lea.vmem [#allocation20], %s795
        // Predicated region
        $region85: #{multi_head_attention.3} parent=47 // pred_check
          %p797 = pneg %p243
        $region86: #{multi_head_attention.3} parent=47 // pred_check_branch
          %799 = sbr.rel (%p797) target = $region88
        $region87: #{multi_head_attention.3} parent=47 // pred_region
          %s801 = ssub.s32 128, 128
          %802 = vsyncadd %s783, %s801
          %s803 = sadd.s32 %s39, %s38
          %s804 = smul.addr %s803, 128
          %s805 = scalar_lea.hbm %s7, %s804
          %s807 = sshll.u32 %s786, 4
          %s808 = int_to_ptr.vmem [resolvable:$true] %s807
          %810 = dma.vmem_to_hbm [thread:$0]  %s808, 128, %s805, %s783
        $region88: #{multi_head_attention.3} parent=47 // pred_fallthru
          _
        // Predicated region
        $region89: #{multi_head_attention.3} parent=47 // pred_check
          %p811 = pneg %p271
        $region90: #{multi_head_attention.3} parent=47 // pred_check_branch
          %813 = sbr.rel (%p811) target = $region92
        $region91: #{multi_head_attention.3} parent=47 // pred_region
          %s815 = ssub.s32 128, 128
          %816 = vsyncadd %s788, %s815
          %s817 = sadd.s32 %s39, %s38
          %s818 = smul.addr %s817, 128
          %s819 = scalar_lea.hbm %s8, %s818
          %s821 = sshll.u32 %s791, 4
          %s822 = int_to_ptr.vmem [resolvable:$true] %s821
          %824 = dma.vmem_to_hbm [thread:$0]  %s822, 128, %s819, %s788
        $region92: #{multi_head_attention.3} parent=47 // pred_fallthru
          _
        // Predicated region
        $region93: #{multi_head_attention.3} parent=47 // pred_check
          %p825 = pneg %p299
        $region94: #{multi_head_attention.3} parent=47 // pred_check_branch
          %827 = sbr.rel (%p825) target = $region96
        $region95: #{multi_head_attention.3} parent=47 // pred_region
          %s829 = ssub.s32 128, 128
          %830 = vsyncadd %s793, %s829
          %s831 = sadd.s32 %s39, %s38
          %s832 = smul.addr %s831, 128
          %s833 = scalar_lea.hbm %s9, %s832
          %s835 = sshll.u32 %s796, 4
          %s836 = int_to_ptr.vmem [resolvable:$true] %s835
          %838 = dma.vmem_to_hbm [thread:$0]  %s836, 128, %s833, %s793
        $region96: #{multi_head_attention.3} parent=47 // pred_fallthru
          _
      $region48: #{multi_head_attention.3} parent=5 // pred_fallthru
        _
      %p839 = scmp.le.s32.totalorder 2, %s28
      // Predicated region
      $region97: #{multi_head_attention.3} parent=5 // pred_check
        %p840 = pneg %p839
      $region98: #{multi_head_attention.3} parent=5 // pred_check_branch
        %842 = sbr.rel (%p840) target = $region100
      $region99: #{multi_head_attention.3} parent=5 // pred_region
        %s843 = ssub.s32 %s28, 2
        // Predicated region
        $region101: #{multi_head_attention.3} parent=99 // pred_check
          %p844 = pneg %p249
        $region102: #{multi_head_attention.3} parent=99 // pred_check_branch
          %846 = sbr.rel (%p844) target = $region104
        $region103: #{multi_head_attention.3} parent=99 // pred_region
          %s847 = sand.u32 %s234, 1
          %s848 = scalar_lea.sflag [#allocation7], %s847
          %s849 = sand.u32 %s234, 1
          %s850 = smul.addr %s849, 8
          %s851 = scalar_lea.vmem [#allocation17], %s850
          %852 = dma.done %s848, 128
        $region104: #{multi_head_attention.3} parent=99 // pred_fallthru
          _
        // Predicated region
        $region105: #{multi_head_attention.3} parent=99 // pred_check
          %p853 = pneg %p277
        $region106: #{multi_head_attention.3} parent=99 // pred_check_branch
          %855 = sbr.rel (%p853) target = $region108
        $region107: #{multi_head_attention.3} parent=99 // pred_region
          %s856 = sand.u32 %s34, 1
          %s857 = scalar_lea.sflag [#allocation19], %s856
          %s858 = sand.u32 %s262, 1
          %s859 = smul.addr %s858, 8
          %s860 = scalar_lea.vmem [#allocation18], %s859
          %861 = dma.done %s857, 128
        $region108: #{multi_head_attention.3} parent=99 // pred_fallthru
          _
        // Predicated region
        $region109: #{multi_head_attention.3} parent=99 // pred_check
          %p862 = pneg %p305
        $region110: #{multi_head_attention.3} parent=99 // pred_check_branch
          %864 = sbr.rel (%p862) target = $region112
        $region111: #{multi_head_attention.3} parent=99 // pred_region
          %s865 = sand.u32 %s34, 1
          %s866 = scalar_lea.sflag [#allocation19], %s865
          %s867 = sand.u32 %s290, 1
          %s868 = smul.addr %s867, 8
          %s869 = scalar_lea.vmem [#allocation20], %s868
          %870 = dma.done %s866, 128
        $region112: #{multi_head_attention.3} parent=99 // pred_fallthru
          _
      $region100: #{multi_head_attention.3} parent=5 // pred_fallthru
        _
    $region6: #{multi_head_attention.3} parent=1 // loop_footer
      %s32 = sadd.s32 1, %s28
    $region7: #{multi_head_attention.3} parent=1 // loop_footer_branch
      %27 = sbr.rel target = $region3
    $region8: #{multi_head_attention.3} parent=1 // loop_exit
      _
    %871 = vsyncpa [#allocation6], 1
    %s872 = scalar_lea.sflag [#allocation6], 1
    %873 = vsyncpa %s872, 1
    %874 = vsyncpa [#allocation9], 1
    %875 = vsyncpa [#allocation12], 1
    %876 = vsyncpa [#allocation15], 1
    %877 = vsyncpa [#allocation7], 1
    %s878 = scalar_lea.sflag [#allocation7], 1
    %879 = vsyncpa %s878, 1
    %880 = vsyncpa [#allocation19], 1
    %s881 = scalar_lea.sflag [#allocation19], 1
    %882 = vsyncpa %s881, 1

// kernel: multi_head_attention.5
$region0: #{multi_head_attention.5}
  #allocation0 [shape = 'u32[]', space=smem, size = 0x4, offset = 0x4, fixed_abs, tag = 'smem constant byte address 0x4 - core index']
  #allocation1 [shape = 'u32[144,128]{1,0:T(1,128)}', space=vmem, size = 0x12000, scoped, tag = 'internal scratch']
  #allocation2 [shape = 'f32[8,32]{1,0:T(8,128)}', space=vmem, size = 0x1000, scoped, tag = 'scratch operand']
  %s0 = inlined_call_operand.hbm [shape: f32[2,8,32], index: 0, kind: input, shape index: {}]
  %s1 = inlined_call_operand.hbm [shape: f32[32,32], index: 1, kind: input, shape index: {}]
  %s2 = inlined_call_operand.hbm [shape: f32[1,32], index: 2, kind: input, shape index: {}]
  %s3 = inlined_call_operand.hbm [shape: f32[2,8,32], index: 3, kind: output, shape index: {}]
  %s4 = sld [smem:[#allocation0]]
  $region65: #{multi_head_attention.5} parent=0
    _
  %s6 = ssub.s32 1, %s4
  %s7 = scalar_select 0, %s6, %s4
  $region1: #{multi_head_attention.5} parent=0
    #allocation3 [shape = 'u8[8192]{0}', space=vmem, size = 0x2000, scoped, tag = 'input window, operand 0']
    #allocation4 [shape = 's32[2]{0}', space=sflag, size = 0x8, scoped, tag = 'scoped memory for multi_head_attention.5']
    #allocation5 [shape = 's32[2]{0}', space=sflag, size = 0x8, scoped, tag = 'scoped memory for multi_head_attention.5']
    #allocation6 [shape = 'u8[16384]{0}', space=vmem, size = 0x4000, scoped, tag = 'input window, operand 1, single buffered']
    #allocation7 [shape = 's32[1]{0}', space=sflag, size = 0x4, scoped, tag = 'scoped memory for multi_head_attention.5']
    #allocation8 [shape = 'u8[512]{0}', space=vmem, size = 0x400, scoped, tag = 'input window, operand 2, single buffered']
    #allocation9 [shape = 'u8[8192]{0}', space=vmem, size = 0x2000, scoped, tag = 'output window, operand 0']
    %8 = vsyncpa [#allocation4], 0
    %s9 = scalar_lea.sflag [#allocation4], 1
    %10 = vsyncpa %s9, 0
    %11 = vsyncpa [#allocation7], 0
    %12 = vsyncpa [#allocation5], 0
    %s13 = scalar_lea.sflag [#allocation5], 1
    %14 = vsyncpa %s13, 0
    loop: start=0, step=1, limit=4
    $region2: #{multi_head_attention.5} parent=1 // loop_pre_header
      _
    $region3: #{multi_head_attention.5} parent=1 // loop_header
      %s16 = sphi 0, %s20
      %p17 = scmp.ge.s32.totalorder %s16, 4
      %s23 = sphi 0, %s49
      %s24 = sphi 0, %s45
      %s25 = sphi 0, %s41
      %s26 = sphi 0, %s37
      %s27 = sphi 0, %s23
      %s28 = sphi 0, %s24
      %s29 = sphi 0, %s25
      %s30 = sphi 0, %s26
      %s31 = sphi 0, %s27
      %s32 = sphi 0, %s28
      %s33 = sphi 0, %s29
      %s34 = sphi 0, %s30
      %s56 = sphi 0, %s58
      %s59 = sphi 0, %s56
      %s60 = sphi 0, %s59
      %s76 = sphi 0, %s60
      %s84 = sphi 0, %s86
      %s87 = sphi 0, %s84
      %s88 = sphi 0, %s87
      %s104 = sphi 0, %s88
      %s110 = sphi 0, %s112
      %s113 = sphi 0, %s110
      %s114 = sphi 0, %s113
      %s130 = sphi 0, %s114
      %s140 = sphi 0, %s142
      %s143 = sphi 0, %s140
      %s144 = sphi 0, %s143
      %s160 = sphi 0, %s144
    $region4: #{multi_head_attention.5} parent=1 // loop_header_branch
      %19 = sbr.rel (%p17) target = $region8
    $region5: #{multi_head_attention.5} parent=1 // loop_body
      %s21 = ssub.s32 %s16, 1
      %s22 = ssub.s32 %s16, 2
      %s35 = sadd.s32 1, %s26
      %p36 = scmp.ge.s32.totalorder %s35, 1
      %s37 = scalar_select %p36, 0, %s35
      %s38 = sadd.s32 1, %s25
      %s39 = scalar_select %p36, %s38, %s25
      %p40 = scmp.ge.s32.totalorder %s39, 1
      %s41 = scalar_select %p40, 0, %s39
      %s42 = sadd.s32 1, %s24
      %s43 = scalar_select %p40, %s42, %s24
      %p44 = scmp.ge.s32.totalorder %s43, 1
      %s45 = scalar_select %p44, 0, %s43
      %s46 = sadd.s32 1, %s23
      %s47 = scalar_select %p44, %s46, %s23
      %p48 = scmp.ge.s32.totalorder %s47, 2
      %s49 = scalar_select %p48, 0, %s47
      %s50 = ssub.s32 %s23, %s49
      %s51 = ssub.s32 %s24, %s45
      %s52 = sor.u32 %s50, %s51
      %s53 = ssub.s32 %s26, %s37
      %s54 = sor.u32 %s52, %s53
      %p55 = scmp.eq.s32.totalorder %s54, 0
      %s57 = sadd.s32 %s56, 1
      %s58 = scalar_select %p55, %s56, %s57
      %p61 = pneg %p55
      %p62 = scmp.eq.s32.totalorder %s16, 1
      %p63 = por %p61, %p62
      %p64 = scmp.ne.s32.totalorder %s56, %s59
      %p65 = scmp.eq.s32.totalorder %s16, 0
      %p66 = por %p64, %p65
      %p67 = scmp.ne.s32.totalorder %s56, %s59
      %p68 = scmp.eq.s32.totalorder %s21, 1
      %p69 = por %p67, %p68
      %p70 = scmp.ne.s32.totalorder %s59, %s60
      %p71 = scmp.eq.s32.totalorder %s21, 0
      %p72 = por %p70, %p71
      %p73 = scmp.ne.s32.totalorder %s59, %s60
      %p74 = scmp.eq.s32.totalorder %s22, 1
      %p75 = por %p73, %p74
      %p77 = scmp.ne.s32.totalorder %s60, %s76
      %p78 = scmp.eq.s32.totalorder %s22, 0
      %p79 = por %p77, %p78
      %s80 = ssub.s32 %s26, %s37
      %s81 = ssub.s32 %s25, %s41
      %s82 = sor.u32 %s80, %s81
      %p83 = scmp.eq.s32.totalorder %s82, 0
      %s85 = sadd.s32 %s84, 1
      %s86 = scalar_select %p83, %s84, %s85
      %p89 = pneg %p83
      %p90 = scmp.eq.s32.totalorder %s16, 1
      %p91 = por %p89, %p90
      %p92 = scmp.ne.s32.totalorder %s84, %s87
      %p93 = scmp.eq.s32.totalorder %s16, 0
      %p94 = por %p92, %p93
      %p95 = scmp.ne.s32.totalorder %s84, %s87
      %p96 = scmp.eq.s32.totalorder %s21, 1
      %p97 = por %p95, %p96
      %p98 = scmp.ne.s32.totalorder %s87, %s88
      %p99 = scmp.eq.s32.totalorder %s21, 0
      %p100 = por %p98, %p99
      %p101 = scmp.ne.s32.totalorder %s87, %s88
      %p102 = scmp.eq.s32.totalorder %s22, 1
      %p103 = por %p101, %p102
      %p105 = scmp.ne.s32.totalorder %s88, %s104
      %p106 = scmp.eq.s32.totalorder %s22, 0
      %p107 = por %p105, %p106
      %s108 = ssub.s32 %s25, %s41
      %p109 = scmp.eq.s32.totalorder %s108, 0
      %s111 = sadd.s32 %s110, 1
      %s112 = scalar_select %p109, %s110, %s111
      %p115 = pneg %p109
      %p116 = scmp.eq.s32.totalorder %s16, 1
      %p117 = por %p115, %p116
      %p118 = scmp.ne.s32.totalorder %s110, %s113
      %p119 = scmp.eq.s32.totalorder %s16, 0
      %p120 = por %p118, %p119
      %p121 = scmp.ne.s32.totalorder %s110, %s113
      %p122 = scmp.eq.s32.totalorder %s21, 1
      %p123 = por %p121, %p122
      %p124 = scmp.ne.s32.totalorder %s113, %s114
      %p125 = scmp.eq.s32.totalorder %s21, 0
      %p126 = por %p124, %p125
      %p127 = scmp.ne.s32.totalorder %s113, %s114
      %p128 = scmp.eq.s32.totalorder %s22, 1
      %p129 = por %p127, %p128
      %p131 = scmp.ne.s32.totalorder %s114, %s130
      %p132 = scmp.eq.s32.totalorder %s22, 0
      %p133 = por %p131, %p132
      %s134 = ssub.s32 %s23, %s49
      %s135 = ssub.s32 %s24, %s45
      %s136 = sor.u32 %s134, %s135
      %s137 = ssub.s32 %s25, %s41
      %s138 = sor.u32 %s136, %s137
      %p139 = scmp.eq.s32.totalorder %s138, 0
      %s141 = sadd.s32 %s140, 1
      %s142 = scalar_select %p139, %s140, %s141
      %p145 = pneg %p139
      %p146 = scmp.eq.s32.totalorder %s16, 1
      %p147 = por %p145, %p146
      %p148 = scmp.ne.s32.totalorder %s140, %s143
      %p149 = scmp.eq.s32.totalorder %s16, 0
      %p150 = por %p148, %p149
      %p151 = scmp.ne.s32.totalorder %s140, %s143
      %p152 = scmp.eq.s32.totalorder %s21, 1
      %p153 = por %p151, %p152
      %p154 = scmp.ne.s32.totalorder %s143, %s144
      %p155 = scmp.eq.s32.totalorder %s21, 0
      %p156 = por %p154, %p155
      %p157 = scmp.ne.s32.totalorder %s143, %s144
      %p158 = scmp.eq.s32.totalorder %s22, 1
      %p159 = por %p157, %p158
      %p161 = scmp.ne.s32.totalorder %s144, %s160
      %p162 = scmp.eq.s32.totalorder %s22, 0
      %p163 = por %p161, %p162
      %p164 = scmp.le.s32.totalorder 1, %s16
      %p165 = scmp.lt.s32.totalorder %s16, 3
      %p166 = pnand %p164, %p165
      %p167 = pneg %p166
      // Predicated region
      $region9: #{multi_head_attention.5} parent=5 // pred_check
        _
      $region10: #{multi_head_attention.5} parent=5 // pred_check_branch
        %169 = sbr.rel (%p166) target = $region12
      $region11: #{multi_head_attention.5} parent=5 // pred_region
        %s170 = ssub.s32 %s16, 1
        // Predicated region
        $region13: #{multi_head_attention.5} parent=11 // pred_check
          %p171 = pneg %p100
        $region14: #{multi_head_attention.5} parent=11 // pred_check_branch
          %173 = sbr.rel (%p171) target = $region16
        $region15: #{multi_head_attention.5} parent=11 // pred_region
          %s174 = smul.u32 4, %s30
          %s176 = ssub.s32 512, 512
          %177 = vsyncadd [#allocation7], %s176
          %s178 = sadd.s32 %s29, %s174
          %s179 = smul.addr %s178, 128
          %s180 = scalar_lea.hbm %s1, %s179
          %s181 = sshll.u32 [#allocation6], 4
          %s182 = int_to_ptr.vmem [resolvable:$true] %s181
          %187 = dma.hbm_to_vmem [thread:$0]  %s180, 512, %s182, [#allocation7], 128, 128, 8
        $region16: #{multi_head_attention.5} parent=11 // pred_fallthru
          _
        // Predicated region
        $region17: #{multi_head_attention.5} parent=11 // pred_check
          %p188 = pneg %p126
        $region18: #{multi_head_attention.5} parent=11 // pred_check_branch
          %190 = sbr.rel (%p188) target = $region20
        $region19: #{multi_head_attention.5} parent=11 // pred_region
          %s192 = ssub.s32 16, 16
          %193 = vsyncadd [#allocation7], %s192
          %s194 = smul.addr %s29, 16
          %s195 = scalar_lea.hbm %s2, %s194
          %s197 = sshll.u32 [#allocation8], 4
          %s198 = int_to_ptr.vmem [resolvable:$true] %s197
          %200 = dma.hbm_to_vmem [thread:$0]  %s195, 16, %s198, [#allocation7]
        $region20: #{multi_head_attention.5} parent=11 // pred_fallthru
          _
      $region12: #{multi_head_attention.5} parent=5 // pred_fallthru
        _
      %p201 = scmp.lt.s32.totalorder %s16, 2
      // Predicated region
      $region21: #{multi_head_attention.5} parent=5 // pred_check
        %p202 = pneg %p201
      $region22: #{multi_head_attention.5} parent=5 // pred_check_branch
        %204 = sbr.rel (%p202) target = $region24
      $region23: #{multi_head_attention.5} parent=5 // pred_region
        // Predicated region
        $region25: #{multi_head_attention.5} parent=23 // pred_check
          %p205 = pneg %p66
        $region26: #{multi_head_attention.5} parent=23 // pred_check_branch
          %207 = sbr.rel (%p205) target = $region28
        $region27: #{multi_head_attention.5} parent=23 // pred_region
          %s208 = sand.u32 %s56, 1
          %s209 = scalar_lea.sflag [#allocation4], %s208
          %s210 = sand.u32 %s56, 1
          %s211 = smul.addr %s210, 8
          %s212 = scalar_lea.vmem [#allocation3], %s211
          %s214 = ssub.s32 128, 128
          %215 = vsyncadd %s209, %s214
          %s216 = sadd.s32 %s26, %s24
          %s217 = sadd.s32 %s216, %s23
          %s218 = smul.addr %s217, 128
          %s219 = scalar_lea.hbm %s0, %s218
          %s221 = sshll.u32 %s212, 4
          %s222 = int_to_ptr.vmem [resolvable:$true] %s221
          %224 = dma.hbm_to_vmem [thread:$0]  %s219, 128, %s222, %s209
        $region28: #{multi_head_attention.5} parent=23 // pred_fallthru
          _
      $region24: #{multi_head_attention.5} parent=5 // pred_fallthru
        _
      %p225 = scmp.le.s32.totalorder 1, %s16
      %p226 = scmp.lt.s32.totalorder %s16, 3
      %p227 = pnand %p225, %p226
      %p228 = pneg %p227
      // Predicated region
      $region29: #{multi_head_attention.5} parent=5 // pred_check
        _
      $region30: #{multi_head_attention.5} parent=5 // pred_check_branch
        %230 = sbr.rel (%p227) target = $region32
      $region31: #{multi_head_attention.5} parent=5 // pred_region
        %s231 = ssub.s32 %s16, 1
        %s232 = sand.u32 %s59, 1
        %s233 = scalar_lea.sflag [#allocation4], %s232
        %s234 = sand.u32 %s59, 1
        %s235 = smul.addr %s234, 8
        %s236 = scalar_lea.vmem [#allocation3], %s235
        // Predicated region
        $region33: #{multi_head_attention.5} parent=31 // pred_check
          %p237 = pneg %p72
        $region34: #{multi_head_attention.5} parent=31 // pred_check_branch
          %239 = sbr.rel (%p237) target = $region36
        $region35: #{multi_head_attention.5} parent=31 // pred_region
          %240 = dma.done %s233, 128
        $region36: #{multi_head_attention.5} parent=31 // pred_fallthru
          _
        // Predicated region
        $region37: #{multi_head_attention.5} parent=31 // pred_check
          %p241 = pneg %p100
        $region38: #{multi_head_attention.5} parent=31 // pred_check_branch
          %243 = sbr.rel (%p241) target = $region40
        $region39: #{multi_head_attention.5} parent=31 // pred_region
          %244 = dma.done [#allocation7], 512
        $region40: #{multi_head_attention.5} parent=31 // pred_fallthru
          _
        // Predicated region
        $region41: #{multi_head_attention.5} parent=31 // pred_check
          %p245 = pneg %p126
        $region42: #{multi_head_attention.5} parent=31 // pred_check_branch
          %247 = sbr.rel (%p245) target = $region44
        $region43: #{multi_head_attention.5} parent=31 // pred_region
          %248 = dma.done [#allocation7], 16
        $region44: #{multi_head_attention.5} parent=31 // pred_fallthru
          _
        %s249 = sand.u32 %s59, 1
        %s250 = scalar_lea.sflag [#allocation4], %s249
        %s251 = sand.u32 %s59, 1
        %s252 = smul.addr %s251, 8
        %s253 = scalar_lea.vmem [#allocation3], %s252
        %p254 = pneg %p72
        %p255 = pneg %p69
        %p256 = pneg %p100
        %p257 = pneg %p97
        %p258 = pneg %p126
        %p259 = pneg %p123
        %p260 = pneg %p156
        %p261 = pneg %p153
        %s262 = sand.u32 %s143, 1
        %s263 = scalar_lea.sflag [#allocation5], %s262
        %s264 = sand.u32 %s143, 1
        %s265 = smul.addr %s264, 8
        %s266 = scalar_lea.vmem [#allocation9], %s265
        %s267 = smul.u32 4, %s30
        %p268 = scmp.eq.s32.totalorder %s30, 0
        // Predicated region
        $region45: #{multi_head_attention.5} parent=31 // pred_check
          %p269 = pneg %p268
        $region46: #{multi_head_attention.5} parent=31 // pred_check_branch
          %271 = sbr.rel (%p269) target = $region48
        $region47: #{multi_head_attention.5} parent=31 // pred_region
          %vm272 = vcmask 261120
          %273 = vst.msk [vmem:[#allocation2] sm:$0xff] %vm272, 0.0
        $region48: #{multi_head_attention.5} parent=31 // pred_fallthru
          _
        %v274 = vld [vmem:[#allocation2] sm:$0xff]
        %v275 = vld [vmem:[%s236] sm:$0xff]
        %v276 = vld [vmem:[#allocation6] sm:$0xff]
        %v277 = vld [vmem:[#allocation6 + $0x8] sm:$0xff]
        %v278 = vld [vmem:[#allocation6 + $0x10] sm:$0xff]
        %v279 = vld [vmem:[#allocation6 + $0x18] sm:$0xff]
        %vm280 = vcmask 261120
        %v282 = vsel %vm280, %v275, 0
        %284 = vmatprep.subr.mxu0 0.0
        %285 = vmatpush1.msra.mxu0 %v276
        %286 = vmatprep.subr.mxu0 0.0
        %287 = vmatpush1.msra.mxu0 %v277
        %288 = vmatprep.subr.mxu0 0.0
        %289 = vmatpush1.msra.mxu0 %v278
        %290 = vmatprep.subr.mxu0 0.0
        %291 = vmatpush1.msra.mxu0 %v279
        %292 = vmatprep.subr.mxu0 0.0
        %293 = vmatpush1.msra.mxu0 0.0
        %294 = vmatprep.subr.mxu0 0.0
        %295 = vmatpush1.msra.mxu0 0.0
        %296 = vmatprep.subr.mxu0 0.0
        %297 = vmatpush1.msra.mxu0 0.0
        %298 = vmatprep.subr.mxu0 0.0
        %299 = vmatpush1.msra.mxu0 0.0
        %300 = vmatprep.subr.mxu0 0.0
        %301 = vmatpush1.msra.mxu0 0.0
        %302 = vmatprep.subr.mxu0 0.0
        %303 = vmatpush1.msra.mxu0 0.0
        %304 = vmatprep.subr.mxu0 0.0
        %305 = vmatpush1.msra.mxu0 0.0
        %306 = vmatprep.subr.mxu0 0.0
        %307 = vmatpush1.msra.mxu0 0.0
        %308 = vmatprep.subr.mxu0 0.0
        %309 = vmatpush1.msra.mxu0 0.0
        %310 = vmatprep.subr.mxu0 0.0
        %311 = vmatpush1.msra.mxu0 0.0
        %312 = vmatprep.subr.mxu0 0.0
        %313 = vmatpush1.msra.mxu0 0.0
        %314 = vmatprep.subr.mxu0 0.0
        %315 = vmatpush1.msra.mxu0 0.0
        %316 = vmatprep.subr.mxu0 0.0
        %317 = vmatpush1.msra.mxu0 0.0
        %318 = vmatprep.subr.mxu0 0.0
        %319 = vmatpush1.msra.mxu0 0.0
        %320 = vmatprep.subr.mxu0 0.0
        %321 = vmatpush1.msra.mxu0 0.0
        %322 = vmatprep.subr.mxu0 0.0
        %323 = vmatpush1.msra.mxu0 0.0
        %324 = vmatprep.subr.mxu0 0.0
        %325 = vmatpush1.msra.mxu0 0.0
        %326 = vmatprep.subr.mxu0 0.0
        %327 = vmatpush1.msra.mxu0 0.0
        %328 = vmatprep.subr.mxu0 0.0
        %329 = vmatpush1.msra.mxu0 0.0
        %330 = vmatprep.subr.mxu0 0.0
        %331 = vmatpush1.msra.mxu0 0.0
        %332 = vmatprep.subr.mxu0 0.0
        %333 = vmatpush1.msra.mxu0 0.0
        %334 = vmatprep.subr.mxu0 0.0
        %335 = vmatpush1.msra.mxu0 0.0
        %336 = vmatprep.subr.mxu0 0.0
        %337 = vmatpush1.msra.mxu0 0.0
        %338 = vmatprep.subr.mxu0 0.0
        %339 = vmatpush1.msra.mxu0 0.0
        %340 = vmatprep.subr.mxu0 0.0
        %341 = vmatpush1.msra.mxu0 0.0
        %342 = vmatprep.subr.mxu0 0.0
        %343 = vmatpush1.msra.mxu0 0.0
        %344 = vmatprep.subr.mxu0 0.0
        %345 = vmatpush1.msra.mxu0 0.0
        %346 = vmatprep.subr.mxu0 0.0
        %347 = vmatpush1.msra.mxu0 0.0
        %348 = vmatprep.mubr.f32.mxu0 0.0
        %349 = vmatmul.mubr.f32.gmra.mrb[0].mxu0 %v282
        %v350 = vpop.f32.mrb[0].mxu0
        %v351 = vadd.f32 0.0, %v350
        %v352 = vpop.f32.mrb[0].mxu0
        %353 = vdwg.mxu0
        %v354 = vadd.f32 %v274, %v351
        %355 = vst.msk [vmem:[#allocation2] sm:$0xff] %vm280, %v354
        // Predicated region
        $region49: #{multi_head_attention.5} parent=31 // pred_check
          %p356 = pneg %p268
        $region50: #{multi_head_attention.5} parent=31 // pred_check_branch
          %358 = sbr.rel (%p356) target = $region52
        $region51: #{multi_head_attention.5} parent=31 // pred_region
          %v359 = vld [vmem:[#allocation2] sm:$0xff]
          %v360 = vld [vmem:[#allocation8] sm:$0x1]
          %v362 = vlaneseq
          %v363 = vshrl.u32 %v362, 7
          %v364 = vsub.s32 0, %v363
          %v365 = vrot.slane %v360, %v364
          %v367 = vadd.f32 %v359, %v365
          %368 = vst.msk [vmem:[%s266] sm:$0xff] %vm280, %v367
        $region52: #{multi_head_attention.5} parent=31 // pred_fallthru
          _
        %s369 = sand.u32 %s143, 1
        %s370 = scalar_lea.sflag [#allocation5], %s369
        %s371 = sand.u32 %s143, 1
        %s372 = smul.addr %s371, 8
        %s373 = scalar_lea.vmem [#allocation9], %s372
        // Predicated region
        $region53: #{multi_head_attention.5} parent=31 // pred_check
          %p374 = pneg %p153
        $region54: #{multi_head_attention.5} parent=31 // pred_check_branch
          %376 = sbr.rel (%p374) target = $region56
        $region55: #{multi_head_attention.5} parent=31 // pred_region
          %s378 = ssub.s32 128, 128
          %379 = vsyncadd %s370, %s378
          %s380 = sadd.s32 %s29, %s28
          %s381 = sadd.s32 %s380, %s27
          %s382 = smul.addr %s381, 128
          %s383 = scalar_lea.hbm %s3, %s382
          %s385 = sshll.u32 %s373, 4
          %s386 = int_to_ptr.vmem [resolvable:$true] %s385
          %388 = dma.vmem_to_hbm [thread:$0]  %s386, 128, %s383, %s370
        $region56: #{multi_head_attention.5} parent=31 // pred_fallthru
          _
      $region32: #{multi_head_attention.5} parent=5 // pred_fallthru
        _
      %p389 = scmp.le.s32.totalorder 2, %s16
      // Predicated region
      $region57: #{multi_head_attention.5} parent=5 // pred_check
        %p390 = pneg %p389
      $region58: #{multi_head_attention.5} parent=5 // pred_check_branch
        %392 = sbr.rel (%p390) target = $region60
      $region59: #{multi_head_attention.5} parent=5 // pred_region
        %s393 = ssub.s32 %s16, 2
        // Predicated region
        $region61: #{multi_head_attention.5} parent=59 // pred_check
          %p394 = pneg %p159
        $region62: #{multi_head_attention.5} parent=59 // pred_check_branch
          %396 = sbr.rel (%p394) target = $region64
        $region63: #{multi_head_attention.5} parent=59 // pred_region
          %s397 = sand.u32 %s144, 1
          %s398 = scalar_lea.sflag [#allocation5], %s397
          %s399 = sand.u32 %s144, 1
          %s400 = smul.addr %s399, 8
          %s401 = scalar_lea.vmem [#allocation9], %s400
          %402 = dma.done %s398, 128
        $region64: #{multi_head_attention.5} parent=59 // pred_fallthru
          _
      $region60: #{multi_head_attention.5} parent=5 // pred_fallthru
        _
    $region6: #{multi_head_attention.5} parent=1 // loop_footer
      %s20 = sadd.s32 1, %s16
    $region7: #{multi_head_attention.5} parent=1 // loop_footer_branch
      %15 = sbr.rel target = $region3
    $region8: #{multi_head_attention.5} parent=1 // loop_exit
      _
    %403 = vsyncpa [#allocation4], 1
    %s404 = scalar_lea.sflag [#allocation4], 1
    %405 = vsyncpa %s404, 1
    %406 = vsyncpa [#allocation7], 1
    %407 = vsyncpa [#allocation5], 1
    %s408 = scalar_lea.sflag [#allocation5], 1
    %409 = vsyncpa %s408, 1

// kernel: multi_head_attention.4
$region0: #{multi_head_attention.4}
  #allocation0 [shape = 'u32[]', space=smem, size = 0x4, offset = 0x4, fixed_abs, tag = 'smem constant byte address 0x4 - core index']
  #allocation1 [shape = 'u32[144,128]{1,0:T(1,128)}', space=vmem, size = 0x12000, scoped, tag = 'internal scratch']
  #allocation2 [shape = 'f32[4,8,1]{2,1,0:T(8,128)}', space=vmem, size = 0x4000, scoped, tag = 'scratch operand']
  #allocation3 [shape = 'f32[4,8,1]{2,1,0:T(8,128)}', space=vmem, size = 0x4000, scoped, tag = 'scratch operand']
  #allocation4 [shape = 'f32[4,8,8]{2,1,0:T(8,128)}', space=vmem, size = 0x4000, scoped, tag = 'scratch operand']
  %s0 = inlined_call_operand.hbm [shape: f32[2,8,32], index: 0, kind: input, shape index: {}]
  %s1 = inlined_call_operand.hbm [shape: f32[2,8,32], index: 1, kind: input, shape index: {}]
  %s2 = inlined_call_operand.hbm [shape: f32[2,8,32], index: 2, kind: input, shape index: {}]
  %s3 = inlined_call_operand.hbm [shape: f32[2,8,32], index: 3, kind: output, shape index: {0}]
  %s4 = inlined_call_operand.hbm [shape: f32[2,4,8,1], index: 4, kind: output, shape index: {1}]
  %5 = xla_tuple %s3, %s4
  %s6 = sld [smem:[#allocation0]]
  $region73: #{multi_head_attention.4} parent=0
    _
  %s8 = ssub.s32 1, %s6
  %s9 = scalar_select 0, %s8, %s6
  $region1: #{multi_head_attention.4} parent=0
    #allocation5 [shape = 'u8[8192]{0}', space=vmem, size = 0x2000, scoped, tag = 'input window, operand 0']
    #allocation6 [shape = 's32[2]{0}', space=sflag, size = 0x8, scoped, tag = 'scoped memory for multi_head_attention.4']
    #allocation7 [shape = 's32[2]{0}', space=sflag, size = 0x8, scoped, tag = 'scoped memory for multi_head_attention.4']
    #allocation8 [shape = 'u8[8192]{0}', space=vmem, size = 0x2000, scoped, tag = 'input window, operand 1']
    #allocation9 [shape = 's32[2]{0}', space=sflag, size = 0x8, scoped, tag = 'scoped memory for multi_head_attention.4']
    #allocation10 [shape = 'u8[8192]{0}', space=vmem, size = 0x2000, scoped, tag = 'input window, operand 2']
    #allocation11 [shape = 'u8[8192]{0}', space=vmem, size = 0x2000, scoped, tag = 'output window, operand 0']
    #allocation12 [shape = 'u8[32768]{0}', space=vmem, size = 0x8000, scoped, tag = 'output window, operand 1']
    #allocation13 [shape = 's32[2]{0}', space=sflag, size = 0x8, scoped, tag = 'scoped memory for multi_head_attention.4']
    %10 = vsyncpa [#allocation6], 0
    %s11 = scalar_lea.sflag [#allocation6], 1
    %12 = vsyncpa %s11, 0
    %13 = vsyncpa [#allocation9], 0
    %s14 = scalar_lea.sflag [#allocation9], 1
    %15 = vsyncpa %s14, 0
    %16 = vsyncpa [#allocation7], 0
    %s17 = scalar_lea.sflag [#allocation7], 1
    %18 = vsyncpa %s17, 0
    %19 = vsyncpa [#allocation13], 0
    %s20 = scalar_lea.sflag [#allocation13], 1
    %21 = vsyncpa %s20, 0
    loop: start=0, step=1, limit=4
    $region2: #{multi_head_attention.4} parent=1 // loop_pre_header
      _
    $region3: #{multi_head_attention.4} parent=1 // loop_header
      %s23 = sphi 0, %s27
      %p24 = scmp.ge.s32.totalorder %s23, 4
      %s30 = sphi 0, %s49
      %s31 = sphi 0, %s45
      %s32 = sphi 0, %s41
      %s33 = sphi 0, %s30
      %s34 = sphi 0, %s31
      %s35 = sphi 0, %s32
      %s36 = sphi 0, %s33
      %s37 = sphi 0, %s34
      %s38 = sphi 0, %s35
      %s54 = sphi 0, %s56
      %s57 = sphi 0, %s54
      %s58 = sphi 0, %s57
      %s74 = sphi 0, %s58
      %s82 = sphi 0, %s84
      %s85 = sphi 0, %s82
      %s86 = sphi 0, %s85
      %s102 = sphi 0, %s86
      %s110 = sphi 0, %s112
      %s113 = sphi 0, %s110
      %s114 = sphi 0, %s113
      %s130 = sphi 0, %s114
      %s138 = sphi 0, %s140
      %s141 = sphi 0, %s138
      %s142 = sphi 0, %s141
      %s158 = sphi 0, %s142
      %s166 = sphi 0, %s168
      %s169 = sphi 0, %s166
      %s170 = sphi 0, %s169
      %s186 = sphi 0, %s170
    $region4: #{multi_head_attention.4} parent=1 // loop_header_branch
      %26 = sbr.rel (%p24) target = $region8
    $region5: #{multi_head_attention.4} parent=1 // loop_body
      %s28 = ssub.s32 %s23, 1
      %s29 = ssub.s32 %s23, 2
      %s39 = sadd.s32 1, %s32
      %p40 = scmp.ge.s32.totalorder %s39, 1
      %s41 = scalar_select %p40, 0, %s39
      %s42 = sadd.s32 1, %s31
      %s43 = scalar_select %p40, %s42, %s31
      %p44 = scmp.ge.s32.totalorder %s43, 1
      %s45 = scalar_select %p44, 0, %s43
      %s46 = sadd.s32 1, %s30
      %s47 = scalar_select %p44, %s46, %s30
      %p48 = scmp.ge.s32.totalorder %s47, 2
      %s49 = scalar_select %p48, 0, %s47
      %s50 = ssub.s32 %s30, %s49
      %s51 = ssub.s32 %s31, %s45
      %s52 = sor.u32 %s50, %s51
      %p53 = scmp.eq.s32.totalorder %s52, 0
      %s55 = sadd.s32 %s54, 1
      %s56 = scalar_select %p53, %s54, %s55
      %p59 = pneg %p53
      %p60 = scmp.eq.s32.totalorder %s23, 1
      %p61 = por %p59, %p60
      %p62 = scmp.ne.s32.totalorder %s54, %s57
      %p63 = scmp.eq.s32.totalorder %s23, 0
      %p64 = por %p62, %p63
      %p65 = scmp.ne.s32.totalorder %s54, %s57
      %p66 = scmp.eq.s32.totalorder %s28, 1
      %p67 = por %p65, %p66
      %p68 = scmp.ne.s32.totalorder %s57, %s58
      %p69 = scmp.eq.s32.totalorder %s28, 0
      %p70 = por %p68, %p69
      %p71 = scmp.ne.s32.totalorder %s57, %s58
      %p72 = scmp.eq.s32.totalorder %s29, 1
      %p73 = por %p71, %p72
      %p75 = scmp.ne.s32.totalorder %s58, %s74
      %p76 = scmp.eq.s32.totalorder %s29, 0
      %p77 = por %p75, %p76
      %s78 = ssub.s32 %s30, %s49
      %s79 = ssub.s32 %s32, %s41
      %s80 = sor.u32 %s78, %s79
      %p81 = scmp.eq.s32.totalorder %s80, 0
      %s83 = sadd.s32 %s82, 1
      %s84 = scalar_select %p81, %s82, %s83
      %p87 = pneg %p81
      %p88 = scmp.eq.s32.totalorder %s23, 1
      %p89 = por %p87, %p88
      %p90 = scmp.ne.s32.totalorder %s82, %s85
      %p91 = scmp.eq.s32.totalorder %s23, 0
      %p92 = por %p90, %p91
      %p93 = scmp.ne.s32.totalorder %s82, %s85
      %p94 = scmp.eq.s32.totalorder %s28, 1
      %p95 = por %p93, %p94
      %p96 = scmp.ne.s32.totalorder %s85, %s86
      %p97 = scmp.eq.s32.totalorder %s28, 0
      %p98 = por %p96, %p97
      %p99 = scmp.ne.s32.totalorder %s85, %s86
      %p100 = scmp.eq.s32.totalorder %s29, 1
      %p101 = por %p99, %p100
      %p103 = scmp.ne.s32.totalorder %s86, %s102
      %p104 = scmp.eq.s32.totalorder %s29, 0
      %p105 = por %p103, %p104
      %s106 = ssub.s32 %s30, %s49
      %s107 = ssub.s32 %s32, %s41
      %s108 = sor.u32 %s106, %s107
      %p109 = scmp.eq.s32.totalorder %s108, 0
      %s111 = sadd.s32 %s110, 1
      %s112 = scalar_select %p109, %s110, %s111
      %p115 = pneg %p109
      %p116 = scmp.eq.s32.totalorder %s23, 1
      %p117 = por %p115, %p116
      %p118 = scmp.ne.s32.totalorder %s110, %s113
      %p119 = scmp.eq.s32.totalorder %s23, 0
      %p120 = por %p118, %p119
      %p121 = scmp.ne.s32.totalorder %s110, %s113
      %p122 = scmp.eq.s32.totalorder %s28, 1
      %p123 = por %p121, %p122
      %p124 = scmp.ne.s32.totalorder %s113, %s114
      %p125 = scmp.eq.s32.totalorder %s28, 0
      %p126 = por %p124, %p125
      %p127 = scmp.ne.s32.totalorder %s113, %s114
      %p128 = scmp.eq.s32.totalorder %s29, 1
      %p129 = por %p127, %p128
      %p131 = scmp.ne.s32.totalorder %s114, %s130
      %p132 = scmp.eq.s32.totalorder %s29, 0
      %p133 = por %p131, %p132
      %s134 = ssub.s32 %s30, %s49
      %s135 = ssub.s32 %s31, %s45
      %s136 = sor.u32 %s134, %s135
      %p137 = scmp.eq.s32.totalorder %s136, 0
      %s139 = sadd.s32 %s138, 1
      %s140 = scalar_select %p137, %s138, %s139
      %p143 = pneg %p137
      %p144 = scmp.eq.s32.totalorder %s23, 1
      %p145 = por %p143, %p144
      %p146 = scmp.ne.s32.totalorder %s138, %s141
      %p147 = scmp.eq.s32.totalorder %s23, 0
      %p148 = por %p146, %p147
      %p149 = scmp.ne.s32.totalorder %s138, %s141
      %p150 = scmp.eq.s32.totalorder %s28, 1
      %p151 = por %p149, %p150
      %p152 = scmp.ne.s32.totalorder %s141, %s142
      %p153 = scmp.eq.s32.totalorder %s28, 0
      %p154 = por %p152, %p153
      %p155 = scmp.ne.s32.totalorder %s141, %s142
      %p156 = scmp.eq.s32.totalorder %s29, 1
      %p157 = por %p155, %p156
      %p159 = scmp.ne.s32.totalorder %s142, %s158
      %p160 = scmp.eq.s32.totalorder %s29, 0
      %p161 = por %p159, %p160
      %s162 = ssub.s32 %s30, %s49
      %s163 = ssub.s32 %s31, %s45
      %s164 = sor.u32 %s162, %s163
      %p165 = scmp.eq.s32.totalorder %s164, 0
      %s167 = sadd.s32 %s166, 1
      %s168 = scalar_select %p165, %s166, %s167
      %p171 = pneg %p165
      %p172 = scmp.eq.s32.totalorder %s23, 1
      %p173 = por %p171, %p172
      %p174 = scmp.ne.s32.totalorder %s166, %s169
      %p175 = scmp.eq.s32.totalorder %s23, 0
      %p176 = por %p174, %p175
      %p177 = scmp.ne.s32.totalorder %s166, %s169
      %p178 = scmp.eq.s32.totalorder %s28, 1
      %p179 = por %p177, %p178
      %p180 = scmp.ne.s32.totalorder %s169, %s170
      %p181 = scmp.eq.s32.totalorder %s28, 0
      %p182 = por %p180, %p181
      %p183 = scmp.ne.s32.totalorder %s169, %s170
      %p184 = scmp.eq.s32.totalorder %s29, 1
      %p185 = por %p183, %p184
      %p187 = scmp.ne.s32.totalorder %s170, %s186
      %p188 = scmp.eq.s32.totalorder %s29, 0
      %p189 = por %p187, %p188
      %p190 = scmp.le.s32.totalorder 1, %s23
      %p191 = scmp.lt.s32.totalorder %s23, 3
      %p192 = pnand %p190, %p191
      %p193 = pneg %p192
      // Predicated region
      $region9: #{multi_head_attention.4} parent=5 // pred_check
        _
      $region10: #{multi_head_attention.4} parent=5 // pred_check_branch
        %195 = sbr.rel (%p192) target = $region12
      $region11: #{multi_head_attention.4} parent=5 // pred_region
        %s196 = ssub.s32 %s23, 1
      $region12: #{multi_head_attention.4} parent=5 // pred_fallthru
        _
      %p197 = scmp.lt.s32.totalorder %s23, 2
      // Predicated region
      $region13: #{multi_head_attention.4} parent=5 // pred_check
        %p198 = pneg %p197
      $region14: #{multi_head_attention.4} parent=5 // pred_check_branch
        %200 = sbr.rel (%p198) target = $region16
      $region15: #{multi_head_attention.4} parent=5 // pred_region
        // Predicated region
        $region17: #{multi_head_attention.4} parent=15 // pred_check
          %p201 = pneg %p64
        $region18: #{multi_head_attention.4} parent=15 // pred_check_branch
          %203 = sbr.rel (%p201) target = $region20
        $region19: #{multi_head_attention.4} parent=15 // pred_region
          %s204 = sand.u32 %s54, 1
          %s205 = scalar_lea.sflag [#allocation6], %s204
          %s206 = sand.u32 %s54, 1
          %s207 = smul.addr %s206, 8
          %s208 = scalar_lea.vmem [#allocation5], %s207
          %s210 = ssub.s32 128, 128
          %211 = vsyncadd %s205, %s210
          %s212 = sadd.s32 %s31, %s30
          %s213 = smul.addr %s212, 128
          %s214 = scalar_lea.hbm %s0, %s213
          %s216 = sshll.u32 %s208, 4
          %s217 = int_to_ptr.vmem [resolvable:$true] %s216
          %219 = dma.hbm_to_vmem [thread:$0]  %s214, 128, %s217, %s205
        $region20: #{multi_head_attention.4} parent=15 // pred_fallthru
          _
        // Predicated region
        $region21: #{multi_head_attention.4} parent=15 // pred_check
          %p220 = pneg %p92
        $region22: #{multi_head_attention.4} parent=15 // pred_check_branch
          %222 = sbr.rel (%p220) target = $region24
        $region23: #{multi_head_attention.4} parent=15 // pred_region
          %s223 = sand.u32 %s23, 1
          %s224 = scalar_lea.sflag [#allocation9], %s223
          %s225 = sand.u32 %s82, 1
          %s226 = smul.addr %s225, 8
          %s227 = scalar_lea.vmem [#allocation8], %s226
          %s229 = ssub.s32 128, 128
          %230 = vsyncadd %s224, %s229
          %s231 = sadd.s32 %s32, %s30
          %s232 = smul.addr %s231, 128
          %s233 = scalar_lea.hbm %s1, %s232
          %s235 = sshll.u32 %s227, 4
          %s236 = int_to_ptr.vmem [resolvable:$true] %s235
          %238 = dma.hbm_to_vmem [thread:$0]  %s233, 128, %s236, %s224
        $region24: #{multi_head_attention.4} parent=15 // pred_fallthru
          _
        // Predicated region
        $region25: #{multi_head_attention.4} parent=15 // pred_check
          %p239 = pneg %p120
        $region26: #{multi_head_attention.4} parent=15 // pred_check_branch
          %241 = sbr.rel (%p239) target = $region28
        $region27: #{multi_head_attention.4} parent=15 // pred_region
          %s242 = sand.u32 %s23, 1
          %s243 = scalar_lea.sflag [#allocation9], %s242
          %s244 = sand.u32 %s110, 1
          %s245 = smul.addr %s244, 8
          %s246 = scalar_lea.vmem [#allocation10], %s245
          %s248 = ssub.s32 128, 128
          %249 = vsyncadd %s243, %s248
          %s250 = sadd.s32 %s32, %s30
          %s251 = smul.addr %s250, 128
          %s252 = scalar_lea.hbm %s2, %s251
          %s254 = sshll.u32 %s246, 4
          %s255 = int_to_ptr.vmem [resolvable:$true] %s254
          %257 = dma.hbm_to_vmem [thread:$0]  %s252, 128, %s255, %s243
        $region28: #{multi_head_attention.4} parent=15 // pred_fallthru
          _
      $region16: #{multi_head_attention.4} parent=5 // pred_fallthru
        _
      %p258 = scmp.le.s32.totalorder 1, %s23
      %p259 = scmp.lt.s32.totalorder %s23, 3
      %p260 = pnand %p258, %p259
      %p261 = pneg %p260
      // Predicated region
      $region29: #{multi_head_attention.4} parent=5 // pred_check
        _
      $region30: #{multi_head_attention.4} parent=5 // pred_check_branch
        %263 = sbr.rel (%p260) target = $region32
      $region31: #{multi_head_attention.4} parent=5 // pred_region
        %s264 = ssub.s32 %s23, 1
        %s265 = sand.u32 %s57, 1
        %s266 = scalar_lea.sflag [#allocation6], %s265
        %s267 = sand.u32 %s57, 1
        %s268 = smul.addr %s267, 8
        %s269 = scalar_lea.vmem [#allocation5], %s268
        // Predicated region
        $region33: #{multi_head_attention.4} parent=31 // pred_check
          %p270 = pneg %p70
        $region34: #{multi_head_attention.4} parent=31 // pred_check_branch
          %272 = sbr.rel (%p270) target = $region36
        $region35: #{multi_head_attention.4} parent=31 // pred_region
          %273 = dma.done %s266, 128
        $region36: #{multi_head_attention.4} parent=31 // pred_fallthru
          _
        %s274 = sand.u32 %s28, 1
        %s275 = scalar_lea.sflag [#allocation9], %s274
        %s276 = sand.u32 %s85, 1
        %s277 = smul.addr %s276, 8
        %s278 = scalar_lea.vmem [#allocation8], %s277
        // Predicated region
        $region37: #{multi_head_attention.4} parent=31 // pred_check
          %p279 = pneg %p98
        $region38: #{multi_head_attention.4} parent=31 // pred_check_branch
          %281 = sbr.rel (%p279) target = $region40
        $region39: #{multi_head_attention.4} parent=31 // pred_region
          %282 = dma.done %s275, 128
        $region40: #{multi_head_attention.4} parent=31 // pred_fallthru
          _
        %s283 = sand.u32 %s28, 1
        %s284 = scalar_lea.sflag [#allocation9], %s283
        %s285 = sand.u32 %s113, 1
        %s286 = smul.addr %s285, 8
        %s287 = scalar_lea.vmem [#allocation10], %s286
        // Predicated region
        $region41: #{multi_head_attention.4} parent=31 // pred_check
          %p288 = pneg %p126
        $region42: #{multi_head_attention.4} parent=31 // pred_check_branch
          %290 = sbr.rel (%p288) target = $region44
        $region43: #{multi_head_attention.4} parent=31 // pred_region
          %291 = dma.done %s284, 128
        $region44: #{multi_head_attention.4} parent=31 // pred_fallthru
          _
        %s292 = sand.u32 %s57, 1
        %s293 = scalar_lea.sflag [#allocation6], %s292
        %s294 = sand.u32 %s57, 1
        %s295 = smul.addr %s294, 8
        %s296 = scalar_lea.vmem [#allocation5], %s295
        %p297 = pneg %p70
        %p298 = pneg %p67
        %s299 = sand.u32 %s28, 1
        %s300 = scalar_lea.sflag [#allocation9], %s299
        %s301 = sand.u32 %s85, 1
        %s302 = smul.addr %s301, 8
        %s303 = scalar_lea.vmem [#allocation8], %s302
        %p304 = pneg %p98
        %p305 = pneg %p95
        %s306 = sand.u32 %s28, 1
        %s307 = scalar_lea.sflag [#allocation9], %s306
        %s308 = sand.u32 %s113, 1
        %s309 = smul.addr %s308, 8
        %s310 = scalar_lea.vmem [#allocation10], %s309
        %p311 = pneg %p126
        %p312 = pneg %p123
        %p313 = pneg %p154
        %p314 = pneg %p151
        %s315 = sand.u32 %s141, 1
        %s316 = scalar_lea.sflag [#allocation7], %s315
        %s317 = sand.u32 %s141, 1
        %s318 = smul.addr %s317, 8
        %s319 = scalar_lea.vmem [#allocation11], %s318
        %p320 = pneg %p182
        %p321 = pneg %p179
        %s322 = sand.u32 %s169, 1
        %s323 = scalar_lea.sflag [#allocation13], %s322
        %s324 = sand.u32 %s169, 1
        %s325 = smul.addr %s324, 32
        %s326 = scalar_lea.vmem [#allocation12], %s325
        %p327 = scmp.eq.s32.totalorder %s35, 0
        // Predicated region
        $region45: #{multi_head_attention.4} parent=31 // pred_check
          %p328 = pneg %p327
        $region46: #{multi_head_attention.4} parent=31 // pred_check_branch
          %330 = sbr.rel (%p328) target = $region48
        $region47: #{multi_head_attention.4} parent=31 // pred_region
          %vm331 = vcmask 7168
          %332 = vst.msk [vmem:[#allocation2] sm:$0xff] %vm331, -inf
          %333 = vst.msk [vmem:[#allocation2 + $0x8] sm:$0xff] %vm331, -inf
          %334 = vst.msk [vmem:[#allocation2 + $0x10] sm:$0xff] %vm331, -inf
          %335 = vst.msk [vmem:[#allocation2 + $0x18] sm:$0xff] %vm331, -inf
          %336 = vst.msk [vmem:[#allocation3] sm:$0xff] %vm331, 0.0
          %337 = vst.msk [vmem:[#allocation3 + $0x8] sm:$0xff] %vm331, 0.0
          %338 = vst.msk [vmem:[#allocation3 + $0x10] sm:$0xff] %vm331, 0.0
          %339 = vst.msk [vmem:[#allocation3 + $0x18] sm:$0xff] %vm331, 0.0
          %vm340 = vcmask 64512
          %341 = vst.msk [vmem:[#allocation4] sm:$0xff] %vm340, 0.0
          %342 = vst.msk [vmem:[#allocation4 + $0x8] sm:$0xff] %vm340, 0.0
          %343 = vst.msk [vmem:[#allocation4 + $0x10] sm:$0xff] %vm340, 0.0
          %344 = vst.msk [vmem:[#allocation4 + $0x18] sm:$0xff] %vm340, 0.0
        $region48: #{multi_head_attention.4} parent=31 // pred_fallthru
          _
        %v345 = vld [vmem:[%s269] sm:$0xff]
        %v346 = vld [vmem:[%s278] sm:$0xff]
        %v347 = vld [vmem:[%s287] sm:$0xff]
        %vm348 = vcmask 64512
        %v350 = vsel %vm348, %v345, 0
        %v353 = vsel %vm348, %v346, 0
        %355 = vmatprep.subr.mxu0 0.0
        %356 = vmatpush1.xpose.msra.mxu0 %v353
        %357 = vmatprep.subr.mxu0 0.0
        %358 = vmatpush1.xpose.msra.mxu0 0.0
        %359 = vmatprep.subr.mxu0 0.0
        %360 = vmatpush1.xpose.msra.mxu0 0.0
        %361 = vmatprep.subr.mxu0 0.0
        %362 = vmatpush1.xpose.msra.mxu0 0.0
        %363 = vmatprep.subr.mxu0 0.0
        %364 = vmatpush1.xpose.msra.mxu0 0.0
        %365 = vmatprep.subr.mxu0 0.0
        %366 = vmatpush1.xpose.msra.mxu0 0.0
        %367 = vmatprep.subr.mxu0 0.0
        %368 = vmatpush1.xpose.msra.mxu0 0.0
        %369 = vmatprep.subr.mxu0 0.0
        %370 = vmatpush1.xpose.msra.mxu0 0.0
        %371 = vmatprep.subr.mxu0 0.0
        %372 = vmatpush1.xpose.msra.mxu0 0.0
        %373 = vmatprep.subr.mxu0 0.0
        %374 = vmatpush1.xpose.msra.mxu0 0.0
        %375 = vmatprep.subr.mxu0 0.0
        %376 = vmatpush1.xpose.msra.mxu0 0.0
        %377 = vmatprep.subr.mxu0 0.0
        %378 = vmatpush1.xpose.msra.mxu0 0.0
        %379 = vmatprep.subr.mxu0 0.0
        %380 = vmatpush1.xpose.msra.mxu0 0.0
        %381 = vmatprep.subr.mxu0 0.0
        %382 = vmatpush1.xpose.msra.mxu0 0.0
        %383 = vmatprep.subr.mxu0 0.0
        %384 = vmatpush1.xpose.msra.mxu0 0.0
        %385 = vmatprep.subr.mxu0 0.0
        %386 = vmatpush1.xpose.msra.mxu0 0.0
        %387 = vmatprep.subr.mxu0 0.0
        %388 = vmatpush1.xpose.msra.mxu0 0.0
        %389 = vmatprep.subr.mxu0 0.0
        %390 = vmatpush1.xpose.msra.mxu0 0.0
        %391 = vmatprep.subr.mxu0 0.0
        %392 = vmatpush1.xpose.msra.mxu0 0.0
        %393 = vmatprep.subr.mxu0 0.0
        %394 = vmatpush1.xpose.msra.mxu0 0.0
        %395 = vmatprep.subr.mxu0 0.0
        %396 = vmatpush1.xpose.msra.mxu0 0.0
        %397 = vmatprep.subr.mxu0 0.0
        %398 = vmatpush1.xpose.msra.mxu0 0.0
        %399 = vmatprep.subr.mxu0 0.0
        %400 = vmatpush1.xpose.msra.mxu0 0.0
        %401 = vmatprep.subr.mxu0 0.0
        %402 = vmatpush1.xpose.msra.mxu0 0.0
        %403 = vmatprep.subr.mxu0 0.0
        %404 = vmatpush1.xpose.msra.mxu0 0.0
        %405 = vmatprep.subr.mxu0 0.0
        %406 = vmatpush1.xpose.msra.mxu0 0.0
        %407 = vmatprep.subr.mxu0 0.0
        %408 = vmatpush1.xpose.msra.mxu0 0.0
        %409 = vmatprep.subr.mxu0 0.0
        %410 = vmatpush1.xpose.msra.mxu0 0.0
        %411 = vmatprep.subr.mxu0 0.0
        %412 = vmatpush1.xpose.msra.mxu0 0.0
        %413 = vmatprep.subr.mxu0 0.0
        %414 = vmatpush1.xpose.msra.mxu0 0.0
        %415 = vmatprep.subr.mxu0 0.0
        %416 = vmatpush1.xpose.msra.mxu0 0.0
        %417 = vmatprep.subr.mxu0 0.0
        %418 = vmatpush1.xpose.msra.mxu0 0.0
        %419 = vmatprep.mubr.f32.mxu0 0.0
        %420 = vmatmul.mubr.f32.gmra.mrb[0].mxu0 %v350
        %v421 = vpop.f32.mrb[0].mxu0
        %v422 = vadd.f32 0.0, %v421
        %v423 = vpop.f32.mrb[0].mxu0
        %424 = vdwg.mxu0
        %v425 = vld [vmem:[#allocation2] sm:$0xff]
        %v426 = vsel %vm348, %v422, -inf
        %427 = vmax.xlane.f32.xlu0 %v426
        %v428 = vpop.xlane.xlu0 %427
        %v429 = vmax.f32 %v425, %v428
        %v430 = vsub.f32 %v425, %v429
        %v431 = vmul.f32 %v430, 1.442695
        %v432 = vpow.pop %v431
        %434 = vset.pattern.permute.xlu0 0
        %435 = vperm.xlu0 %434, %v429
        %v436 = vpop.permute.xlu0 %435
        %v438 = vsub.f32 %v422, %v436
        %v439 = vmul.f32 %v438, 1.442695
        %v440 = vpow.pop %v439
        %v441 = vld [vmem:[#allocation3] sm:$0xff]
        %v442 = vmul.f32 %v432, %v441
        %v443 = vsel %vm348, %v440, 0.0
        %444 = vadd.xlane.f32.xlu0 %v443
        %v445 = vpop.xlane.xlu0 %444
        %v446 = vadd.f32 %v442, %v445
        %vm447 = vcmask 7168
        %448 = vst.msk [vmem:[#allocation3] sm:$0xff] %vm447, %v446
        %v449 = vld [vmem:[#allocation4] sm:$0xff]
        %451 = vset.pattern.permute.xlu0 0
        %452 = vperm.xlu0 %451, %v432
        %v453 = vpop.permute.xlu0 %452
        %v455 = vmul.f32 %v453, %v449
        %v457 = vsel %vm348, %v440, 0
        %459 = vmatprep.subr.mxu0 0.0
        %460 = vmatpush1.msra.mxu0 %v347
        %461 = vmatprep.subr.mxu0 0.0
        %462 = vmatpush1.msra.mxu0 0.0
        %463 = vmatprep.subr.mxu0 0.0
        %464 = vmatpush1.msra.mxu0 0.0
        %465 = vmatprep.subr.mxu0 0.0
        %466 = vmatpush1.msra.mxu0 0.0
        %467 = vmatprep.subr.mxu0 0.0
        %468 = vmatpush1.msra.mxu0 0.0
        %469 = vmatprep.subr.mxu0 0.0
        %470 = vmatpush1.msra.mxu0 0.0
        %471 = vmatprep.subr.mxu0 0.0
        %472 = vmatpush1.msra.mxu0 0.0
        %473 = vmatprep.subr.mxu0 0.0
        %474 = vmatpush1.msra.mxu0 0.0
        %475 = vmatprep.subr.mxu0 0.0
        %476 = vmatpush1.msra.mxu0 0.0
        %477 = vmatprep.subr.mxu0 0.0
        %478 = vmatpush1.msra.mxu0 0.0
        %479 = vmatprep.subr.mxu0 0.0
        %480 = vmatpush1.msra.mxu0 0.0
        %481 = vmatprep.subr.mxu0 0.0
        %482 = vmatpush1.msra.mxu0 0.0
        %483 = vmatprep.subr.mxu0 0.0
        %484 = vmatpush1.msra.mxu0 0.0
        %485 = vmatprep.subr.mxu0 0.0
        %486 = vmatpush1.msra.mxu0 0.0
        %487 = vmatprep.subr.mxu0 0.0
        %488 = vmatpush1.msra.mxu0 0.0
        %489 = vmatprep.subr.mxu0 0.0
        %490 = vmatpush1.msra.mxu0 0.0
        %491 = vmatprep.subr.mxu0 0.0
        %492 = vmatpush1.msra.mxu0 0.0
        %493 = vmatprep.subr.mxu0 0.0
        %494 = vmatpush1.msra.mxu0 0.0
        %495 = vmatprep.subr.mxu0 0.0
        %496 = vmatpush1.msra.mxu0 0.0
        %497 = vmatprep.subr.mxu0 0.0
        %498 = vmatpush1.msra.mxu0 0.0
        %499 = vmatprep.subr.mxu0 0.0
        %500 = vmatpush1.msra.mxu0 0.0
        %501 = vmatprep.subr.mxu0 0.0
        %502 = vmatpush1.msra.mxu0 0.0
        %503 = vmatprep.subr.mxu0 0.0
        %504 = vmatpush1.msra.mxu0 0.0
        %505 = vmatprep.subr.mxu0 0.0
        %506 = vmatpush1.msra.mxu0 0.0
        %507 = vmatprep.subr.mxu0 0.0
        %508 = vmatpush1.msra.mxu0 0.0
        %509 = vmatprep.subr.mxu0 0.0
        %510 = vmatpush1.msra.mxu0 0.0
        %511 = vmatprep.subr.mxu0 0.0
        %512 = vmatpush1.msra.mxu0 0.0
        %513 = vmatprep.subr.mxu0 0.0
        %514 = vmatpush1.msra.mxu0 0.0
        %515 = vmatprep.subr.mxu0 0.0
        %516 = vmatpush1.msra.mxu0 0.0
        %517 = vmatprep.subr.mxu0 0.0
        %518 = vmatpush1.msra.mxu0 0.0
        %519 = vmatprep.subr.mxu0 0.0
        %520 = vmatpush1.msra.mxu0 0.0
        %521 = vmatprep.subr.mxu0 0.0
        %522 = vmatpush1.msra.mxu0 0.0
        %523 = vmatprep.mubr.f32.mxu0 0.0
        %524 = vmatmul.mubr.f32.gmra.mrb[0].mxu0 %v457
        %v525 = vpop.f32.mrb[0].mxu0
        %v526 = vadd.f32 0.0, %v525
        %v527 = vpop.f32.mrb[0].mxu0
        %528 = vdwg.mxu0
        %v529 = vadd.f32 %v455, %v526
        %530 = vst.msk [vmem:[#allocation4] sm:$0xff] %vm348, %v529
        %531 = vst.msk [vmem:[#allocation2] sm:$0xff] %vm447, %v429
        %532 = vrot.lane.b32.xlu0 %v345, 120
        %v533 = vpop.permute.xlu0 %532
        %534 = vrot.lane.b32.xlu0 %v346, 120
        %v535 = vpop.permute.xlu0 %534
        %v536 = vsel %vm348, %v533, 0
        %v538 = vsel %vm348, %v535, 0
        %540 = vmatprep.subr.mxu0 0.0
        %541 = vmatpush1.xpose.msra.mxu0 %v538
        %542 = vmatprep.subr.mxu0 0.0
        %543 = vmatpush1.xpose.msra.mxu0 0.0
        %544 = vmatprep.subr.mxu0 0.0
        %545 = vmatpush1.xpose.msra.mxu0 0.0
        %546 = vmatprep.subr.mxu0 0.0
        %547 = vmatpush1.xpose.msra.mxu0 0.0
        %548 = vmatprep.subr.mxu0 0.0
        %549 = vmatpush1.xpose.msra.mxu0 0.0
        %550 = vmatprep.subr.mxu0 0.0
        %551 = vmatpush1.xpose.msra.mxu0 0.0
        %552 = vmatprep.subr.mxu0 0.0
        %553 = vmatpush1.xpose.msra.mxu0 0.0
        %554 = vmatprep.subr.mxu0 0.0
        %555 = vmatpush1.xpose.msra.mxu0 0.0
        %556 = vmatprep.subr.mxu0 0.0
        %557 = vmatpush1.xpose.msra.mxu0 0.0
        %558 = vmatprep.subr.mxu0 0.0
        %559 = vmatpush1.xpose.msra.mxu0 0.0
        %560 = vmatprep.subr.mxu0 0.0
        %561 = vmatpush1.xpose.msra.mxu0 0.0
        %562 = vmatprep.subr.mxu0 0.0
        %563 = vmatpush1.xpose.msra.mxu0 0.0
        %564 = vmatprep.subr.mxu0 0.0
        %565 = vmatpush1.xpose.msra.mxu0 0.0
        %566 = vmatprep.subr.mxu0 0.0
        %567 = vmatpush1.xpose.msra.mxu0 0.0
        %568 = vmatprep.subr.mxu0 0.0
        %569 = vmatpush1.xpose.msra.mxu0 0.0
        %570 = vmatprep.subr.mxu0 0.0
        %571 = vmatpush1.xpose.msra.mxu0 0.0
        %572 = vmatprep.subr.mxu0 0.0
        %573 = vmatpush1.xpose.msra.mxu0 0.0
        %574 = vmatprep.subr.mxu0 0.0
        %575 = vmatpush1.xpose.msra.mxu0 0.0
        %576 = vmatprep.subr.mxu0 0.0
        %577 = vmatpush1.xpose.msra.mxu0 0.0
        %578 = vmatprep.subr.mxu0 0.0
        %579 = vmatpush1.xpose.msra.mxu0 0.0
        %580 = vmatprep.subr.mxu0 0.0
        %581 = vmatpush1.xpose.msra.mxu0 0.0
        %582 = vmatprep.subr.mxu0 0.0
        %583 = vmatpush1.xpose.msra.mxu0 0.0
        %584 = vmatprep.subr.mxu0 0.0
        %585 = vmatpush1.xpose.msra.mxu0 0.0
        %586 = vmatprep.subr.mxu0 0.0
        %587 = vmatpush1.xpose.msra.mxu0 0.0
        %588 = vmatprep.subr.mxu0 0.0
        %589 = vmatpush1.xpose.msra.mxu0 0.0
        %590 = vmatprep.subr.mxu0 0.0
        %591 = vmatpush1.xpose.msra.mxu0 0.0
        %592 = vmatprep.subr.mxu0 0.0
        %593 = vmatpush1.xpose.msra.mxu0 0.0
        %594 = vmatprep.subr.mxu0 0.0
        %595 = vmatpush1.xpose.msra.mxu0 0.0
        %596 = vmatprep.subr.mxu0 0.0
        %597 = vmatpush1.xpose.msra.mxu0 0.0
        %598 = vmatprep.subr.mxu0 0.0
        %599 = vmatpush1.xpose.msra.mxu0 0.0
        %600 = vmatprep.subr.mxu0 0.0
        %601 = vmatpush1.xpose.msra.mxu0 0.0
        %602 = vmatprep.subr.mxu0 0.0
        %603 = vmatpush1.xpose.msra.mxu0 0.0
        %604 = vmatprep.mubr.f32.mxu0 0.0
        %605 = vmatmul.mubr.f32.gmra.mrb[0].mxu0 %v536
        %v606 = vpop.f32.mrb[0].mxu0
        %v607 = vadd.f32 0.0, %v606
        %v608 = vpop.f32.mrb[0].mxu0
        %609 = vdwg.mxu0
        %s610 = scalar_lea.vmem [#allocation2], 8
        %v611 = vld [vmem:[%s610] sm:$0xff]
        %v612 = vsel %vm348, %v607, -inf
        %613 = vmax.xlane.f32.xlu0 %v612
        %v614 = vpop.xlane.xlu0 %613
        %v615 = vmax.f32 %v611, %v614
        %v616 = vsub.f32 %v611, %v615
        %v617 = vmul.f32 %v616, 1.442695
        %v618 = vpow.pop %v617
        %620 = vset.pattern.permute.xlu0 0
        %621 = vperm.xlu0 %620, %v615
        %v622 = vpop.permute.xlu0 %621
        %v624 = vsub.f32 %v607, %v622
        %v625 = vmul.f32 %v624, 1.442695
        %v626 = vpow.pop %v625
        %s627 = scalar_lea.vmem [#allocation3], 8
        %v628 = vld [vmem:[%s627] sm:$0xff]
        %v629 = vmul.f32 %v618, %v628
        %v630 = vsel %vm348, %v626, 0.0
        %631 = vadd.xlane.f32.xlu0 %v630
        %v632 = vpop.xlane.xlu0 %631
        %v633 = vadd.f32 %v629, %v632
        %634 = vst.msk [vmem:[%s627] sm:$0xff] %vm447, %v633
        %s635 = scalar_lea.vmem [#allocation4], 8
        %v636 = vld [vmem:[%s635] sm:$0xff]
        %638 = vset.pattern.permute.xlu0 0
        %639 = vperm.xlu0 %638, %v618
        %v640 = vpop.permute.xlu0 %639
        %v642 = vmul.f32 %v640, %v636
        %644 = vrot.lane.b32.xlu0 %v347, 120
        %v645 = vpop.permute.xlu0 %644
        %v648 = vsel %vm348, %v626, 0
        %650 = vmatprep.subr.mxu0 0.0
        %651 = vmatpush1.msra.mxu0 %v645
        %652 = vmatprep.subr.mxu0 0.0
        %653 = vmatpush1.msra.mxu0 0.0
        %654 = vmatprep.subr.mxu0 0.0
        %655 = vmatpush1.msra.mxu0 0.0
        %656 = vmatprep.subr.mxu0 0.0
        %657 = vmatpush1.msra.mxu0 0.0
        %658 = vmatprep.subr.mxu0 0.0
        %659 = vmatpush1.msra.mxu0 0.0
        %660 = vmatprep.subr.mxu0 0.0
        %661 = vmatpush1.msra.mxu0 0.0
        %662 = vmatprep.subr.mxu0 0.0
        %663 = vmatpush1.msra.mxu0 0.0
        %664 = vmatprep.subr.mxu0 0.0
        %665 = vmatpush1.msra.mxu0 0.0
        %666 = vmatprep.subr.mxu0 0.0
        %667 = vmatpush1.msra.mxu0 0.0
        %668 = vmatprep.subr.mxu0 0.0
        %669 = vmatpush1.msra.mxu0 0.0
        %670 = vmatprep.subr.mxu0 0.0
        %671 = vmatpush1.msra.mxu0 0.0
        %672 = vmatprep.subr.mxu0 0.0
        %673 = vmatpush1.msra.mxu0 0.0
        %674 = vmatprep.subr.mxu0 0.0
        %675 = vmatpush1.msra.mxu0 0.0
        %676 = vmatprep.subr.mxu0 0.0
        %677 = vmatpush1.msra.mxu0 0.0
        %678 = vmatprep.subr.mxu0 0.0
        %679 = vmatpush1.msra.mxu0 0.0
        %680 = vmatprep.subr.mxu0 0.0
        %681 = vmatpush1.msra.mxu0 0.0
        %682 = vmatprep.subr.mxu0 0.0
        %683 = vmatpush1.msra.mxu0 0.0
        %684 = vmatprep.subr.mxu0 0.0
        %685 = vmatpush1.msra.mxu0 0.0
        %686 = vmatprep.subr.mxu0 0.0
        %687 = vmatpush1.msra.mxu0 0.0
        %688 = vmatprep.subr.mxu0 0.0
        %689 = vmatpush1.msra.mxu0 0.0
        %690 = vmatprep.subr.mxu0 0.0
        %691 = vmatpush1.msra.mxu0 0.0
        %692 = vmatprep.subr.mxu0 0.0
        %693 = vmatpush1.msra.mxu0 0.0
        %694 = vmatprep.subr.mxu0 0.0
        %695 = vmatpush1.msra.mxu0 0.0
        %696 = vmatprep.subr.mxu0 0.0
        %697 = vmatpush1.msra.mxu0 0.0
        %698 = vmatprep.subr.mxu0 0.0
        %699 = vmatpush1.msra.mxu0 0.0
        %700 = vmatprep.subr.mxu0 0.0
        %701 = vmatpush1.msra.mxu0 0.0
        %702 = vmatprep.subr.mxu0 0.0
        %703 = vmatpush1.msra.mxu0 0.0
        %704 = vmatprep.subr.mxu0 0.0
        %705 = vmatpush1.msra.mxu0 0.0
        %706 = vmatprep.subr.mxu0 0.0
        %707 = vmatpush1.msra.mxu0 0.0
        %708 = vmatprep.subr.mxu0 0.0
        %709 = vmatpush1.msra.mxu0 0.0
        %710 = vmatprep.subr.mxu0 0.0
        %711 = vmatpush1.msra.mxu0 0.0
        %712 = vmatprep.subr.mxu0 0.0
        %713 = vmatpush1.msra.mxu0 0.0
        %714 = vmatprep.mubr.f32.mxu0 0.0
        %715 = vmatmul.mubr.f32.gmra.mrb[0].mxu0 %v648
        %v716 = vpop.f32.mrb[0].mxu0
        %v717 = vadd.f32 0.0, %v716
        %v718 = vpop.f32.mrb[0].mxu0
        %719 = vdwg.mxu0
        %v720 = vadd.f32 %v642, %v717
        %721 = vst.msk [vmem:[%s635] sm:$0xff] %vm348, %v720
        %722 = vst.msk [vmem:[%s610] sm:$0xff] %vm447, %v615
        %723 = vrot.lane.b32.xlu0 %v345, 112
        %v724 = vpop.permute.xlu0 %723
        %725 = vrot.lane.b32.xlu0 %v346, 112
        %v726 = vpop.permute.xlu0 %725
        %v727 = vsel %vm348, %v724, 0
        %v729 = vsel %vm348, %v726, 0
        %731 = vmatprep.subr.mxu0 0.0
        %732 = vmatpush1.xpose.msra.mxu0 %v729
        %733 = vmatprep.subr.mxu0 0.0
        %734 = vmatpush1.xpose.msra.mxu0 0.0
        %735 = vmatprep.subr.mxu0 0.0
        %736 = vmatpush1.xpose.msra.mxu0 0.0
        %737 = vmatprep.subr.mxu0 0.0
        %738 = vmatpush1.xpose.msra.mxu0 0.0
        %739 = vmatprep.subr.mxu0 0.0
        %740 = vmatpush1.xpose.msra.mxu0 0.0
        %741 = vmatprep.subr.mxu0 0.0
        %742 = vmatpush1.xpose.msra.mxu0 0.0
        %743 = vmatprep.subr.mxu0 0.0
        %744 = vmatpush1.xpose.msra.mxu0 0.0
        %745 = vmatprep.subr.mxu0 0.0
        %746 = vmatpush1.xpose.msra.mxu0 0.0
        %747 = vmatprep.subr.mxu0 0.0
        %748 = vmatpush1.xpose.msra.mxu0 0.0
        %749 = vmatprep.subr.mxu0 0.0
        %750 = vmatpush1.xpose.msra.mxu0 0.0
        %751 = vmatprep.subr.mxu0 0.0
        %752 = vmatpush1.xpose.msra.mxu0 0.0
        %753 = vmatprep.subr.mxu0 0.0
        %754 = vmatpush1.xpose.msra.mxu0 0.0
        %755 = vmatprep.subr.mxu0 0.0
        %756 = vmatpush1.xpose.msra.mxu0 0.0
        %757 = vmatprep.subr.mxu0 0.0
        %758 = vmatpush1.xpose.msra.mxu0 0.0
        %759 = vmatprep.subr.mxu0 0.0
        %760 = vmatpush1.xpose.msra.mxu0 0.0
        %761 = vmatprep.subr.mxu0 0.0
        %762 = vmatpush1.xpose.msra.mxu0 0.0
        %763 = vmatprep.subr.mxu0 0.0
        %764 = vmatpush1.xpose.msra.mxu0 0.0
        %765 = vmatprep.subr.mxu0 0.0
        %766 = vmatpush1.xpose.msra.mxu0 0.0
        %767 = vmatprep.subr.mxu0 0.0
        %768 = vmatpush1.xpose.msra.mxu0 0.0
        %769 = vmatprep.subr.mxu0 0.0
        %770 = vmatpush1.xpose.msra.mxu0 0.0
        %771 = vmatprep.subr.mxu0 0.0
        %772 = vmatpush1.xpose.msra.mxu0 0.0
        %773 = vmatprep.subr.mxu0 0.0
        %774 = vmatpush1.xpose.msra.mxu0 0.0
        %775 = vmatprep.subr.mxu0 0.0
        %776 = vmatpush1.xpose.msra.mxu0 0.0
        %777 = vmatprep.subr.mxu0 0.0
        %778 = vmatpush1.xpose.msra.mxu0 0.0
        %779 = vmatprep.subr.mxu0 0.0
        %780 = vmatpush1.xpose.msra.mxu0 0.0
        %781 = vmatprep.subr.mxu0 0.0
        %782 = vmatpush1.xpose.msra.mxu0 0.0
        %783 = vmatprep.subr.mxu0 0.0
        %784 = vmatpush1.xpose.msra.mxu0 0.0
        %785 = vmatprep.subr.mxu0 0.0
        %786 = vmatpush1.xpose.msra.mxu0 0.0
        %787 = vmatprep.subr.mxu0 0.0
        %788 = vmatpush1.xpose.msra.mxu0 0.0
        %789 = vmatprep.subr.mxu0 0.0
        %790 = vmatpush1.xpose.msra.mxu0 0.0
        %791 = vmatprep.subr.mxu0 0.0
        %792 = vmatpush1.xpose.msra.mxu0 0.0
        %793 = vmatprep.subr.mxu0 0.0
        %794 = vmatpush1.xpose.msra.mxu0 0.0
        %795 = vmatprep.mubr.f32.mxu0 0.0
        %796 = vmatmul.mubr.f32.gmra.mrb[0].mxu0 %v727
        %v797 = vpop.f32.mrb[0].mxu0
        %v798 = vadd.f32 0.0, %v797
        %v799 = vpop.f32.mrb[0].mxu0
        %800 = vdwg.mxu0
        %s801 = scalar_lea.vmem [#allocation2], 16
        %v802 = vld [vmem:[%s801] sm:$0xff]
        %v803 = vsel %vm348, %v798, -inf
        %804 = vmax.xlane.f32.xlu0 %v803
        %v805 = vpop.xlane.xlu0 %804
        %v806 = vmax.f32 %v802, %v805
        %v807 = vsub.f32 %v802, %v806
        %v808 = vmul.f32 %v807, 1.442695
        %v809 = vpow.pop %v808
        %811 = vset.pattern.permute.xlu0 0
        %812 = vperm.xlu0 %811, %v806
        %v813 = vpop.permute.xlu0 %812
        %v815 = vsub.f32 %v798, %v813
        %v816 = vmul.f32 %v815, 1.442695
        %v817 = vpow.pop %v816
        %s818 = scalar_lea.vmem [#allocation3], 16
        %v819 = vld [vmem:[%s818] sm:$0xff]
        %v820 = vmul.f32 %v809, %v819
        %v821 = vsel %vm348, %v817, 0.0
        %822 = vadd.xlane.f32.xlu0 %v821
        %v823 = vpop.xlane.xlu0 %822
        %v824 = vadd.f32 %v820, %v823
        %825 = vst.msk [vmem:[%s818] sm:$0xff] %vm447, %v824
        %s826 = scalar_lea.vmem [#allocation4], 16
        %v827 = vld [vmem:[%s826] sm:$0xff]
        %829 = vset.pattern.permute.xlu0 0
        %830 = vperm.xlu0 %829, %v809
        %v831 = vpop.permute.xlu0 %830
        %v833 = vmul.f32 %v831, %v827
        %834 = vrot.lane.b32.xlu0 %v347, 112
        %v835 = vpop.permute.xlu0 %834
        %v838 = vsel %vm348, %v817, 0
        %840 = vmatprep.subr.mxu0 0.0
        %841 = vmatpush1.msra.mxu0 %v835
        %842 = vmatprep.subr.mxu0 0.0
        %843 = vmatpush1.msra.mxu0 0.0
        %844 = vmatprep.subr.mxu0 0.0
        %845 = vmatpush1.msra.mxu0 0.0
        %846 = vmatprep.subr.mxu0 0.0
        %847 = vmatpush1.msra.mxu0 0.0
        %848 = vmatprep.subr.mxu0 0.0
        %849 = vmatpush1.msra.mxu0 0.0
        %850 = vmatprep.subr.mxu0 0.0
        %851 = vmatpush1.msra.mxu0 0.0
        %852 = vmatprep.subr.mxu0 0.0
        %853 = vmatpush1.msra.mxu0 0.0
        %854 = vmatprep.subr.mxu0 0.0
        %855 = vmatpush1.msra.mxu0 0.0
        %856 = vmatprep.subr.mxu0 0.0
        %857 = vmatpush1.msra.mxu0 0.0
        %858 = vmatprep.subr.mxu0 0.0
        %859 = vmatpush1.msra.mxu0 0.0
        %860 = vmatprep.subr.mxu0 0.0
        %861 = vmatpush1.msra.mxu0 0.0
        %862 = vmatprep.subr.mxu0 0.0
        %863 = vmatpush1.msra.mxu0 0.0
        %864 = vmatprep.subr.mxu0 0.0
        %865 = vmatpush1.msra.mxu0 0.0
        %866 = vmatprep.subr.mxu0 0.0
        %867 = vmatpush1.msra.mxu0 0.0
        %868 = vmatprep.subr.mxu0 0.0
        %869 = vmatpush1.msra.mxu0 0.0
        %870 = vmatprep.subr.mxu0 0.0
        %871 = vmatpush1.msra.mxu0 0.0
        %872 = vmatprep.subr.mxu0 0.0
        %873 = vmatpush1.msra.mxu0 0.0
        %874 = vmatprep.subr.mxu0 0.0
        %875 = vmatpush1.msra.mxu0 0.0
        %876 = vmatprep.subr.mxu0 0.0
        %877 = vmatpush1.msra.mxu0 0.0
        %878 = vmatprep.subr.mxu0 0.0
        %879 = vmatpush1.msra.mxu0 0.0
        %880 = vmatprep.subr.mxu0 0.0
        %881 = vmatpush1.msra.mxu0 0.0
        %882 = vmatprep.subr.mxu0 0.0
        %883 = vmatpush1.msra.mxu0 0.0
        %884 = vmatprep.subr.mxu0 0.0
        %885 = vmatpush1.msra.mxu0 0.0
        %886 = vmatprep.subr.mxu0 0.0
        %887 = vmatpush1.msra.mxu0 0.0
        %888 = vmatprep.subr.mxu0 0.0
        %889 = vmatpush1.msra.mxu0 0.0
        %890 = vmatprep.subr.mxu0 0.0
        %891 = vmatpush1.msra.mxu0 0.0
        %892 = vmatprep.subr.mxu0 0.0
        %893 = vmatpush1.msra.mxu0 0.0
        %894 = vmatprep.subr.mxu0 0.0
        %895 = vmatpush1.msra.mxu0 0.0
        %896 = vmatprep.subr.mxu0 0.0
        %897 = vmatpush1.msra.mxu0 0.0
        %898 = vmatprep.subr.mxu0 0.0
        %899 = vmatpush1.msra.mxu0 0.0
        %900 = vmatprep.subr.mxu0 0.0
        %901 = vmatpush1.msra.mxu0 0.0
        %902 = vmatprep.subr.mxu0 0.0
        %903 = vmatpush1.msra.mxu0 0.0
        %904 = vmatprep.mubr.f32.mxu0 0.0
        %905 = vmatmul.mubr.f32.gmra.mrb[0].mxu0 %v838
        %v906 = vpop.f32.mrb[0].mxu0
        %v907 = vadd.f32 0.0, %v906
        %v908 = vpop.f32.mrb[0].mxu0
        %909 = vdwg.mxu0
        %v910 = vadd.f32 %v833, %v907
        %911 = vst.msk [vmem:[%s826] sm:$0xff] %vm348, %v910
        %912 = vst.msk [vmem:[%s801] sm:$0xff] %vm447, %v806
        %913 = vrot.lane.b32.xlu0 %v345, 104
        %v914 = vpop.permute.xlu0 %913
        %915 = vrot.lane.b32.xlu0 %v346, 104
        %v916 = vpop.permute.xlu0 %915
        %v917 = vsel %vm348, %v914, 0
        %v919 = vsel %vm348, %v916, 0
        %921 = vmatprep.subr.mxu0 0.0
        %922 = vmatpush1.xpose.msra.mxu0 %v919
        %923 = vmatprep.subr.mxu0 0.0
        %924 = vmatpush1.xpose.msra.mxu0 0.0
        %925 = vmatprep.subr.mxu0 0.0
        %926 = vmatpush1.xpose.msra.mxu0 0.0
        %927 = vmatprep.subr.mxu0 0.0
        %928 = vmatpush1.xpose.msra.mxu0 0.0
        %929 = vmatprep.subr.mxu0 0.0
        %930 = vmatpush1.xpose.msra.mxu0 0.0
        %931 = vmatprep.subr.mxu0 0.0
        %932 = vmatpush1.xpose.msra.mxu0 0.0
        %933 = vmatprep.subr.mxu0 0.0
        %934 = vmatpush1.xpose.msra.mxu0 0.0
        %935 = vmatprep.subr.mxu0 0.0
        %936 = vmatpush1.xpose.msra.mxu0 0.0
        %937 = vmatprep.subr.mxu0 0.0
        %938 = vmatpush1.xpose.msra.mxu0 0.0
        %939 = vmatprep.subr.mxu0 0.0
        %940 = vmatpush1.xpose.msra.mxu0 0.0
        %941 = vmatprep.subr.mxu0 0.0
        %942 = vmatpush1.xpose.msra.mxu0 0.0
        %943 = vmatprep.subr.mxu0 0.0
        %944 = vmatpush1.xpose.msra.mxu0 0.0
        %945 = vmatprep.subr.mxu0 0.0
        %946 = vmatpush1.xpose.msra.mxu0 0.0
        %947 = vmatprep.subr.mxu0 0.0
        %948 = vmatpush1.xpose.msra.mxu0 0.0
        %949 = vmatprep.subr.mxu0 0.0
        %950 = vmatpush1.xpose.msra.mxu0 0.0
        %951 = vmatprep.subr.mxu0 0.0
        %952 = vmatpush1.xpose.msra.mxu0 0.0
        %953 = vmatprep.subr.mxu0 0.0
        %954 = vmatpush1.xpose.msra.mxu0 0.0
        %955 = vmatprep.subr.mxu0 0.0
        %956 = vmatpush1.xpose.msra.mxu0 0.0
        %957 = vmatprep.subr.mxu0 0.0
        %958 = vmatpush1.xpose.msra.mxu0 0.0
        %959 = vmatprep.subr.mxu0 0.0
        %960 = vmatpush1.xpose.msra.mxu0 0.0
        %961 = vmatprep.subr.mxu0 0.0
        %962 = vmatpush1.xpose.msra.mxu0 0.0
        %963 = vmatprep.subr.mxu0 0.0
        %964 = vmatpush1.xpose.msra.mxu0 0.0
        %965 = vmatprep.subr.mxu0 0.0
        %966 = vmatpush1.xpose.msra.mxu0 0.0
        %967 = vmatprep.subr.mxu0 0.0
        %968 = vmatpush1.xpose.msra.mxu0 0.0
        %969 = vmatprep.subr.mxu0 0.0
        %970 = vmatpush1.xpose.msra.mxu0 0.0
        %971 = vmatprep.subr.mxu0 0.0
        %972 = vmatpush1.xpose.msra.mxu0 0.0
        %973 = vmatprep.subr.mxu0 0.0
        %974 = vmatpush1.xpose.msra.mxu0 0.0
        %975 = vmatprep.subr.mxu0 0.0
        %976 = vmatpush1.xpose.msra.mxu0 0.0
        %977 = vmatprep.subr.mxu0 0.0
        %978 = vmatpush1.xpose.msra.mxu0 0.0
        %979 = vmatprep.subr.mxu0 0.0
        %980 = vmatpush1.xpose.msra.mxu0 0.0
        %981 = vmatprep.subr.mxu0 0.0
        %982 = vmatpush1.xpose.msra.mxu0 0.0
        %983 = vmatprep.subr.mxu0 0.0
        %984 = vmatpush1.xpose.msra.mxu0 0.0
        %985 = vmatprep.mubr.f32.mxu0 0.0
        %986 = vmatmul.mubr.f32.gmra.mrb[0].mxu0 %v917
        %v987 = vpop.f32.mrb[0].mxu0
        %v988 = vadd.f32 0.0, %v987
        %v989 = vpop.f32.mrb[0].mxu0
        %990 = vdwg.mxu0
        %s991 = scalar_lea.vmem [#allocation2], 24
        %v992 = vld [vmem:[%s991] sm:$0xff]
        %v993 = vsel %vm348, %v988, -inf
        %994 = vmax.xlane.f32.xlu0 %v993
        %v995 = vpop.xlane.xlu0 %994
        %v996 = vmax.f32 %v992, %v995
        %v997 = vsub.f32 %v992, %v996
        %v998 = vmul.f32 %v997, 1.442695
        %v999 = vpow.pop %v998
        %1001 = vset.pattern.permute.xlu0 0
        %1002 = vperm.xlu0 %1001, %v996
        %v1003 = vpop.permute.xlu0 %1002
        %v1005 = vsub.f32 %v988, %v1003
        %v1006 = vmul.f32 %v1005, 1.442695
        %v1007 = vpow.pop %v1006
        %s1008 = scalar_lea.vmem [#allocation3], 24
        %v1009 = vld [vmem:[%s1008] sm:$0xff]
        %v1010 = vmul.f32 %v999, %v1009
        %v1011 = vsel %vm348, %v1007, 0.0
        %1012 = vadd.xlane.f32.xlu0 %v1011
        %v1013 = vpop.xlane.xlu0 %1012
        %v1014 = vadd.f32 %v1010, %v1013
        %1015 = vst.msk [vmem:[%s1008] sm:$0xff] %vm447, %v1014
        %s1016 = scalar_lea.vmem [#allocation4], 24
        %v1017 = vld [vmem:[%s1016] sm:$0xff]
        %1019 = vset.pattern.permute.xlu0 0
        %1020 = vperm.xlu0 %1019, %v999
        %v1021 = vpop.permute.xlu0 %1020
        %v1023 = vmul.f32 %v1021, %v1017
        %1024 = vrot.lane.b32.xlu0 %v347, 104
        %v1025 = vpop.permute.xlu0 %1024
        %v1028 = vsel %vm348, %v1007, 0
        %1030 = vmatprep.subr.mxu0 0.0
        %1031 = vmatpush1.msra.mxu0 %v1025
        %1032 = vmatprep.subr.mxu0 0.0
        %1033 = vmatpush1.msra.mxu0 0.0
        %1034 = vmatprep.subr.mxu0 0.0
        %1035 = vmatpush1.msra.mxu0 0.0
        %1036 = vmatprep.subr.mxu0 0.0
        %1037 = vmatpush1.msra.mxu0 0.0
        %1038 = vmatprep.subr.mxu0 0.0
        %1039 = vmatpush1.msra.mxu0 0.0
        %1040 = vmatprep.subr.mxu0 0.0
        %1041 = vmatpush1.msra.mxu0 0.0
        %1042 = vmatprep.subr.mxu0 0.0
        %1043 = vmatpush1.msra.mxu0 0.0
        %1044 = vmatprep.subr.mxu0 0.0
        %1045 = vmatpush1.msra.mxu0 0.0
        %1046 = vmatprep.subr.mxu0 0.0
        %1047 = vmatpush1.msra.mxu0 0.0
        %1048 = vmatprep.subr.mxu0 0.0
        %1049 = vmatpush1.msra.mxu0 0.0
        %1050 = vmatprep.subr.mxu0 0.0
        %1051 = vmatpush1.msra.mxu0 0.0
        %1052 = vmatprep.subr.mxu0 0.0
        %1053 = vmatpush1.msra.mxu0 0.0
        %1054 = vmatprep.subr.mxu0 0.0
        %1055 = vmatpush1.msra.mxu0 0.0
        %1056 = vmatprep.subr.mxu0 0.0
        %1057 = vmatpush1.msra.mxu0 0.0
        %1058 = vmatprep.subr.mxu0 0.0
        %1059 = vmatpush1.msra.mxu0 0.0
        %1060 = vmatprep.subr.mxu0 0.0
        %1061 = vmatpush1.msra.mxu0 0.0
        %1062 = vmatprep.subr.mxu0 0.0
        %1063 = vmatpush1.msra.mxu0 0.0
        %1064 = vmatprep.subr.mxu0 0.0
        %1065 = vmatpush1.msra.mxu0 0.0
        %1066 = vmatprep.subr.mxu0 0.0
        %1067 = vmatpush1.msra.mxu0 0.0
        %1068 = vmatprep.subr.mxu0 0.0
        %1069 = vmatpush1.msra.mxu0 0.0
        %1070 = vmatprep.subr.mxu0 0.0
        %1071 = vmatpush1.msra.mxu0 0.0
        %1072 = vmatprep.subr.mxu0 0.0
        %1073 = vmatpush1.msra.mxu0 0.0
        %1074 = vmatprep.subr.mxu0 0.0
        %1075 = vmatpush1.msra.mxu0 0.0
        %1076 = vmatprep.subr.mxu0 0.0
        %1077 = vmatpush1.msra.mxu0 0.0
        %1078 = vmatprep.subr.mxu0 0.0
        %1079 = vmatpush1.msra.mxu0 0.0
        %1080 = vmatprep.subr.mxu0 0.0
        %1081 = vmatpush1.msra.mxu0 0.0
        %1082 = vmatprep.subr.mxu0 0.0
        %1083 = vmatpush1.msra.mxu0 0.0
        %1084 = vmatprep.subr.mxu0 0.0
        %1085 = vmatpush1.msra.mxu0 0.0
        %1086 = vmatprep.subr.mxu0 0.0
        %1087 = vmatpush1.msra.mxu0 0.0
        %1088 = vmatprep.subr.mxu0 0.0
        %1089 = vmatpush1.msra.mxu0 0.0
        %1090 = vmatprep.subr.mxu0 0.0
        %1091 = vmatpush1.msra.mxu0 0.0
        %1092 = vmatprep.subr.mxu0 0.0
        %1093 = vmatpush1.msra.mxu0 0.0
        %1094 = vmatprep.mubr.f32.mxu0 0.0
        %1095 = vmatmul.mubr.f32.gmra.mrb[0].mxu0 %v1028
        %v1096 = vpop.f32.mrb[0].mxu0
        %v1097 = vadd.f32 0.0, %v1096
        %v1098 = vpop.f32.mrb[0].mxu0
        %1099 = vdwg.mxu0
        %v1100 = vadd.f32 %v1023, %v1097
        %1101 = vst.msk [vmem:[%s1016] sm:$0xff] %vm348, %v1100
        %1102 = vst.msk [vmem:[%s991] sm:$0xff] %vm447, %v996
        // Predicated region
        $region49: #{multi_head_attention.4} parent=31 // pred_check
          %p1103 = pneg %p327
        $region50: #{multi_head_attention.4} parent=31 // pred_check_branch
          %1105 = sbr.rel (%p1103) target = $region52
        $region51: #{multi_head_attention.4} parent=31 // pred_region
          %v1106 = vld [vmem:[#allocation3] sm:$0xff]
          %v1107 = vrcp.pop %v1106
          %v1108 = vld [vmem:[#allocation4] sm:$0xff]
          %1110 = vset.pattern.permute.xlu0 0
          %1111 = vperm.xlu0 %1110, %v1107
          %v1112 = vpop.permute.xlu0 %1111
          %v1114 = vmul.f32 %v1108, %v1112
          %v1115 = vld [vmem:[#allocation2] sm:$0xff]
          %v1116 = vlog2.pop %v1106
          %v1117 = vmul.f32 %v1116, 0.6931472
          %v1118 = vadd.f32 %v1115, %v1117
          %1119 = vst.msk [vmem:[%s326] sm:$0xff] %vm447, %v1118
          %v1120 = vld [vmem:[%s627] sm:$0xff]
          %v1121 = vrcp.pop %v1120
          %v1122 = vld [vmem:[%s635] sm:$0xff]
          %1124 = vset.pattern.permute.xlu0 0
          %1125 = vperm.xlu0 %1124, %v1121
          %v1126 = vpop.permute.xlu0 %1125
          %v1128 = vmul.f32 %v1122, %v1126
          %v1129 = vld [vmem:[%s610] sm:$0xff]
          %v1130 = vlog2.pop %v1120
          %v1131 = vmul.f32 %v1130, 0.6931472
          %v1132 = vadd.f32 %v1129, %v1131
          %s1133 = scalar_lea.vmem %s326, 8 [#allocation12]
          %1134 = vst.msk [vmem:[%s1133] sm:$0xff] %vm447, %v1132
          %v1135 = vld [vmem:[%s818] sm:$0xff]
          %v1136 = vrcp.pop %v1135
          %v1137 = vld [vmem:[%s826] sm:$0xff]
          %1139 = vset.pattern.permute.xlu0 0
          %1140 = vperm.xlu0 %1139, %v1136
          %v1141 = vpop.permute.xlu0 %1140
          %v1143 = vmul.f32 %v1137, %v1141
          %v1144 = vld [vmem:[%s801] sm:$0xff]
          %v1145 = vlog2.pop %v1135
          %v1146 = vmul.f32 %v1145, 0.6931472
          %v1147 = vadd.f32 %v1144, %v1146
          %s1148 = scalar_lea.vmem %s326, 16 [#allocation12]
          %1149 = vst.msk [vmem:[%s1148] sm:$0xff] %vm447, %v1147
          %v1150 = vld [vmem:[%s1008] sm:$0xff]
          %v1151 = vrcp.pop %v1150
          %v1152 = vld [vmem:[%s1016] sm:$0xff]
          %1154 = vset.pattern.permute.xlu0 0
          %1155 = vperm.xlu0 %1154, %v1151
          %v1156 = vpop.permute.xlu0 %1155
          %v1158 = vmul.f32 %v1152, %v1156
          %v1159 = vld [vmem:[%s991] sm:$0xff]
          %v1160 = vlog2.pop %v1150
          %v1161 = vmul.f32 %v1160, 0.6931472
          %v1162 = vadd.f32 %v1159, %v1161
          %s1163 = scalar_lea.vmem %s326, 24 [#allocation12]
          %1164 = vst.msk [vmem:[%s1163] sm:$0xff] %vm447, %v1162
          %1166 = vrot.lane.b32.xlu0 %v1128, 8
          %v1167 = vpop.permute.xlu0 %1166
          %1170 = vrot.lane.b32.xlu0 %v1143, 16
          %v1171 = vpop.permute.xlu0 %1170
          %1174 = vrot.lane.b32.xlu0 %v1158, 24
          %v1175 = vpop.permute.xlu0 %1174
          %v1177 = vsel %vm348, %v1114, %v1167
          %vm1178 = vcmask 130048
          %v1179 = vsel %vm1178, %v1177, %v1171
          %vm1180 = vcmask 195584
          %v1181 = vsel %vm1180, %v1179, %v1175
          %vm1182 = vcmask 261120
          %1183 = vst.msk [vmem:[%s319] sm:$0xff] %vm1182, %v1181
        $region52: #{multi_head_attention.4} parent=31 // pred_fallthru
          _
        %s1184 = sand.u32 %s141, 1
        %s1185 = scalar_lea.sflag [#allocation7], %s1184
        %s1186 = sand.u32 %s141, 1
        %s1187 = smul.addr %s1186, 8
        %s1188 = scalar_lea.vmem [#allocation11], %s1187
        %s1189 = sand.u32 %s169, 1
        %s1190 = scalar_lea.sflag [#allocation13], %s1189
        %s1191 = sand.u32 %s169, 1
        %s1192 = smul.addr %s1191, 32
        %s1193 = scalar_lea.vmem [#allocation12], %s1192
        // Predicated region
        $region53: #{multi_head_attention.4} parent=31 // pred_check
          %p1194 = pneg %p151
        $region54: #{multi_head_attention.4} parent=31 // pred_check_branch
          %1196 = sbr.rel (%p1194) target = $region56
        $region55: #{multi_head_attention.4} parent=31 // pred_region
          %s1198 = ssub.s32 128, 128
          %1199 = vsyncadd %s1185, %s1198
          %s1200 = sadd.s32 %s34, %s33
          %s1201 = smul.addr %s1200, 128
          %s1202 = scalar_lea.hbm %s3, %s1201
          %s1204 = sshll.u32 %s1188, 4
          %s1205 = int_to_ptr.vmem [resolvable:$true] %s1204
          %1207 = dma.vmem_to_hbm [thread:$0]  %s1205, 128, %s1202, %s1185
        $region56: #{multi_head_attention.4} parent=31 // pred_fallthru
          _
        // Predicated region
        $region57: #{multi_head_attention.4} parent=31 // pred_check
          %p1208 = pneg %p179
        $region58: #{multi_head_attention.4} parent=31 // pred_check_branch
          %1210 = sbr.rel (%p1208) target = $region60
        $region59: #{multi_head_attention.4} parent=31 // pred_region
          %s1212 = ssub.s32 512, 512
          %1213 = vsyncadd %s1190, %s1212
          %s1214 = smul.addr %s33, 4
          %s1215 = sadd.s32 %s34, %s1214
          %s1216 = smul.addr %s1215, 128
          %s1217 = scalar_lea.hbm %s4, %s1216
          %s1218 = sshll.u32 %s1193, 4
          %s1219 = int_to_ptr.vmem [resolvable:$true] %s1218
          %1224 = dma.vmem_to_hbm [thread:$0]  %s1219, 512, %s1217, %s1190, 128, 128, 8
        $region60: #{multi_head_attention.4} parent=31 // pred_fallthru
          _
      $region32: #{multi_head_attention.4} parent=5 // pred_fallthru
        _
      %p1225 = scmp.le.s32.totalorder 2, %s23
      // Predicated region
      $region61: #{multi_head_attention.4} parent=5 // pred_check
        %p1226 = pneg %p1225
      $region62: #{multi_head_attention.4} parent=5 // pred_check_branch
        %1228 = sbr.rel (%p1226) target = $region64
      $region63: #{multi_head_attention.4} parent=5 // pred_region
        %s1229 = ssub.s32 %s23, 2
        // Predicated region
        $region65: #{multi_head_attention.4} parent=63 // pred_check
          %p1230 = pneg %p157
        $region66: #{multi_head_attention.4} parent=63 // pred_check_branch
          %1232 = sbr.rel (%p1230) target = $region68
        $region67: #{multi_head_attention.4} parent=63 // pred_region
          %s1233 = sand.u32 %s142, 1
          %s1234 = scalar_lea.sflag [#allocation7], %s1233
          %s1235 = sand.u32 %s142, 1
          %s1236 = smul.addr %s1235, 8
          %s1237 = scalar_lea.vmem [#allocation11], %s1236
          %1238 = dma.done %s1234, 128
        $region68: #{multi_head_attention.4} parent=63 // pred_fallthru
          _
        // Predicated region
        $region69: #{multi_head_attention.4} parent=63 // pred_check
          %p1239 = pneg %p185
        $region70: #{multi_head_attention.4} parent=63 // pred_check_branch
          %1241 = sbr.rel (%p1239) target = $region72
        $region71: #{multi_head_attention.4} parent=63 // pred_region
          %s1242 = sand.u32 %s170, 1
          %s1243 = scalar_lea.sflag [#allocation13], %s1242
          %s1244 = sand.u32 %s170, 1
          %s1245 = smul.addr %s1244, 32
          %s1246 = scalar_lea.vmem [#allocation12], %s1245
          %1247 = dma.done %s1243, 512
        $region72: #{multi_head_attention.4} parent=63 // pred_fallthru
          _
      $region64: #{multi_head_attention.4} parent=5 // pred_fallthru
        _
    $region6: #{multi_head_attention.4} parent=1 // loop_footer
      %s27 = sadd.s32 1, %s23
    $region7: #{multi_head_attention.4} parent=1 // loop_footer_branch
      %22 = sbr.rel target = $region3
    $region8: #{multi_head_attention.4} parent=1 // loop_exit
      _
    %1248 = vsyncpa [#allocation6], 1
    %s1249 = scalar_lea.sflag [#allocation6], 1
    %1250 = vsyncpa %s1249, 1
    %1251 = vsyncpa [#allocation9], 1
    %s1252 = scalar_lea.sflag [#allocation9], 1
    %1253 = vsyncpa %s1252, 1
    %1254 = vsyncpa [#allocation7], 1
    %s1255 = scalar_lea.sflag [#allocation7], 1
    %1256 = vsyncpa %s1255, 1
    %1257 = vsyncpa [#allocation13], 1
    %s1258 = scalar_lea.sflag [#allocation13], 1
    %1259 = vsyncpa %s1258, 1

</llo_original>
